<compile_context>
chip_gen: v5e
topology: v5e:2x2
jax: 0.10.0
libtpu: 0.0.40
codegen_flags: <defaults>
</compile_context>

<pallas_src>
import functools
import math

import jax
import jax.numpy as jnp
from jax.experimental import pallas as pl
from jax.experimental.pallas import tpu as pltpu

TIME_PROJ_DIM = 32
TIME_EMB_DIM = 128
CROSS_DIM = 32
GROUPS = 8

_VMEM_LIMIT = 32 * 1024 * 1024  # safe on v5e/v6e (128 MiB) and v7x (64 MiB physical VMEM)


# ----------------------------- direct 3x3 conv kernel -----------------------------

def _conv_kernel(x_ref, w_ref, b_ref, *rest, H, W, KH, KW, add_temb, res_mode):
    rest = list(rest)
    temb_ref = rest.pop(0) if add_temb else None
    res_ref = rest.pop(0) if res_mode is not None else None
    if res_mode == 'proj':
        wsc_ref = rest.pop(0)
        bsc_ref = rest.pop(0)
    o_ref = rest.pop(0)

    cout = w_ref.shape[-1]
    acc = jnp.zeros((H * W, cout), jnp.float32)
    for t in range(KH * KW):                      # static unroll over taps, all in VMEM
        dy, dx = t // KW, t % KW
        tap = x_ref[dx, 0, dy * W: dy * W + H * W, :]
        tap = tap.astype(jnp.bfloat16)
        acc = acc + jnp.dot(tap, w_ref[t], preferred_element_type=jnp.float32)
    acc = acc + b_ref[...]
    if add_temb:
        acc = acc + temb_ref[0]
    if res_mode == 'add':
        acc = acc + res_ref[0].astype(jnp.float32)
    elif res_mode == 'proj':                      # fused 1x1 shortcut projection
        acc = acc + (jnp.dot(res_ref[0], wsc_ref[...],
                             preferred_element_type=jnp.float32) + bsc_ref[...])
    o_ref[0] = acc.astype(o_ref.dtype)


def conv3x3(x, cw, *, temb=None, res=None, shortcut=None, stride=1):
    """3x3 conv (padding=1) on NHWC activations, one batch element per grid step (all-VMEM).

    Fused epilogues: +bias, +time-embedding broadcast, +residual (identity add or 1x1 proj).
    stride=2 is computed as the stride-1 conv followed by a 2x spatial subsample."""
    N, H, W, Cin = x.shape
    T, _, Cout = cw['w'].shape
    assert T == 9
    KH = KW = 3
    # Taps are row slices at offsets dy*W of the dx-pre-shifted, row-flattened slab; choose a
    # slab dtype whose sublane packing keeps those offsets tile-aligned (bf16 needs W%16==0).
    slab_dtype = jnp.bfloat16 if (W % 16 == 0) else jnp.float32
    xp = jnp.pad(x.astype(slab_dtype), ((0, 0), (1, 1), (1, 1), (0, 0)))
    R = (H + 2) * W
    slabs = jnp.stack(
        [xp[:, :, dx:dx + W, :].reshape(N, R, Cin) for dx in range(KW)], axis=0)

    args = [slabs, cw['w'], cw['b']]
    in_specs = [
        pl.BlockSpec((KW, 1, R, Cin), lambda i: (0, i, 0, 0)),
        pl.BlockSpec((T, Cin, Cout), lambda i: (0, 0, 0)),
        pl.BlockSpec((1, Cout), lambda i: (0, 0)),
    ]
    add_temb = temb is not None
    if add_temb:
        args.append(temb.reshape(N, 1, Cout).astype(jnp.float32))
        in_specs.append(pl.BlockSpec((1, 1, Cout), lambda i: (i, 0, 0)))
    res_mode = None
    if res is not None:
        Cr = res.shape[-1]
        args.append(res.reshape(N, H * W, Cr).astype(jnp.bfloat16))
        in_specs.append(pl.BlockSpec((1, H * W, Cr), lambda i: (i, 0, 0)))
        if shortcut is not None:
            res_mode = 'proj'
            args.extend([shortcut['w'], shortcut['b']])
            in_specs.append(pl.BlockSpec((Cr, Cout), lambda i: (0, 0)))
            in_specs.append(pl.BlockSpec((1, Cout), lambda i: (0, 0)))
        else:
            res_mode = 'add'

    out = pl.pallas_call(
        functools.partial(_conv_kernel, H=H, W=W, KH=KH, KW=KW,
                          add_temb=add_temb, res_mode=res_mode),
        out_shape=jax.ShapeDtypeStruct((N, H * W, Cout), jnp.bfloat16),
        grid=(N,),
        in_specs=in_specs,
        out_specs=pl.BlockSpec((1, H * W, Cout), lambda i: (i, 0, 0)),
        compiler_params=pltpu.CompilerParams(
            dimension_semantics=("parallel",),
            vmem_limit_bytes=_VMEM_LIMIT),
    )(*args)
    y = out.reshape(N, H, W, Cout)
    if stride == 2:
        # TODO(synk): a strided direct-conv kernel would avoid the 4x extra MACs here.
        y = y[:, ::2, ::2, :]
    return y


# ----------------------------- GroupNorm (+SiLU) kernel -----------------------------

def _gn_kernel(x_ref, g_ref, b_ref, o_ref, *, eps, silu, groups, inv_count):
    x = x_ref[0].astype(jnp.float32)                            # (HW, C)
    C = x.shape[-1]
    cg = C // groups
    grp = jax.lax.broadcasted_iota(jnp.int32, (1, C), 1) // cg  # group id per channel

    s = jnp.sum(x, axis=0, keepdims=True)                       # (1, C) per-channel sums
    mean = jnp.zeros((1, C), jnp.float32)
    for g in range(groups):                                     # VPU segment sum (no MXU)
        mk = (grp == g).astype(jnp.float32)
        mean = mean + jnp.sum(s * mk, axis=-1, keepdims=True) * mk
    mean = mean * inv_count

    d = x - mean                                                # centered two-pass variance
    sd = jnp.sum(d * d, axis=0, keepdims=True)
    var = jnp.zeros((1, C), jnp.float32)
    for g in range(groups):
        mk = (grp == g).astype(jnp.float32)
        var = var + jnp.sum(sd * mk, axis=-1, keepdims=True) * mk
    var = var * inv_count

    y = d * jax.lax.rsqrt(var + eps) * g_ref[...] + b_ref[...]
    if silu:
        y = y * jax.nn.sigmoid(y)
    o_ref[0] = y.astype(o_ref.dtype)


def group_norm(x, gn, *, silu=False, groups=GROUPS, eps=1e-5):
    # TODO(synk): tile over HW (partial-sum two-pass) before using at real UNet resolutions.
    N, H, W, C = x.shape
    HW = H * W
    out = pl.pallas_call(
        functools.partial(_gn_kernel, eps=eps, silu=silu, groups=groups,
                          inv_count=1.0 / (HW * (C // groups))),
        out_shape=jax.ShapeDtypeStruct((N, HW, C), jnp.bfloat16),
        grid=(N,),
        in_specs=[pl.BlockSpec((1, HW, C), lambda i: (i, 0, 0)),
                  pl.BlockSpec((1, C), lambda i: (0, 0)),
                  pl.BlockSpec((1, C), lambda i: (0, 0))],
        out_specs=pl.BlockSpec((1, HW, C), lambda i: (i, 0, 0)),
        compiler_params=pltpu.CompilerParams(
            dimension_semantics=("parallel",),
            vmem_limit_bytes=_VMEM_LIMIT),
    )(x.reshape(N, HW, C), gn['g'], gn['b'])
    return out.reshape(N, H, W, C)


# ----------------------------- fused attention block kernel -----------------------------

def _attn_kernel(hq_ref, ctx_ref, res_ref, wq_ref, bq_ref, wk_ref, bk_ref,
                 wv_ref, bv_ref, wo_ref, bo_ref, o_ref):
    h = hq_ref[0]                                   # (Lq, C)  normalized tokens, bf16
    ctx = ctx_ref[0]                                # (Lk, Ck) context tokens, bf16
    # 1/sqrt(C) already folded into wq/bq at weight-prep time.
    q = jnp.dot(h, wq_ref[...], preferred_element_type=jnp.float32) + bq_ref[...]
    k = jnp.dot(ctx, wk_ref[...], preferred_element_type=jnp.float32) + bk_ref[...]
    v = jnp.dot(ctx, wv_ref[...], preferred_element_type=jnp.float32) + bv_ref[...]
    s = jax.lax.dot_general(q.astype(jnp.bfloat16), k.astype(jnp.bfloat16),
                            (((1,), (1,)), ((), ())),
                            preferred_element_type=jnp.float32)            # (Lq, Lk)
    m = jnp.max(s, axis=-1, keepdims=True)
    p = jnp.exp(s - m)
    l = jnp.sum(p, axis=-1, keepdims=True)
    p = p * pl.reciprocal(l, approx=True)
    o = jnp.dot(p.astype(jnp.bfloat16), v.astype(jnp.bfloat16),
                preferred_element_type=jnp.float32)                        # (Lq, C)
    out = (jnp.dot(o.astype(jnp.bfloat16), wo_ref[...],
                   preferred_element_type=jnp.float32)
           + bo_ref[...] + res_ref[0].astype(jnp.float32))                 # fused residual
    o_ref[0] = out.astype(o_ref.dtype)


def _run_attention(hq, ctx, res, ap, grid, tok_map, ctx_map, semantics):
    Nq, Lq, C = hq.shape
    _, Lk, Ck = ctx.shape
    if len(grid) == 1:
        wmap = lambda i: (0, 0)
    else:
        wmap = lambda i, j: (0, 0)
    in_specs = [
        pl.BlockSpec((1, Lq, C), tok_map),
        pl.BlockSpec((1, Lk, Ck), ctx_map),
        pl.BlockSpec((1, Lq, C), tok_map),
        pl.BlockSpec((C, C), wmap), pl.BlockSpec((1, C), wmap),
        pl.BlockSpec((Ck, C), wmap), pl.BlockSpec((1, C), wmap),
        pl.BlockSpec((Ck, C), wmap), pl.BlockSpec((1, C), wmap),
        pl.BlockSpec((C, C), wmap), pl.BlockSpec((1, C), wmap),
    ]
    return pl.pallas_call(
        _attn_kernel,
        out_shape=jax.ShapeDtypeStruct((Nq, Lq, C), jnp.bfloat16),
        grid=grid,
        in_specs=in_specs,
        out_specs=pl.BlockSpec((1, Lq, C), tok_map),
        compiler_params=pltpu.CompilerParams(
            dimension_semantics=semantics,
            vmem_limit_bytes=_VMEM_LIMIT),
    )(hq, ctx, res,
      ap['to_q']['w'], ap['to_q']['b'], ap['to_k']['w'], ap['to_k']['b'],
      ap['to_v']['w'], ap['to_v']['b'], ap['to_out']['w'], ap['to_out']['b'])


def cross_attention(x, ap, prompt):
    """GroupNorm -> (q,k,v proj + dense softmax + out proj + residual) in a single kernel."""
    N, H, W, C = x.shape
    h = group_norm(x, ap['norm'], silu=False)
    out = _run_attention(
        h.reshape(N, H * W, C), prompt, x.reshape(N, H * W, C).astype(jnp.bfloat16), ap,
        grid=(N,),
        tok_map=lambda i: (i, 0, 0),
        ctx_map=lambda i: (i, 0, 0),
        semantics=("parallel",))
    return out.reshape(N, H, W, C)


def cp_attention(x, ap, num_views):
    # TODO(synk): reference CPAttn samples correspondence-warped key/value positions (external
    # epipolar code); implemented here as full multi-view self-attention over all views' tokens.
    N, H, W, C = x.shape
    b = N // num_views
    h = group_norm(x, ap['norm'], silu=False)
    out = _run_attention(
        h.reshape(N, H * W, C), h.reshape(b, num_views * H * W, C),
        x.reshape(N, H * W, C).astype(jnp.bfloat16), ap,
        grid=(b, num_views),
        tok_map=lambda i, j: (i * num_views + j, 0, 0),
        ctx_map=lambda i, j: (i, 0, 0),
        semantics=("parallel", "parallel"))
    return out.reshape(N, H, W, C)


# ----------------------------- misc forward helpers -----------------------------

def upsample_nearest2x(x):
    N, H, W, C = x.shape
    x = jnp.broadcast_to(x[:, :, None, :, None, :], (N, H, 2, W, 2, C))
    return x.reshape(N, 2 * H, 2 * W, C)


def time_proj(t, dim=TIME_PROJ_DIM, max_period=10000.0):
    half = dim // 2
    freqs = jnp.exp(-math.log(max_period) * jnp.arange(half, dtype=jnp.float32) / half)
    args = t.astype(jnp.float32)[:, None] * freqs[None, :]
    return jnp.concatenate([jnp.cos(args), jnp.sin(args)], axis=-1)   # flip_sin_to_cos


# ---------------------------------- raw parameter init ----------------------------------

class KeyGen:
    def __init__(self, seed):
        self.key = jax.random.PRNGKey(seed)

    def __call__(self):
        self.key, sub = jax.random.split(self.key)
        return sub


def init_linear(kg, din, dout):
    return {'w': jax.random.normal(kg(), (din, dout), jnp.float32) / math.sqrt(din),
            'b': jnp.zeros((dout,), jnp.float32)}


def init_conv(kg, cin, cout, k):
    return {'w': jax.random.normal(kg(), (cout, cin, k, k), jnp.float32) / math.sqrt(cin * k * k),
            'b': jnp.zeros((cout,), jnp.float32)}


def init_gn(c):
    return {'g': jnp.ones((c,), jnp.float32), 'b': jnp.zeros((c,), jnp.float32)}


def init_resnet(kg, cin, cout):
    p = {'norm1': init_gn(cin), 'conv1': init_conv(kg, cin, cout, 3),
         'time': init_linear(kg, TIME_EMB_DIM, cout),
         'norm2': init_gn(cout), 'conv2': init_conv(kg, cout, cout, 3)}
    if cin != cout:
        p['shortcut'] = init_conv(kg, cin, cout, 1)
    return p


def init_xattn(kg, c, cross):
    return {'norm': init_gn(c),
            'to_q': init_linear(kg, c, c), 'to_k': init_linear(kg, cross, c),
            'to_v': init_linear(kg, cross, c), 'to_out': init_linear(kg, c, c)}


def init_cpattn(kg, c):
    return {'norm': init_gn(c),
            'to_q': init_linear(kg, c, c), 'to_k': init_linear(kg, c, c),
            'to_v': init_linear(kg, c, c), 'to_out': init_linear(kg, c, c)}


def init_model(seed=42):
    kg = KeyGen(seed)
    C0, C1 = 32, 64
    return {
        'time_emb': {'l1': init_linear(kg, TIME_PROJ_DIM, TIME_EMB_DIM),
                     'l2': init_linear(kg, TIME_EMB_DIM, TIME_EMB_DIM)},
        'conv_in': init_conv(kg, 4, C0, 3),
        'down': [
            {'resnets': [init_resnet(kg, C0, C0), init_resnet(kg, C0, C0)],
             'attns': [init_xattn(kg, C0, CROSS_DIM), init_xattn(kg, C0, CROSS_DIM)],
             'downsampler': init_conv(kg, C0, C0, 3)},
            {'resnets': [init_resnet(kg, C0, C1), init_resnet(kg, C1, C1)],
             'attns': None, 'downsampler': None},
        ],
        'cp_enc': [init_cpattn(kg, C0), init_cpattn(kg, C1)],
        'mid': {'resnet1': init_resnet(kg, C1, C1),
                'attn': init_xattn(kg, C1, CROSS_DIM),
                'resnet2': init_resnet(kg, C1, C1)},
        'cp_mid': init_cpattn(kg, C1),
        'up': [
            {'resnets': [init_resnet(kg, C1 + C1, C1), init_resnet(kg, C1 + C1, C1),
                         init_resnet(kg, C1 + C0, C1)],
             'attns': None, 'upsampler': init_conv(kg, C1, C1, 3)},
            {'resnets': [init_resnet(kg, C1 + C0, C0), init_resnet(kg, C0 + C0, C0),
                         init_resnet(kg, C0 + C0, C0)],
             'attns': [init_xattn(kg, C0, CROSS_DIM), init_xattn(kg, C0, CROSS_DIM),
                       init_xattn(kg, C0, CROSS_DIM)],
             'upsampler': None},
        ],
        'cp_dec': [init_cpattn(kg, C1), init_cpattn(kg, C0)],
        'conv_norm_out': init_gn(C0),
        'conv_out': init_conv(kg, C0, 4, 3),
    }


# ------------------------- one-time weight preparation (hoisted) -------------------------

def prep_conv(c):
    w, b = c['w'], c['b']
    cout, cin, kh, kw = w.shape
    if kh == 1 and kw == 1:
        return {'w': w.reshape(cout, cin).T.astype(jnp.bfloat16),
                'b': b.reshape(1, cout).astype(jnp.float32)}
    return {'w': jnp.transpose(w, (2, 3, 1, 0)).reshape(kh * kw, cin, cout).astype(jnp.bfloat16),
            'b': b.reshape(1, cout).astype(jnp.float32)}


def prep_linear(l, scale=1.0):
    dout = l['w'].shape[1]
    return {'w': (l['w'] * scale).astype(jnp.bfloat16),
            'b': (l['b'] * scale).reshape(1, dout).astype(jnp.float32)}


def prep_gn(g):
    c = g['g'].shape[0]
    return {'g': g['g'].reshape(1, c).astype(jnp.float32),
            'b': g['b'].reshape(1, c).astype(jnp.float32)}


def prep_attn(a):
    c = a['to_q']['w'].shape[1]
    scale = 1.0 / math.sqrt(c)                      # fold 1/sqrt(D) into the q projection
    return {'norm': prep_gn(a['norm']),
            'to_q': prep_linear(a['to_q'], scale),
            'to_k': prep_linear(a['to_k']),
            'to_v': prep_linear(a['to_v']),
            'to_out': prep_linear(a['to_out'])}


def prep_resnet(r):
    p = {'norm1': prep_gn(r['norm1']), 'conv1': prep_conv(r['conv1']),
         'time': {'w': r['time']['w'], 'b': r['time']['b']},   # 2-row MLP stays plain JAX / f32
         'norm2': prep_gn(r['norm2']), 'conv2': prep_conv(r['conv2'])}
    if 'shortcut' in r:
        p['shortcut'] = prep_conv(r['shortcut'])
    return p


def prepare_params(raw):
    """Layout transpose, bf16 cast, bias reshape and q-scale folding done once, outside jit."""
    p = {'time_emb': raw['time_emb'],
         'conv_in': prep_conv(raw['conv_in']),
         'down': [], 'up': [],
         'cp_enc': [prep_attn(a) for a in raw['cp_enc']],
         'mid': {'resnet1': prep_resnet(raw['mid']['resnet1']),
                 'attn': prep_attn(raw['mid']['attn']),
                 'resnet2': prep_resnet(raw['mid']['resnet2'])},
         'cp_mid': prep_attn(raw['cp_mid']),
         'cp_dec': [prep_attn(a) for a in raw['cp_dec']],
         'conv_norm_out': prep_gn(raw['conv_norm_out']),
         'conv_out': prep_conv(raw['conv_out'])}
    for blk in raw['down']:
        p['down'].append({
            'resnets': [prep_resnet(r) for r in blk['resnets']],
            'attns': None if blk['attns'] is None else [prep_attn(a) for a in blk['attns']],
            'downsampler': None if blk['downsampler'] is None else prep_conv(blk['downsampler'])})
    for blk in raw['up']:
        p['up'].append({
            'resnets': [prep_resnet(r) for r in blk['resnets']],
            'attns': None if blk['attns'] is None else [prep_attn(a) for a in blk['attns']],
            'upsampler': None if blk['upsampler'] is None else prep_conv(blk['upsampler'])})
    return p


# ---------------------------------- block / full forward ----------------------------------

def resnet_forward(p, x, temb):
    h = group_norm(x, p['norm1'], silu=True)
    t_in = temb * jax.nn.sigmoid(temb)                              # SiLU, plain JAX (2 rows)
    t = jnp.dot(t_in, p['time']['w']) + p['time']['b']              # (N, Cout) f32
    h = conv3x3(h, p['conv1'], temb=t)                              # fused +time-emb
    h = group_norm(h, p['norm2'], silu=True)
    return conv3x3(h, p['conv2'], res=x, shortcut=p.get('shortcut'))  # fused residual/shortcut


def multiview_forward(params, latents, timestep, prompt_embedding, meta):
    b, m, c, h, w = latents.shape
    del meta  # TODO(synk): correspondences unused by the simplified (full multi-view) CPAttn.

    hidden = latents.reshape(b * m, c, h, w).transpose(0, 2, 3, 1).astype(jnp.bfloat16)  # NHWC
    prompt = prompt_embedding.reshape(b * m, prompt_embedding.shape[2],
                                      prompt_embedding.shape[3]).astype(jnp.bfloat16)

    t = timestep.reshape(-1)
    temb = time_proj(t)
    te = params['time_emb']                                         # 2-row MLP -> plain JAX
    temb = jnp.dot(temb, te['l1']['w']) + te['l1']['b']
    temb = temb * jax.nn.sigmoid(temb)
    temb = jnp.dot(temb, te['l2']['w']) + te['l2']['b']

    hidden = conv3x3(hidden, params['conv_in'])
    down_res = (hidden,)

    for i, blk in enumerate(params['down']):
        if blk['attns'] is not None:
            for rp, ap in zip(blk['resnets'], blk['attns']):
                hidden = resnet_forward(rp, hidden, temb)
                hidden = cross_attention(hidden, ap, prompt)
                down_res += (hidden,)
        else:
            for rp in blk['resnets']:
                hidden = resnet_forward(rp, hidden, temb)
                down_res += (hidden,)
        if m > 1:
            hidden = cp_attention(hidden, params['cp_enc'][i], m)
        if blk['downsampler'] is not None:
            hidden = conv3x3(hidden, blk['downsampler'], stride=2)
            down_res += (hidden,)

    hidden = resnet_forward(params['mid']['resnet1'], hidden, temb)
    if m > 1:
        hidden = cp_attention(hidden, params['cp_mid'], m)
    hidden = cross_attention(hidden, params['mid']['attn'], prompt)
    hidden = resnet_forward(params['mid']['resnet2'], hidden, temb)

    for i, blk in enumerate(params['up']):
        n = len(blk['resnets'])
        res_samples = down_res[-n:]
        down_res = down_res[:-n]
        for idx, rp in enumerate(blk['resnets']):
            skip = res_samples[-(idx + 1)]
            hidden = jnp.concatenate([hidden, skip], axis=-1)
            hidden = resnet_forward(rp, hidden, temb)
            if blk['attns'] is not None:
                hidden = cross_attention(hidden, blk['attns'][idx], prompt)
        if m > 1:
            hidden = cp_attention(hidden, params['cp_dec'][i], m)
        if blk['upsampler'] is not None:
            hidden = upsample_nearest2x(hidden)
            hidden = conv3x3(hidden, blk['upsampler'])

    out = group_norm(hidden, params['conv_norm_out'], silu=True)     # conv_norm_out + conv_act
    out = conv3x3(out, params['conv_out'])
    out = out.astype(jnp.float32).transpose(0, 3, 1, 2)              # back to NCHW, f32
    return out.reshape(b, m, out.shape[1], out.shape[2], out.shape[3])


# ---------------------------------- main ----------------------------------

if __name__ == "__main__":
    key = jax.random.PRNGKey(0)
    k1, k2, k3, k4 = jax.random.split(key, 4)

    b, m, c, h, w = 1, 2, 4, 16, 16
    L = 8

    latents = jax.random.normal(k1, (b, m, c, h, w), jnp.float32)
    prompt_embedding = jax.random.normal(k2, (b, m, L, CROSS_DIM), jnp.float32)
    timestep = jnp.array([[10, 500]], dtype=jnp.int32)               # (b, m)

    img_h, img_w = h * 8, w * 8
    f, cx, cy = 100.0, img_w / 2.0, img_h / 2.0
    K_single = jnp.array([[f, 0.0, cx], [0.0, f, cy], [0.0, 0.0, 1.0]], jnp.float32)
    Kmat = jnp.broadcast_to(K_single, (b, m, 3, 3))
    theta = 0.2
    R0 = jnp.eye(3, dtype=jnp.float32)
    R1 = jnp.array([[math.cos(theta), 0.0, math.sin(theta)],
                    [0.0, 1.0, 0.0],
                    [-math.sin(theta), 0.0, math.cos(theta)]], jnp.float32)
    Rmat = jnp.stack([R0, R1], axis=0)[None]
    meta = {'K': Kmat, 'R': Rmat}

    raw_params = init_model(seed=42)
    params = prepare_params(raw_params)

    # --- numerical self-checks of the Pallas kernels vs pure-JAX references ---
    kgc = KeyGen(7)

    # direct 3x3 conv
    xc = jax.random.normal(k3, (2, 16, 16, 32), jnp.float32).astype(jnp.bfloat16)
    conv_raw = init_conv(kgc, 32, 64, 3)
    got_cv = conv3x3(xc, prep_conv(conv_raw)).astype(jnp.float32)
    w_hwio = jnp.transpose(conv_raw['w'], (2, 3, 1, 0)).astype(jnp.bfloat16).astype(jnp.float32)
    ref_cv = jax.lax.conv_general_dilated(
        xc.astype(jnp.float32), w_hwio, (1, 1), [(1, 1), (1, 1)],
        dimension_numbers=('NHWC', 'HWIO', 'NHWC')) + conv_raw['b']
    assert float(jnp.max(jnp.abs(got_cv - ref_cv))) < 0.1

    # group norm + SiLU
    xg = jax.random.normal(k4, (2, 8, 8, 32), jnp.float32).astype(jnp.bfloat16)
    gn_raw = {'g': 1.0 + 0.1 * jnp.arange(32, dtype=jnp.float32),
              'b': 0.01 * jnp.arange(32, dtype=jnp.float32)}
    got_gn = group_norm(xg, prep_gn(gn_raw), silu=True).astype(jnp.float32)
    xf = xg.astype(jnp.float32)
    x5 = xf.reshape(2, 8, 8, GROUPS, 32 // GROUPS)
    mu = jnp.mean(x5, axis=(1, 2, 4), keepdims=True)
    var = jnp.mean(jnp.square(x5 - mu), axis=(1, 2, 4), keepdims=True)
    yg = ((x5 - mu) / jnp.sqrt(var + 1e-5)).reshape(2, 8, 8, 32)
    yg = yg * gn_raw['g'] + gn_raw['b']
    ref_gn = yg * jax.nn.sigmoid(yg)
    assert float(jnp.max(jnp.abs(got_gn - ref_gn))) < 0.05

    # fused cross-attention block
    xa = jax.random.normal(kgc(), (2, 8, 8, 32), jnp.float32).astype(jnp.bfloat16)
    pr = jax.random.normal(kgc(), (2, L, CROSS_DIM), jnp.float32).astype(jnp.bfloat16)
    attn_raw = init_xattn(kgc, 32, CROSS_DIM)
    got_at = cross_attention(xa, prep_attn(attn_raw), pr).astype(jnp.float32)
    xaf = xa.astype(jnp.float32)
    x5 = xaf.reshape(2, 8, 8, GROUPS, 4)
    mu = jnp.mean(x5, axis=(1, 2, 4), keepdims=True)
    var = jnp.mean(jnp.square(x5 - mu), axis=(1, 2, 4), keepdims=True)
    hh = ((x5 - mu) / jnp.sqrt(var + 1e-5)).reshape(2, 64, 32)

    def _lin(p_):
        return p_['w'].astype(jnp.bfloat16).astype(jnp.float32), p_['b']
    wq, bq = _lin(attn_raw['to_q']); wk, bk = _lin(attn_raw['to_k'])
    wv, bv = _lin(attn_raw['to_v']); wo, bo = _lin(attn_raw['to_out'])
    prf = pr.astype(jnp.float32)
    q_r = hh @ wq + bq
    k_r = prf @ wk + bk
    v_r = prf @ wv + bv
    sc = jnp.einsum('bqc,bkc->bqk', q_r, k_r) / math.sqrt(32)
    o_r = jnp.einsum('bqk,bkc->bqc', jax.nn.softmax(sc, axis=-1), v_r)
    ref_at = (o_r @ wo + bo + xaf.reshape(2, 64, 32)).reshape(2, 8, 8, 32)
    assert float(jnp.max(jnp.abs(got_at - ref_at))) < 0.2

    # --- full forward ---
    fwd = jax.jit(multiview_forward)
    out = fwd(params, latents, timestep, prompt_embedding, meta)
    out = jax.block_until_ready(out)

    assert out.shape == (b, m, c, h, w), out.shape
    assert bool(jnp.all(jnp.isfinite(out)))
    print("KERNEL_OK")
</pallas_src>

<mosaic_0001>
module attributes {stable_mosaic.version = 11 : i64} {
  func.func @_conv_kernel(%arg0: i32, %arg1: memref<3x1x288x32xbf16, #tpu.memory_space<vmem>>, %arg2: memref<9x32x64xbf16, #tpu.memory_space<vmem>>, %arg3: memref<1x64xf32, #tpu.memory_space<vmem>>, %arg4: memref<1x256x64xbf16, #tpu.memory_space<vmem>>) attributes {dimension_semantics = [#tpu.dimension_semantics<parallel>], iteration_bounds = array<i64: 2>, scalar_prefetch = 0 : i64, scratch_operands = 0 : i64, tpu.core_type = #tpu.core_type<tc>, window_params = [{transform_indices = @transform_0, window_bounds = array<i64: 3, 1, 288, 32>}, {pipeline_mode = #tpu.pipeline_mode<synchronous>, transform_indices = @transform_1, window_bounds = array<i64: 9, 32, 64>}, {pipeline_mode = #tpu.pipeline_mode<synchronous>, transform_indices = @transform_2, window_bounds = array<i64: 1, 64>}, {transform_indices = @transform_3, window_bounds = array<i64: 1, 256, 64>}]} {
    %cst = arith.constant 0.000000e+00 : f32
    %0 = vector.broadcast %cst : f32 to vector<256x64xf32>
    %c0 = arith.constant 0 : index
    %c0_0 = arith.constant 0 : index
    %c0_1 = arith.constant 0 : index
    %c0_2 = arith.constant 0 : index
    %1 = vector.load %arg1[%c0, %c0_0, %c0_1, %c0_2] : memref<3x1x288x32xbf16, #tpu.memory_space<vmem>>, vector<1x1x256x32xbf16>
    %2 = vector.shape_cast %1 : vector<1x1x256x32xbf16> to vector<256x32xbf16>
    %c0_3 = arith.constant 0 : index
    %c0_4 = arith.constant 0 : index
    %c0_5 = arith.constant 0 : index
    %3 = vector.load %arg2[%c0_3, %c0_4, %c0_5] : memref<9x32x64xbf16, #tpu.memory_space<vmem>>, vector<1x32x64xbf16>
    %4 = vector.shape_cast %3 : vector<1x32x64xbf16> to vector<32x64xbf16>
    %cst_6 = arith.constant dense<0.000000e+00> : vector<256x64xf32>
    %5 = tpu.matmul %2, %4, %cst_6 {dimension_numbers = #tpu.dot_dimension_numbers<[1], [0], [0], [1], [0, 0, 1, 1], [], []>} : vector<256x32xbf16>, vector<32x64xbf16>, vector<256x64xf32> -> vector<256x64xf32>
    %6 = arith.addf %0, %5 : vector<256x64xf32>
    %c1 = arith.constant 1 : index
    %c0_7 = arith.constant 0 : index
    %c0_8 = arith.constant 0 : index
    %c0_9 = arith.constant 0 : index
    %7 = vector.load %arg1[%c1, %c0_7, %c0_8, %c0_9] : memref<3x1x288x32xbf16, #tpu.memory_space<vmem>>, vector<1x1x256x32xbf16>
    %8 = vector.shape_cast %7 : vector<1x1x256x32xbf16> to vector<256x32xbf16>
    %c1_10 = arith.constant 1 : index
    %c0_11 = arith.constant 0 : index
    %c0_12 = arith.constant 0 : index
    %9 = vector.load %arg2[%c1_10, %c0_11, %c0_12] : memref<9x32x64xbf16, #tpu.memory_space<vmem>>, vector<1x32x64xbf16>
    %10 = vector.shape_cast %9 : vector<1x32x64xbf16> to vector<32x64xbf16>
    %cst_13 = arith.constant dense<0.000000e+00> : vector<256x64xf32>
    %11 = tpu.matmul %8, %10, %cst_13 {dimension_numbers = #tpu.dot_dimension_numbers<[1], [0], [0], [1], [0, 0, 1, 1], [], []>} : vector<256x32xbf16>, vector<32x64xbf16>, vector<256x64xf32> -> vector<256x64xf32>
    %12 = arith.addf %6, %11 : vector<256x64xf32>
    %c2 = arith.constant 2 : index
    %c0_14 = arith.constant 0 : index
    %c0_15 = arith.constant 0 : index
    %c0_16 = arith.constant 0 : index
    %13 = vector.load %arg1[%c2, %c0_14, %c0_15, %c0_16] : memref<3x1x288x32xbf16, #tpu.memory_space<vmem>>, vector<1x1x256x32xbf16>
    %14 = vector.shape_cast %13 : vector<1x1x256x32xbf16> to vector<256x32xbf16>
    %c2_17 = arith.constant 2 : index
    %c0_18 = arith.constant 0 : index
    %c0_19 = arith.constant 0 : index
    %15 = vector.load %arg2[%c2_17, %c0_18, %c0_19] : memref<9x32x64xbf16, #tpu.memory_space<vmem>>, vector<1x32x64xbf16>
    %16 = vector.shape_cast %15 : vector<1x32x64xbf16> to vector<32x64xbf16>
    %cst_20 = arith.constant dense<0.000000e+00> : vector<256x64xf32>
    %17 = tpu.matmul %14, %16, %cst_20 {dimension_numbers = #tpu.dot_dimension_numbers<[1], [0], [0], [1], [0, 0, 1, 1], [], []>} : vector<256x32xbf16>, vector<32x64xbf16>, vector<256x64xf32> -> vector<256x64xf32>
    %18 = arith.addf %12, %17 : vector<256x64xf32>
    %c0_21 = arith.constant 0 : index
    %c0_22 = arith.constant 0 : index
    %c16 = arith.constant 16 : index
    %c0_23 = arith.constant 0 : index
    %19 = vector.load %arg1[%c0_21, %c0_22, %c16, %c0_23] : memref<3x1x288x32xbf16, #tpu.memory_space<vmem>>, vector<1x1x256x32xbf16>
    %20 = vector.shape_cast %19 : vector<1x1x256x32xbf16> to vector<256x32xbf16>
    %c3 = arith.constant 3 : index
    %c0_24 = arith.constant 0 : index
    %c0_25 = arith.constant 0 : index
    %21 = vector.load %arg2[%c3, %c0_24, %c0_25] : memref<9x32x64xbf16, #tpu.memory_space<vmem>>, vector<1x32x64xbf16>
    %22 = vector.shape_cast %21 : vector<1x32x64xbf16> to vector<32x64xbf16>
    %cst_26 = arith.constant dense<0.000000e+00> : vector<256x64xf32>
    %23 = tpu.matmul %20, %22, %cst_26 {dimension_numbers = #tpu.dot_dimension_numbers<[1], [0], [0], [1], [0, 0, 1, 1], [], []>} : vector<256x32xbf16>, vector<32x64xbf16>, vector<256x64xf32> -> vector<256x64xf32>
    %24 = arith.addf %18, %23 : vector<256x64xf32>
    %c1_27 = arith.constant 1 : index
    %c0_28 = arith.constant 0 : index
    %c16_29 = arith.constant 16 : index
    %c0_30 = arith.constant 0 : index
    %25 = vector.load %arg1[%c1_27, %c0_28, %c16_29, %c0_30] : memref<3x1x288x32xbf16, #tpu.memory_space<vmem>>, vector<1x1x256x32xbf16>
    %26 = vector.shape_cast %25 : vector<1x1x256x32xbf16> to vector<256x32xbf16>
    %c4 = arith.constant 4 : index
    %c0_31 = arith.constant 0 : index
    %c0_32 = arith.constant 0 : index
    %27 = vector.load %arg2[%c4, %c0_31, %c0_32] : memref<9x32x64xbf16, #tpu.memory_space<vmem>>, vector<1x32x64xbf16>
    %28 = vector.shape_cast %27 : vector<1x32x64xbf16> to vector<32x64xbf16>
    %cst_33 = arith.constant dense<0.000000e+00> : vector<256x64xf32>
    %29 = tpu.matmul %26, %28, %cst_33 {dimension_numbers = #tpu.dot_dimension_numbers<[1], [0], [0], [1], [0, 0, 1, 1], [], []>} : vector<256x32xbf16>, vector<32x64xbf16>, vector<256x64xf32> -> vector<256x64xf32>
    %30 = arith.addf %24, %29 : vector<256x64xf32>
    %c2_34 = arith.constant 2 : index
    %c0_35 = arith.constant 0 : index
    %c16_36 = arith.constant 16 : index
    %c0_37 = arith.constant 0 : index
    %31 = vector.load %arg1[%c2_34, %c0_35, %c16_36, %c0_37] : memref<3x1x288x32xbf16, #tpu.memory_space<vmem>>, vector<1x1x256x32xbf16>
    %32 = vector.shape_cast %31 : vector<1x1x256x32xbf16> to vector<256x32xbf16>
    %c5 = arith.constant 5 : index
    %c0_38 = arith.constant 0 : index
    %c0_39 = arith.constant 0 : index
    %33 = vector.load %arg2[%c5, %c0_38, %c0_39] : memref<9x32x64xbf16, #tpu.memory_space<vmem>>, vector<1x32x64xbf16>
    %34 = vector.shape_cast %33 : vector<1x32x64xbf16> to vector<32x64xbf16>
    %cst_40 = arith.constant dense<0.000000e+00> : vector<256x64xf32>
    %35 = tpu.matmul %32, %34, %cst_40 {dimension_numbers = #tpu.dot_dimension_numbers<[1], [0], [0], [1], [0, 0, 1, 1], [], []>} : vector<256x32xbf16>, vector<32x64xbf16>, vector<256x64xf32> -> vector<256x64xf32>
    %36 = arith.addf %30, %35 : vector<256x64xf32>
    %c0_41 = arith.constant 0 : index
    %c0_42 = arith.constant 0 : index
    %c32 = arith.constant 32 : index
    %c0_43 = arith.constant 0 : index
    %37 = vector.load %arg1[%c0_41, %c0_42, %c32, %c0_43] : memref<3x1x288x32xbf16, #tpu.memory_space<vmem>>, vector<1x1x256x32xbf16>
    %38 = vector.shape_cast %37 : vector<1x1x256x32xbf16> to vector<256x32xbf16>
    %c6 = arith.constant 6 : index
    %c0_44 = arith.constant 0 : index
    %c0_45 = arith.constant 0 : index
    %39 = vector.load %arg2[%c6, %c0_44, %c0_45] : memref<9x32x64xbf16, #tpu.memory_space<vmem>>, vector<1x32x64xbf16>
    %40 = vector.shape_cast %39 : vector<1x32x64xbf16> to vector<32x64xbf16>
    %cst_46 = arith.constant dense<0.000000e+00> : vector<256x64xf32>
    %41 = tpu.matmul %38, %40, %cst_46 {dimension_numbers = #tpu.dot_dimension_numbers<[1], [0], [0], [1], [0, 0, 1, 1], [], []>} : vector<256x32xbf16>, vector<32x64xbf16>, vector<256x64xf32> -> vector<256x64xf32>
    %42 = arith.addf %36, %41 : vector<256x64xf32>
    %c1_47 = arith.constant 1 : index
    %c0_48 = arith.constant 0 : index
    %c32_49 = arith.constant 32 : index
    %c0_50 = arith.constant 0 : index
    %43 = vector.load %arg1[%c1_47, %c0_48, %c32_49, %c0_50] : memref<3x1x288x32xbf16, #tpu.memory_space<vmem>>, vector<1x1x256x32xbf16>
    %44 = vector.shape_cast %43 : vector<1x1x256x32xbf16> to vector<256x32xbf16>
    %c7 = arith.constant 7 : index
    %c0_51 = arith.constant 0 : index
    %c0_52 = arith.constant 0 : index
    %45 = vector.load %arg2[%c7, %c0_51, %c0_52] : memref<9x32x64xbf16, #tpu.memory_space<vmem>>, vector<1x32x64xbf16>
    %46 = vector.shape_cast %45 : vector<1x32x64xbf16> to vector<32x64xbf16>
    %cst_53 = arith.constant dense<0.000000e+00> : vector<256x64xf32>
    %47 = tpu.matmul %44, %46, %cst_53 {dimension_numbers = #tpu.dot_dimension_numbers<[1], [0], [0], [1], [0, 0, 1, 1], [], []>} : vector<256x32xbf16>, vector<32x64xbf16>, vector<256x64xf32> -> vector<256x64xf32>
    %48 = arith.addf %42, %47 : vector<256x64xf32>
    %c2_54 = arith.constant 2 : index
    %c0_55 = arith.constant 0 : index
    %c32_56 = arith.constant 32 : index
    %c0_57 = arith.constant 0 : index
    %49 = vector.load %arg1[%c2_54, %c0_55, %c32_56, %c0_57] : memref<3x1x288x32xbf16, #tpu.memory_space<vmem>>, vector<1x1x256x32xbf16>
    %50 = vector.shape_cast %49 : vector<1x1x256x32xbf16> to vector<256x32xbf16>
    %c8 = arith.constant 8 : index
    %c0_58 = arith.constant 0 : index
    %c0_59 = arith.constant 0 : index
    %51 = vector.load %arg2[%c8, %c0_58, %c0_59] : memref<9x32x64xbf16, #tpu.memory_space<vmem>>, vector<1x32x64xbf16>
    %52 = vector.shape_cast %51 : vector<1x32x64xbf16> to vector<32x64xbf16>
    %cst_60 = arith.constant dense<0.000000e+00> : vector<256x64xf32>
    %53 = tpu.matmul %50, %52, %cst_60 {dimension_numbers = #tpu.dot_dimension_numbers<[1], [0], [0], [1], [0, 0, 1, 1], [], []>} : vector<256x32xbf16>, vector<32x64xbf16>, vector<256x64xf32> -> vector<256x64xf32>
    %54 = arith.addf %48, %53 : vector<256x64xf32>
    %c0_61 = arith.constant 0 : index
    %c0_62 = arith.constant 0 : index
    %55 = vector.load %arg3[%c0_61, %c0_62] : memref<1x64xf32, #tpu.memory_space<vmem>>, vector<1x64xf32>
    %56 = vector.broadcast %55 : vector<1x64xf32> to vector<256x64xf32>
    %57 = arith.addf %54, %56 : vector<256x64xf32>
    %58 = arith.truncf %57 : vector<256x64xf32> to vector<256x64xbf16>
    %c0_63 = arith.constant 0 : index
    %c0_64 = arith.constant 0 : index
    %c0_65 = arith.constant 0 : index
    %59 = vector.load %arg4[%c0_63, %c0_64, %c0_65] : memref<1x256x64xbf16, #tpu.memory_space<vmem>>, vector<1x256x64xbf16>
    %60 = vector.shape_cast %59 : vector<1x256x64xbf16> to vector<256x64xbf16>
    %61 = vector.shape_cast %58 : vector<256x64xbf16> to vector<1x256x64xbf16>
    tpu.vector_store %arg4[%c0_63, %c0_64, %c0_65], %61 {strides = array<i32>} : memref<1x256x64xbf16, #tpu.memory_space<vmem>>, vector<1x256x64xbf16>,
    return
  }
  func.func @transform_0(%arg0: i32) -> (i32, i32, i32, i32) {
    %c0_i32 = arith.constant 0 : i32
    %c0_i32_0 = arith.constant 0 : i32
    %c0_i32_1 = arith.constant 0 : i32
    %c0_i32_2 = arith.constant 0 : i32
    return %c0_i32, %arg0, %c0_i32_0, %c0_i32_1 : i32, i32, i32, i32
  }
  func.func @transform_1(%arg0: i32) -> (i32, i32, i32) {
    %c0_i32 = arith.constant 0 : i32
    %c0_i32_0 = arith.constant 0 : i32
    %c0_i32_1 = arith.constant 0 : i32
    %c0_i32_2 = arith.constant 0 : i32
    return %c0_i32, %c0_i32_0, %c0_i32_1 : i32, i32, i32
  }
  func.func @transform_2(%arg0: i32) -> (i32, i32) {
    %c0_i32 = arith.constant 0 : i32
    %c0_i32_0 = arith.constant 0 : i32
    %c0_i32_1 = arith.constant 0 : i32
    return %c0_i32, %c0_i32_0 : i32, i32
  }
  func.func @transform_3(%arg0: i32) -> (i32, i32, i32) {
    %c0_i32 = arith.constant 0 : i32
    %c0_i32_0 = arith.constant 0 : i32
    %c0_i32_1 = arith.constant 0 : i32
    return %arg0, %c0_i32, %c0_i32_0 : i32, i32, i32
  }
}

</mosaic_0001>

<llo_original>
// kernel: tpu_custom_call.1
$region0: #{tpu_custom_call.1}
  #allocation0 [shape = 'u32[]', space=smem, size = 0x4, offset = 0x4, fixed_abs, tag = 'smem constant byte address 0x4 - core index']
  #allocation1 [shape = 'u32[72,128]{1,0:T(1,128)}', space=vmem, size = 0x9000, scoped, tag = 'internal scratch']
  %s0 = inlined_call_operand.vmem [shape: bf16[3,2,288,32], index: 0, kind: input, shape index: {}]
  %s1 = inlined_call_operand.vmem [shape: bf16[9,32,64], index: 1, kind: input, shape index: {}]
  %s2 = inlined_call_operand.vmem [shape: f32[1,64], index: 2, kind: input, shape index: {}]
  %s3 = inlined_call_operand.vmem [shape: bf16[2,256,64], index: 3, kind: output, shape index: {}]
  %s4 = sld [smem:[#allocation0]]
  $region86: #{tpu_custom_call.1} parent=0
    _
  %s6 = ssub.s32 1, %s4
  %s7 = scalar_select 0, %s6, %s4
  $region1: #{tpu_custom_call.1} parent=0
    #allocation2 [shape = 'u8[442368]{0}', space=vmem, size = 0x6c000, scoped, tag = 'input window, operand 0']
    loop: start=0, step=1, limit=4
    $region2: #{tpu_custom_call.1} parent=1 // loop_pre_header
      _
    $region3: #{tpu_custom_call.1} parent=1 // loop_header
      %s9 = sphi 0, %s13
      %p10 = scmp.ge.s32.totalorder %s9, 4
      %s19 = sphi 0, %s21
      %s22 = sphi 0, %s19
      %s23 = sphi 0, %s22
      %s39 = sphi 0, %s23
      %s43 = sphi 0, %s43
      %s45 = sphi 0, %s43
      %s46 = sphi 0, %s45
      %s60 = sphi 0, %s46
      %s64 = sphi 0, %s64
      %s66 = sphi 0, %s64
      %s67 = sphi 0, %s66
      %s81 = sphi 0, %s67
      %s87 = sphi 0, %s89
      %s90 = sphi 0, %s87
      %s91 = sphi 0, %s90
      %s107 = sphi 0, %s91
    $region4: #{tpu_custom_call.1} parent=1 // loop_header_branch
      %12 = sbr.rel (%p10) target = $region8
    $region5: #{tpu_custom_call.1} parent=1 // loop_body
      %s14 = ssub.s32 %s9, 1
      %s15 = ssub.s32 %s9, 2
      %s16 = sadd.s32 %s9, 1
      %s17 = ssub.s32 %s9, %s16
      %p18 = scmp.eq.s32.totalorder %s17, 0
      %s20 = sadd.s32 %s19, 1
      %s21 = scalar_select %p18, %s19, %s20
      %p24 = pneg %p18
      %p25 = scmp.eq.s32.totalorder %s9, 1
      %p26 = por %p24, %p25
      %p27 = scmp.ne.s32.totalorder %s19, %s22
      %p28 = scmp.eq.s32.totalorder %s9, 0
      %p29 = por %p27, %p28
      %p30 = scmp.ne.s32.totalorder %s19, %s22
      %p31 = scmp.eq.s32.totalorder %s14, 1
      %p32 = por %p30, %p31
      %p33 = scmp.ne.s32.totalorder %s22, %s23
      %p34 = scmp.eq.s32.totalorder %s14, 0
      %p35 = por %p33, %p34
      %p36 = scmp.ne.s32.totalorder %s22, %s23
      %p37 = scmp.eq.s32.totalorder %s15, 1
      %p38 = por %p36, %p37
      %p40 = scmp.ne.s32.totalorder %s23, %s39
      %p41 = scmp.eq.s32.totalorder %s15, 0
      %p42 = por %p40, %p41
      %s44 = sadd.s32 %s43, 1
      %p47 = scmp.eq.s32.totalorder %s9, 1
      %p48 = scmp.ne.s32.totalorder %s43, %s45
      %p49 = scmp.eq.s32.totalorder %s9, 0
      %p50 = por %p48, %p49
      %p51 = scmp.ne.s32.totalorder %s43, %s45
      %p52 = scmp.eq.s32.totalorder %s14, 1
      %p53 = por %p51, %p52
      %p54 = scmp.ne.s32.totalorder %s45, %s46
      %p55 = scmp.eq.s32.totalorder %s14, 0
      %p56 = por %p54, %p55
      %p57 = scmp.ne.s32.totalorder %s45, %s46
      %p58 = scmp.eq.s32.totalorder %s15, 1
      %p59 = por %p57, %p58
      %p61 = scmp.ne.s32.totalorder %s46, %s60
      %p62 = scmp.eq.s32.totalorder %s15, 0
      %p63 = por %p61, %p62
      %s65 = sadd.s32 %s64, 1
      %p68 = scmp.eq.s32.totalorder %s9, 1
      %p69 = scmp.ne.s32.totalorder %s64, %s66
      %p70 = scmp.eq.s32.totalorder %s9, 0
      %p71 = por %p69, %p70
      %p72 = scmp.ne.s32.totalorder %s64, %s66
      %p73 = scmp.eq.s32.totalorder %s14, 1
      %p74 = por %p72, %p73
      %p75 = scmp.ne.s32.totalorder %s66, %s67
      %p76 = scmp.eq.s32.totalorder %s14, 0
      %p77 = por %p75, %p76
      %p78 = scmp.ne.s32.totalorder %s66, %s67
      %p79 = scmp.eq.s32.totalorder %s15, 1
      %p80 = por %p78, %p79
      %p82 = scmp.ne.s32.totalorder %s67, %s81
      %p83 = scmp.eq.s32.totalorder %s15, 0
      %p84 = por %p82, %p83
      %s85 = ssub.s32 %s9, %s16
      %p86 = scmp.eq.s32.totalorder %s85, 0
      %s88 = sadd.s32 %s87, 1
      %s89 = scalar_select %p86, %s87, %s88
      %p92 = pneg %p86
      %p93 = scmp.eq.s32.totalorder %s9, 1
      %p94 = por %p92, %p93
      %p95 = scmp.ne.s32.totalorder %s87, %s90
      %p96 = scmp.eq.s32.totalorder %s9, 0
      %p97 = por %p95, %p96
      %p98 = scmp.ne.s32.totalorder %s87, %s90
      %p99 = scmp.eq.s32.totalorder %s14, 1
      %p100 = por %p98, %p99
      %p101 = scmp.ne.s32.totalorder %s90, %s91
      %p102 = scmp.eq.s32.totalorder %s14, 0
      %p103 = por %p101, %p102
      %p104 = scmp.ne.s32.totalorder %s90, %s91
      %p105 = scmp.eq.s32.totalorder %s15, 1
      %p106 = por %p104, %p105
      %p108 = scmp.ne.s32.totalorder %s91, %s107
      %p109 = scmp.eq.s32.totalorder %s15, 0
      %p110 = por %p108, %p109
      %p111 = scmp.le.s32.totalorder 1, %s9
      %p112 = scmp.lt.s32.totalorder %s9, 3
      %p113 = pnand %p111, %p112
      %p114 = pneg %p113
      // Predicated region
      $region9: #{tpu_custom_call.1} parent=5 // pred_check
        _
      $region10: #{tpu_custom_call.1} parent=5 // pred_check_branch
        %116 = sbr.rel (%p113) target = $region12
      $region11: #{tpu_custom_call.1} parent=5 // pred_region
        %s117 = ssub.s32 %s9, 1
        // Predicated region
        $region13: #{tpu_custom_call.1} parent=11 // pred_check
          %p118 = pneg %p56
        $region14: #{tpu_custom_call.1} parent=11 // pred_check_branch
          %120 = sbr.rel (%p118) target = $region16
        $region15: #{tpu_custom_call.1} parent=11 // pred_region
          _
        $region16: #{tpu_custom_call.1} parent=11 // pred_fallthru
          _
        // Predicated region
        $region17: #{tpu_custom_call.1} parent=11 // pred_check
          %p121 = pneg %p77
        $region18: #{tpu_custom_call.1} parent=11 // pred_check_branch
          %123 = sbr.rel (%p121) target = $region20
        $region19: #{tpu_custom_call.1} parent=11 // pred_region
          _
        $region20: #{tpu_custom_call.1} parent=11 // pred_fallthru
          _
      $region12: #{tpu_custom_call.1} parent=5 // pred_fallthru
        _
      %p124 = scmp.lt.s32.totalorder %s9, 2
      // Predicated region
      $region21: #{tpu_custom_call.1} parent=5 // pred_check
        %p125 = pneg %p124
      $region22: #{tpu_custom_call.1} parent=5 // pred_check_branch
        %127 = sbr.rel (%p125) target = $region24
      $region23: #{tpu_custom_call.1} parent=5 // pred_region
        // Predicated region
        $region25: #{tpu_custom_call.1} parent=23 // pred_check
          %p128 = pneg %p29
        $region26: #{tpu_custom_call.1} parent=23 // pred_check_branch
          %130 = sbr.rel (%p128) target = $region28
        $region27: #{tpu_custom_call.1} parent=23 // pred_region
          %s131 = sand.u32 %s19, 1
          %s132 = sand.u32 %s19, 1
          %s133 = smul.addr %s132, 432
          %s134 = scalar_lea.vmem [#allocation2], %s133
          %s135 = smul.addr %s9, 36
          %s136 = smul.addr %s135, 4
          %s137 = scalar_lea.vmem %s0, %s136
          // Predicated region
          $region29: #{tpu_custom_call.1} parent=27 // pred_check
            _
          $region30: #{tpu_custom_call.1} parent=27 // pred_check_branch
            %139 = sbr.rel (0) target = $region32
          $region31: #{tpu_custom_call.1} parent=27 // pred_region
            // Predicated region
            $region33: #{tpu_custom_call.1} parent=31 // pred_check
              _
            $region34: #{tpu_custom_call.1} parent=31 // pred_check_branch
              %141 = sbr.rel target = $region36
            $region35: #{tpu_custom_call.1} parent=31 // pred_region
              // Predicated region
              $region48: #{tpu_custom_call.1} parent=35 // pred_check
                _
              $region49: #{tpu_custom_call.1} parent=35 // pred_check_branch
                %371 = sbr.rel (0) target = $region51
              $region50: #{tpu_custom_call.1} parent=35 // pred_region
                loop: start=0, step=1, limit=1
                $region52: #{tpu_custom_call.1} parent=50 // loop_pre_header
                  _
                $region53: #{tpu_custom_call.1} parent=50 // loop_header
                  %s373 = sphi 0, %s377
                  %p374 = scmp.ge.s32.totalorder %s373, 1
                  %s378 = sphi %s137, %s137
                  %s379 = sphi %s134, %s134
                $region54: #{tpu_custom_call.1} parent=50 // loop_header_branch
                  %376 = sbr.rel (%p374) target = $region58
                $region55: #{tpu_custom_call.1} parent=50 // loop_body
                  _
                $region56: #{tpu_custom_call.1} parent=50 // loop_footer
                  %s377 = sadd.s32 1, %s373
                $region57: #{tpu_custom_call.1} parent=50 // loop_footer_branch
                  %372 = sbr.rel target = $region53
                $region58: #{tpu_custom_call.1} parent=50 // loop_exit
                  _
                %s381 = ssub.s32 16, 1
                loop: start=0, step=1, limit=1
                $region59: #{tpu_custom_call.1} parent=50 // loop_pre_header
                  _
                $region60: #{tpu_custom_call.1} parent=50 // loop_header
                  %s383 = sphi 0, %s387
                  %p384 = scmp.ge.s32.totalorder %s383, 1
                  %s388 = sphi %s137, %s137
                  %s389 = sphi %s134, %s134
                $region61: #{tpu_custom_call.1} parent=50 // loop_header_branch
                  %386 = sbr.rel (%p384) target = $region65
                $region62: #{tpu_custom_call.1} parent=50 // loop_body
                  %v390 = vld [vmem:[%s388] sm:%s381]
                  %391 = vst [vmem:[%s389] sm:%s381] %v390
                  %v392 = vld [vmem:[%s388 + $0x4] sm:%s381]
                  %393 = vst [vmem:[%s389 + $0x4] sm:%s381] %v392
                  %v394 = vld [vmem:[%s388 + $0x8] sm:%s381]
                  %395 = vst [vmem:[%s389 + $0x8] sm:%s381] %v394
                  %v396 = vld [vmem:[%s388 + $0xc] sm:%s381]
                  %397 = vst [vmem:[%s389 + $0xc] sm:%s381] %v396
                  %v398 = vld [vmem:[%s388 + $0x10] sm:%s381]
                  %399 = vst [vmem:[%s389 + $0x10] sm:%s381] %v398
                  %v400 = vld [vmem:[%s388 + $0x14] sm:%s381]
                  %401 = vst [vmem:[%s389 + $0x14] sm:%s381] %v400
                  %v402 = vld [vmem:[%s388 + $0x18] sm:%s381]
                  %403 = vst [vmem:[%s389 + $0x18] sm:%s381] %v402
                  %v404 = vld [vmem:[%s388 + $0x1c] sm:%s381]
                  %405 = vst [vmem:[%s389 + $0x1c] sm:%s381] %v404
                  %v406 = vld [vmem:[%s388 + $0x20] sm:%s381]
                  %407 = vst [vmem:[%s389 + $0x20] sm:%s381] %v406
                  %v408 = vld [vmem:[%s388 + $0x24] sm:%s381]
                  %409 = vst [vmem:[%s389 + $0x24] sm:%s381] %v408
                  %v410 = vld [vmem:[%s388 + $0x28] sm:%s381]
                  %411 = vst [vmem:[%s389 + $0x28] sm:%s381] %v410
                  %v412 = vld [vmem:[%s388 + $0x2c] sm:%s381]
                  %413 = vst [vmem:[%s389 + $0x2c] sm:%s381] %v412
                  %v414 = vld [vmem:[%s388 + $0x30] sm:%s381]
                  %415 = vst [vmem:[%s389 + $0x30] sm:%s381] %v414
                  %v416 = vld [vmem:[%s388 + $0x34] sm:%s381]
                  %417 = vst [vmem:[%s389 + $0x34] sm:%s381] %v416
                  %v418 = vld [vmem:[%s388 + $0x38] sm:%s381]
                  %419 = vst [vmem:[%s389 + $0x38] sm:%s381] %v418
                  %v420 = vld [vmem:[%s388 + $0x3c] sm:%s381]
                  %421 = vst [vmem:[%s389 + $0x3c] sm:%s381] %v420
                  %v422 = vld [vmem:[%s388 + $0x40] sm:%s381]
                  %423 = vst [vmem:[%s389 + $0x40] sm:%s381] %v422
                  %v424 = vld [vmem:[%s388 + $0x44] sm:%s381]
                  %425 = vst [vmem:[%s389 + $0x44] sm:%s381] %v424
                  %v426 = vld [vmem:[%s388 + $0x48] sm:%s381]
                  %427 = vst [vmem:[%s389 + $0x48] sm:%s381] %v426
                  %v428 = vld [vmem:[%s388 + $0x4c] sm:%s381]
                  %429 = vst [vmem:[%s389 + $0x4c] sm:%s381] %v428
                  %v430 = vld [vmem:[%s388 + $0x50] sm:%s381]
                  %431 = vst [vmem:[%s389 + $0x50] sm:%s381] %v430
                  %v432 = vld [vmem:[%s388 + $0x54] sm:%s381]
                  %433 = vst [vmem:[%s389 + $0x54] sm:%s381] %v432
                  %v434 = vld [vmem:[%s388 + $0x58] sm:%s381]
                  %435 = vst [vmem:[%s389 + $0x58] sm:%s381] %v434
                  %v436 = vld [vmem:[%s388 + $0x5c] sm:%s381]
                  %437 = vst [vmem:[%s389 + $0x5c] sm:%s381] %v436
                  %v438 = vld [vmem:[%s388 + $0x60] sm:%s381]
                  %439 = vst [vmem:[%s389 + $0x60] sm:%s381] %v438
                  %v440 = vld [vmem:[%s388 + $0x64] sm:%s381]
                  %441 = vst [vmem:[%s389 + $0x64] sm:%s381] %v440
                  %v442 = vld [vmem:[%s388 + $0x68] sm:%s381]
                  %443 = vst [vmem:[%s389 + $0x68] sm:%s381] %v442
                  %v444 = vld [vmem:[%s388 + $0x6c] sm:%s381]
                  %445 = vst [vmem:[%s389 + $0x6c] sm:%s381] %v444
                  %v446 = vld [vmem:[%s388 + $0x70] sm:%s381]
                  %447 = vst [vmem:[%s389 + $0x70] sm:%s381] %v446
                  %v448 = vld [vmem:[%s388 + $0x74] sm:%s381]
                  %449 = vst [vmem:[%s389 + $0x74] sm:%s381] %v448
                  %v450 = vld [vmem:[%s388 + $0x78] sm:%s381]
                  %451 = vst [vmem:[%s389 + $0x78] sm:%s381] %v450
                  %v452 = vld [vmem:[%s388 + $0x7c] sm:%s381]
                  %453 = vst [vmem:[%s389 + $0x7c] sm:%s381] %v452
                  %v454 = vld [vmem:[%s388 + $0x80] sm:%s381]
                  %455 = vst [vmem:[%s389 + $0x80] sm:%s381] %v454
                  %v456 = vld [vmem:[%s388 + $0x84] sm:%s381]
                  %457 = vst [vmem:[%s389 + $0x84] sm:%s381] %v456
                  %v458 = vld [vmem:[%s388 + $0x88] sm:%s381]
                  %459 = vst [vmem:[%s389 + $0x88] sm:%s381] %v458
                  %v460 = vld [vmem:[%s388 + $0x8c] sm:%s381]
                  %461 = vst [vmem:[%s389 + $0x8c] sm:%s381] %v460
                  %v462 = vld [vmem:[%s388 + $0x120] sm:%s381]
                  %463 = vst [vmem:[%s389 + $0x90] sm:%s381] %v462
                  %v464 = vld [vmem:[%s388 + $0x124] sm:%s381]
                  %465 = vst [vmem:[%s389 + $0x94] sm:%s381] %v464
                  %v466 = vld [vmem:[%s388 + $0x128] sm:%s381]
                  %467 = vst [vmem:[%s389 + $0x98] sm:%s381] %v466
                  %v468 = vld [vmem:[%s388 + $0x12c] sm:%s381]
                  %469 = vst [vmem:[%s389 + $0x9c] sm:%s381] %v468
                  %v470 = vld [vmem:[%s388 + $0x130] sm:%s381]
                  %471 = vst [vmem:[%s389 + $0xa0] sm:%s381] %v470
                  %v472 = vld [vmem:[%s388 + $0x134] sm:%s381]
                  %473 = vst [vmem:[%s389 + $0xa4] sm:%s381] %v472
                  %v474 = vld [vmem:[%s388 + $0x138] sm:%s381]
                  %475 = vst [vmem:[%s389 + $0xa8] sm:%s381] %v474
                  %v476 = vld [vmem:[%s388 + $0x13c] sm:%s381]
                  %477 = vst [vmem:[%s389 + $0xac] sm:%s381] %v476
                  %v478 = vld [vmem:[%s388 + $0x140] sm:%s381]
                  %479 = vst [vmem:[%s389 + $0xb0] sm:%s381] %v478
                  %v480 = vld [vmem:[%s388 + $0x144] sm:%s381]
                  %481 = vst [vmem:[%s389 + $0xb4] sm:%s381] %v480
                  %v482 = vld [vmem:[%s388 + $0x148] sm:%s381]
                  %483 = vst [vmem:[%s389 + $0xb8] sm:%s381] %v482
                  %v484 = vld [vmem:[%s388 + $0x14c] sm:%s381]
                  %485 = vst [vmem:[%s389 + $0xbc] sm:%s381] %v484
                  %v486 = vld [vmem:[%s388 + $0x150] sm:%s381]
                  %487 = vst [vmem:[%s389 + $0xc0] sm:%s381] %v486
                  %v488 = vld [vmem:[%s388 + $0x154] sm:%s381]
                  %489 = vst [vmem:[%s389 + $0xc4] sm:%s381] %v488
                  %v490 = vld [vmem:[%s388 + $0x158] sm:%s381]
                  %491 = vst [vmem:[%s389 + $0xc8] sm:%s381] %v490
                  %v492 = vld [vmem:[%s388 + $0x15c] sm:%s381]
                  %493 = vst [vmem:[%s389 + $0xcc] sm:%s381] %v492
                  %v494 = vld [vmem:[%s388 + $0x160] sm:%s381]
                  %495 = vst [vmem:[%s389 + $0xd0] sm:%s381] %v494
                  %v496 = vld [vmem:[%s388 + $0x164] sm:%s381]
                  %497 = vst [vmem:[%s389 + $0xd4] sm:%s381] %v496
                  %v498 = vld [vmem:[%s388 + $0x168] sm:%s381]
                  %499 = vst [vmem:[%s389 + $0xd8] sm:%s381] %v498
                  %v500 = vld [vmem:[%s388 + $0x16c] sm:%s381]
                  %501 = vst [vmem:[%s389 + $0xdc] sm:%s381] %v500
                  %v502 = vld [vmem:[%s388 + $0x170] sm:%s381]
                  %503 = vst [vmem:[%s389 + $0xe0] sm:%s381] %v502
                  %v504 = vld [vmem:[%s388 + $0x174] sm:%s381]
                  %505 = vst [vmem:[%s389 + $0xe4] sm:%s381] %v504
                  %v506 = vld [vmem:[%s388 + $0x178] sm:%s381]
                  %507 = vst [vmem:[%s389 + $0xe8] sm:%s381] %v506
                  %v508 = vld [vmem:[%s388 + $0x17c] sm:%s381]
                  %509 = vst [vmem:[%s389 + $0xec] sm:%s381] %v508
                  %v510 = vld [vmem:[%s388 + $0x180] sm:%s381]
                  %511 = vst [vmem:[%s389 + $0xf0] sm:%s381] %v510
                  %v512 = vld [vmem:[%s388 + $0x184] sm:%s381]
                  %513 = vst [vmem:[%s389 + $0xf4] sm:%s381] %v512
                  %v514 = vld [vmem:[%s388 + $0x188] sm:%s381]
                  %515 = vst [vmem:[%s389 + $0xf8] sm:%s381] %v514
                  %v516 = vld [vmem:[%s388 + $0x18c] sm:%s381]
                  %517 = vst [vmem:[%s389 + $0xfc] sm:%s381] %v516
                  %v518 = vld [vmem:[%s388 + $0x190] sm:%s381]
                  %519 = vst [vmem:[%s389 + $0x100] sm:%s381] %v518
                  %v520 = vld [vmem:[%s388 + $0x194] sm:%s381]
                  %521 = vst [vmem:[%s389 + $0x104] sm:%s381] %v520
                  %v522 = vld [vmem:[%s388 + $0x198] sm:%s381]
                  %523 = vst [vmem:[%s389 + $0x108] sm:%s381] %v522
                  %v524 = vld [vmem:[%s388 + $0x19c] sm:%s381]
                  %525 = vst [vmem:[%s389 + $0x10c] sm:%s381] %v524
                  %v526 = vld [vmem:[%s388 + $0x1a0] sm:%s381]
                  %527 = vst [vmem:[%s389 + $0x110] sm:%s381] %v526
                  %v528 = vld [vmem:[%s388 + $0x1a4] sm:%s381]
                  %529 = vst [vmem:[%s389 + $0x114] sm:%s381] %v528
                  %v530 = vld [vmem:[%s388 + $0x1a8] sm:%s381]
                  %531 = vst [vmem:[%s389 + $0x118] sm:%s381] %v530
                  %v532 = vld [vmem:[%s388 + $0x1ac] sm:%s381]
                  %533 = vst [vmem:[%s389 + $0x11c] sm:%s381] %v532
                  %v534 = vld [vmem:[%s388 + $0x240] sm:%s381]
                  %535 = vst [vmem:[%s389 + $0x120] sm:%s381] %v534
                  %v536 = vld [vmem:[%s388 + $0x244] sm:%s381]
                  %537 = vst [vmem:[%s389 + $0x124] sm:%s381] %v536
                  %v538 = vld [vmem:[%s388 + $0x248] sm:%s381]
                  %539 = vst [vmem:[%s389 + $0x128] sm:%s381] %v538
                  %v540 = vld [vmem:[%s388 + $0x24c] sm:%s381]
                  %541 = vst [vmem:[%s389 + $0x12c] sm:%s381] %v540
                  %v542 = vld [vmem:[%s388 + $0x250] sm:%s381]
                  %543 = vst [vmem:[%s389 + $0x130] sm:%s381] %v542
                  %v544 = vld [vmem:[%s388 + $0x254] sm:%s381]
                  %545 = vst [vmem:[%s389 + $0x134] sm:%s381] %v544
                  %v546 = vld [vmem:[%s388 + $0x258] sm:%s381]
                  %547 = vst [vmem:[%s389 + $0x138] sm:%s381] %v546
                  %v548 = vld [vmem:[%s388 + $0x25c] sm:%s381]
                  %549 = vst [vmem:[%s389 + $0x13c] sm:%s381] %v548
                  %v550 = vld [vmem:[%s388 + $0x260] sm:%s381]
                  %551 = vst [vmem:[%s389 + $0x140] sm:%s381] %v550
                  %v552 = vld [vmem:[%s388 + $0x264] sm:%s381]
                  %553 = vst [vmem:[%s389 + $0x144] sm:%s381] %v552
                  %v554 = vld [vmem:[%s388 + $0x268] sm:%s381]
                  %555 = vst [vmem:[%s389 + $0x148] sm:%s381] %v554
                  %v556 = vld [vmem:[%s388 + $0x26c] sm:%s381]
                  %557 = vst [vmem:[%s389 + $0x14c] sm:%s381] %v556
                  %v558 = vld [vmem:[%s388 + $0x270] sm:%s381]
                  %559 = vst [vmem:[%s389 + $0x150] sm:%s381] %v558
                  %v560 = vld [vmem:[%s388 + $0x274] sm:%s381]
                  %561 = vst [vmem:[%s389 + $0x154] sm:%s381] %v560
                  %v562 = vld [vmem:[%s388 + $0x278] sm:%s381]
                  %563 = vst [vmem:[%s389 + $0x158] sm:%s381] %v562
                  %v564 = vld [vmem:[%s388 + $0x27c] sm:%s381]
                  %565 = vst [vmem:[%s389 + $0x15c] sm:%s381] %v564
                  %v566 = vld [vmem:[%s388 + $0x280] sm:%s381]
                  %567 = vst [vmem:[%s389 + $0x160] sm:%s381] %v566
                  %v568 = vld [vmem:[%s388 + $0x284] sm:%s381]
                  %569 = vst [vmem:[%s389 + $0x164] sm:%s381] %v568
                  %v570 = vld [vmem:[%s388 + $0x288] sm:%s381]
                  %571 = vst [vmem:[%s389 + $0x168] sm:%s381] %v570
                  %v572 = vld [vmem:[%s388 + $0x28c] sm:%s381]
                  %573 = vst [vmem:[%s389 + $0x16c] sm:%s381] %v572
                  %v574 = vld [vmem:[%s388 + $0x290] sm:%s381]
                  %575 = vst [vmem:[%s389 + $0x170] sm:%s381] %v574
                  %v576 = vld [vmem:[%s388 + $0x294] sm:%s381]
                  %577 = vst [vmem:[%s389 + $0x174] sm:%s381] %v576
                  %v578 = vld [vmem:[%s388 + $0x298] sm:%s381]
                  %579 = vst [vmem:[%s389 + $0x178] sm:%s381] %v578
                  %v580 = vld [vmem:[%s388 + $0x29c] sm:%s381]
                  %581 = vst [vmem:[%s389 + $0x17c] sm:%s381] %v580
                  %v582 = vld [vmem:[%s388 + $0x2a0] sm:%s381]
                  %583 = vst [vmem:[%s389 + $0x180] sm:%s381] %v582
                  %v584 = vld [vmem:[%s388 + $0x2a4] sm:%s381]
                  %585 = vst [vmem:[%s389 + $0x184] sm:%s381] %v584
                  %v586 = vld [vmem:[%s388 + $0x2a8] sm:%s381]
                  %587 = vst [vmem:[%s389 + $0x188] sm:%s381] %v586
                  %v588 = vld [vmem:[%s388 + $0x2ac] sm:%s381]
                  %589 = vst [vmem:[%s389 + $0x18c] sm:%s381] %v588
                  %v590 = vld [vmem:[%s388 + $0x2b0] sm:%s381]
                  %591 = vst [vmem:[%s389 + $0x190] sm:%s381] %v590
                  %v592 = vld [vmem:[%s388 + $0x2b4] sm:%s381]
                  %593 = vst [vmem:[%s389 + $0x194] sm:%s381] %v592
                  %v594 = vld [vmem:[%s388 + $0x2b8] sm:%s381]
                  %595 = vst [vmem:[%s389 + $0x198] sm:%s381] %v594
                  %v596 = vld [vmem:[%s388 + $0x2bc] sm:%s381]
                  %597 = vst [vmem:[%s389 + $0x19c] sm:%s381] %v596
                  %v598 = vld [vmem:[%s388 + $0x2c0] sm:%s381]
                  %599 = vst [vmem:[%s389 + $0x1a0] sm:%s381] %v598
                  %v600 = vld [vmem:[%s388 + $0x2c4] sm:%s381]
                  %601 = vst [vmem:[%s389 + $0x1a4] sm:%s381] %v600
                  %v602 = vld [vmem:[%s388 + $0x2c8] sm:%s381]
                  %603 = vst [vmem:[%s389 + $0x1a8] sm:%s381] %v602
                  %v604 = vld [vmem:[%s388 + $0x2cc] sm:%s381]
                  %605 = vst [vmem:[%s389 + $0x1ac] sm:%s381] %v604
                $region63: #{tpu_custom_call.1} parent=50 // loop_footer
                  %s387 = sadd.s32 1, %s383
                $region64: #{tpu_custom_call.1} parent=50 // loop_footer_branch
                  %382 = sbr.rel target = $region60
                $region65: #{tpu_custom_call.1} parent=50 // loop_exit
                  _
              $region51: #{tpu_custom_call.1} parent=35 // pred_fallthru
                _
            $region36: #{tpu_custom_call.1} parent=31 // pred_fallthru
              _
            // Predicated region
            $region37: #{tpu_custom_call.1} parent=31 // pred_check
              _
            $region38: #{tpu_custom_call.1} parent=31 // pred_check_branch
              %143 = sbr.rel (0) target = $region40
            $region39: #{tpu_custom_call.1} parent=31 // pred_region
              %s145 = ssub.s32 16, 1
              loop: start=0, step=1, limit=1
              $region41: #{tpu_custom_call.1} parent=39 // loop_pre_header
                _
              $region42: #{tpu_custom_call.1} parent=39 // loop_header
                %s147 = sphi 0, %s151
                %p148 = scmp.ge.s32.totalorder %s147, 1
                %s152 = sphi %s137, %s137
                %s153 = sphi %s134, %s134
              $region43: #{tpu_custom_call.1} parent=39 // loop_header_branch
                %150 = sbr.rel (%p148) target = $region47
              $region44: #{tpu_custom_call.1} parent=39 // loop_body
                %v154 = vld [vmem:[%s152] sm:%s145]
                %155 = vst [vmem:[%s153] sm:%s145] %v154
                %v156 = vld [vmem:[%s152 + $0x4] sm:%s145]
                %157 = vst [vmem:[%s153 + $0x4] sm:%s145] %v156
                %v158 = vld [vmem:[%s152 + $0x8] sm:%s145]
                %159 = vst [vmem:[%s153 + $0x8] sm:%s145] %v158
                %v160 = vld [vmem:[%s152 + $0xc] sm:%s145]
                %161 = vst [vmem:[%s153 + $0xc] sm:%s145] %v160
                %v162 = vld [vmem:[%s152 + $0x10] sm:%s145]
                %163 = vst [vmem:[%s153 + $0x10] sm:%s145] %v162
                %v164 = vld [vmem:[%s152 + $0x14] sm:%s145]
                %165 = vst [vmem:[%s153 + $0x14] sm:%s145] %v164
                %v166 = vld [vmem:[%s152 + $0x18] sm:%s145]
                %167 = vst [vmem:[%s153 + $0x18] sm:%s145] %v166
                %v168 = vld [vmem:[%s152 + $0x1c] sm:%s145]
                %169 = vst [vmem:[%s153 + $0x1c] sm:%s145] %v168
                %v170 = vld [vmem:[%s152 + $0x20] sm:%s145]
                %171 = vst [vmem:[%s153 + $0x20] sm:%s145] %v170
                %v172 = vld [vmem:[%s152 + $0x24] sm:%s145]
                %173 = vst [vmem:[%s153 + $0x24] sm:%s145] %v172
                %v174 = vld [vmem:[%s152 + $0x28] sm:%s145]
                %175 = vst [vmem:[%s153 + $0x28] sm:%s145] %v174
                %v176 = vld [vmem:[%s152 + $0x2c] sm:%s145]
                %177 = vst [vmem:[%s153 + $0x2c] sm:%s145] %v176
                %v178 = vld [vmem:[%s152 + $0x30] sm:%s145]
                %179 = vst [vmem:[%s153 + $0x30] sm:%s145] %v178
                %v180 = vld [vmem:[%s152 + $0x34] sm:%s145]
                %181 = vst [vmem:[%s153 + $0x34] sm:%s145] %v180
                %v182 = vld [vmem:[%s152 + $0x38] sm:%s145]
                %183 = vst [vmem:[%s153 + $0x38] sm:%s145] %v182
                %v184 = vld [vmem:[%s152 + $0x3c] sm:%s145]
                %185 = vst [vmem:[%s153 + $0x3c] sm:%s145] %v184
                %v186 = vld [vmem:[%s152 + $0x40] sm:%s145]
                %187 = vst [vmem:[%s153 + $0x40] sm:%s145] %v186
                %v188 = vld [vmem:[%s152 + $0x44] sm:%s145]
                %189 = vst [vmem:[%s153 + $0x44] sm:%s145] %v188
                %v190 = vld [vmem:[%s152 + $0x48] sm:%s145]
                %191 = vst [vmem:[%s153 + $0x48] sm:%s145] %v190
                %v192 = vld [vmem:[%s152 + $0x4c] sm:%s145]
                %193 = vst [vmem:[%s153 + $0x4c] sm:%s145] %v192
                %v194 = vld [vmem:[%s152 + $0x50] sm:%s145]
                %195 = vst [vmem:[%s153 + $0x50] sm:%s145] %v194
                %v196 = vld [vmem:[%s152 + $0x54] sm:%s145]
                %197 = vst [vmem:[%s153 + $0x54] sm:%s145] %v196
                %v198 = vld [vmem:[%s152 + $0x58] sm:%s145]
                %199 = vst [vmem:[%s153 + $0x58] sm:%s145] %v198
                %v200 = vld [vmem:[%s152 + $0x5c] sm:%s145]
                %201 = vst [vmem:[%s153 + $0x5c] sm:%s145] %v200
                %v202 = vld [vmem:[%s152 + $0x60] sm:%s145]
                %203 = vst [vmem:[%s153 + $0x60] sm:%s145] %v202
                %v204 = vld [vmem:[%s152 + $0x64] sm:%s145]
                %205 = vst [vmem:[%s153 + $0x64] sm:%s145] %v204
                %v206 = vld [vmem:[%s152 + $0x68] sm:%s145]
                %207 = vst [vmem:[%s153 + $0x68] sm:%s145] %v206
                %v208 = vld [vmem:[%s152 + $0x6c] sm:%s145]
                %209 = vst [vmem:[%s153 + $0x6c] sm:%s145] %v208
                %v210 = vld [vmem:[%s152 + $0x70] sm:%s145]
                %211 = vst [vmem:[%s153 + $0x70] sm:%s145] %v210
                %v212 = vld [vmem:[%s152 + $0x74] sm:%s145]
                %213 = vst [vmem:[%s153 + $0x74] sm:%s145] %v212
                %v214 = vld [vmem:[%s152 + $0x78] sm:%s145]
                %215 = vst [vmem:[%s153 + $0x78] sm:%s145] %v214
                %v216 = vld [vmem:[%s152 + $0x7c] sm:%s145]
                %217 = vst [vmem:[%s153 + $0x7c] sm:%s145] %v216
                %v218 = vld [vmem:[%s152 + $0x80] sm:%s145]
                %219 = vst [vmem:[%s153 + $0x80] sm:%s145] %v218
                %v220 = vld [vmem:[%s152 + $0x84] sm:%s145]
                %221 = vst [vmem:[%s153 + $0x84] sm:%s145] %v220
                %v222 = vld [vmem:[%s152 + $0x88] sm:%s145]
                %223 = vst [vmem:[%s153 + $0x88] sm:%s145] %v222
                %v224 = vld [vmem:[%s152 + $0x8c] sm:%s145]
                %225 = vst [vmem:[%s153 + $0x8c] sm:%s145] %v224
                %v226 = vld [vmem:[%s152 + $0x120] sm:%s145]
                %227 = vst [vmem:[%s153 + $0x90] sm:%s145] %v226
                %v228 = vld [vmem:[%s152 + $0x124] sm:%s145]
                %229 = vst [vmem:[%s153 + $0x94] sm:%s145] %v228
                %v230 = vld [vmem:[%s152 + $0x128] sm:%s145]
                %231 = vst [vmem:[%s153 + $0x98] sm:%s145] %v230
                %v232 = vld [vmem:[%s152 + $0x12c] sm:%s145]
                %233 = vst [vmem:[%s153 + $0x9c] sm:%s145] %v232
                %v234 = vld [vmem:[%s152 + $0x130] sm:%s145]
                %235 = vst [vmem:[%s153 + $0xa0] sm:%s145] %v234
                %v236 = vld [vmem:[%s152 + $0x134] sm:%s145]
                %237 = vst [vmem:[%s153 + $0xa4] sm:%s145] %v236
                %v238 = vld [vmem:[%s152 + $0x138] sm:%s145]
                %239 = vst [vmem:[%s153 + $0xa8] sm:%s145] %v238
                %v240 = vld [vmem:[%s152 + $0x13c] sm:%s145]
                %241 = vst [vmem:[%s153 + $0xac] sm:%s145] %v240
                %v242 = vld [vmem:[%s152 + $0x140] sm:%s145]
                %243 = vst [vmem:[%s153 + $0xb0] sm:%s145] %v242
                %v244 = vld [vmem:[%s152 + $0x144] sm:%s145]
                %245 = vst [vmem:[%s153 + $0xb4] sm:%s145] %v244
                %v246 = vld [vmem:[%s152 + $0x148] sm:%s145]
                %247 = vst [vmem:[%s153 + $0xb8] sm:%s145] %v246
                %v248 = vld [vmem:[%s152 + $0x14c] sm:%s145]
                %249 = vst [vmem:[%s153 + $0xbc] sm:%s145] %v248
                %v250 = vld [vmem:[%s152 + $0x150] sm:%s145]
                %251 = vst [vmem:[%s153 + $0xc0] sm:%s145] %v250
                %v252 = vld [vmem:[%s152 + $0x154] sm:%s145]
                %253 = vst [vmem:[%s153 + $0xc4] sm:%s145] %v252
                %v254 = vld [vmem:[%s152 + $0x158] sm:%s145]
                %255 = vst [vmem:[%s153 + $0xc8] sm:%s145] %v254
                %v256 = vld [vmem:[%s152 + $0x15c] sm:%s145]
                %257 = vst [vmem:[%s153 + $0xcc] sm:%s145] %v256
                %v258 = vld [vmem:[%s152 + $0x160] sm:%s145]
                %259 = vst [vmem:[%s153 + $0xd0] sm:%s145] %v258
                %v260 = vld [vmem:[%s152 + $0x164] sm:%s145]
                %261 = vst [vmem:[%s153 + $0xd4] sm:%s145] %v260
                %v262 = vld [vmem:[%s152 + $0x168] sm:%s145]
                %263 = vst [vmem:[%s153 + $0xd8] sm:%s145] %v262
                %v264 = vld [vmem:[%s152 + $0x16c] sm:%s145]
                %265 = vst [vmem:[%s153 + $0xdc] sm:%s145] %v264
                %v266 = vld [vmem:[%s152 + $0x170] sm:%s145]
                %267 = vst [vmem:[%s153 + $0xe0] sm:%s145] %v266
                %v268 = vld [vmem:[%s152 + $0x174] sm:%s145]
                %269 = vst [vmem:[%s153 + $0xe4] sm:%s145] %v268
                %v270 = vld [vmem:[%s152 + $0x178] sm:%s145]
                %271 = vst [vmem:[%s153 + $0xe8] sm:%s145] %v270
                %v272 = vld [vmem:[%s152 + $0x17c] sm:%s145]
                %273 = vst [vmem:[%s153 + $0xec] sm:%s145] %v272
                %v274 = vld [vmem:[%s152 + $0x180] sm:%s145]
                %275 = vst [vmem:[%s153 + $0xf0] sm:%s145] %v274
                %v276 = vld [vmem:[%s152 + $0x184] sm:%s145]
                %277 = vst [vmem:[%s153 + $0xf4] sm:%s145] %v276
                %v278 = vld [vmem:[%s152 + $0x188] sm:%s145]
                %279 = vst [vmem:[%s153 + $0xf8] sm:%s145] %v278
                %v280 = vld [vmem:[%s152 + $0x18c] sm:%s145]
                %281 = vst [vmem:[%s153 + $0xfc] sm:%s145] %v280
                %v282 = vld [vmem:[%s152 + $0x190] sm:%s145]
                %283 = vst [vmem:[%s153 + $0x100] sm:%s145] %v282
                %v284 = vld [vmem:[%s152 + $0x194] sm:%s145]
                %285 = vst [vmem:[%s153 + $0x104] sm:%s145] %v284
                %v286 = vld [vmem:[%s152 + $0x198] sm:%s145]
                %287 = vst [vmem:[%s153 + $0x108] sm:%s145] %v286
                %v288 = vld [vmem:[%s152 + $0x19c] sm:%s145]
                %289 = vst [vmem:[%s153 + $0x10c] sm:%s145] %v288
                %v290 = vld [vmem:[%s152 + $0x1a0] sm:%s145]
                %291 = vst [vmem:[%s153 + $0x110] sm:%s145] %v290
                %v292 = vld [vmem:[%s152 + $0x1a4] sm:%s145]
                %293 = vst [vmem:[%s153 + $0x114] sm:%s145] %v292
                %v294 = vld [vmem:[%s152 + $0x1a8] sm:%s145]
                %295 = vst [vmem:[%s153 + $0x118] sm:%s145] %v294
                %v296 = vld [vmem:[%s152 + $0x1ac] sm:%s145]
                %297 = vst [vmem:[%s153 + $0x11c] sm:%s145] %v296
                %v298 = vld [vmem:[%s152 + $0x240] sm:%s145]
                %299 = vst [vmem:[%s153 + $0x120] sm:%s145] %v298
                %v300 = vld [vmem:[%s152 + $0x244] sm:%s145]
                %301 = vst [vmem:[%s153 + $0x124] sm:%s145] %v300
                %v302 = vld [vmem:[%s152 + $0x248] sm:%s145]
                %303 = vst [vmem:[%s153 + $0x128] sm:%s145] %v302
                %v304 = vld [vmem:[%s152 + $0x24c] sm:%s145]
                %305 = vst [vmem:[%s153 + $0x12c] sm:%s145] %v304
                %v306 = vld [vmem:[%s152 + $0x250] sm:%s145]
                %307 = vst [vmem:[%s153 + $0x130] sm:%s145] %v306
                %v308 = vld [vmem:[%s152 + $0x254] sm:%s145]
                %309 = vst [vmem:[%s153 + $0x134] sm:%s145] %v308
                %v310 = vld [vmem:[%s152 + $0x258] sm:%s145]
                %311 = vst [vmem:[%s153 + $0x138] sm:%s145] %v310
                %v312 = vld [vmem:[%s152 + $0x25c] sm:%s145]
                %313 = vst [vmem:[%s153 + $0x13c] sm:%s145] %v312
                %v314 = vld [vmem:[%s152 + $0x260] sm:%s145]
                %315 = vst [vmem:[%s153 + $0x140] sm:%s145] %v314
                %v316 = vld [vmem:[%s152 + $0x264] sm:%s145]
                %317 = vst [vmem:[%s153 + $0x144] sm:%s145] %v316
                %v318 = vld [vmem:[%s152 + $0x268] sm:%s145]
                %319 = vst [vmem:[%s153 + $0x148] sm:%s145] %v318
                %v320 = vld [vmem:[%s152 + $0x26c] sm:%s145]
                %321 = vst [vmem:[%s153 + $0x14c] sm:%s145] %v320
                %v322 = vld [vmem:[%s152 + $0x270] sm:%s145]
                %323 = vst [vmem:[%s153 + $0x150] sm:%s145] %v322
                %v324 = vld [vmem:[%s152 + $0x274] sm:%s145]
                %325 = vst [vmem:[%s153 + $0x154] sm:%s145] %v324
                %v326 = vld [vmem:[%s152 + $0x278] sm:%s145]
                %327 = vst [vmem:[%s153 + $0x158] sm:%s145] %v326
                %v328 = vld [vmem:[%s152 + $0x27c] sm:%s145]
                %329 = vst [vmem:[%s153 + $0x15c] sm:%s145] %v328
                %v330 = vld [vmem:[%s152 + $0x280] sm:%s145]
                %331 = vst [vmem:[%s153 + $0x160] sm:%s145] %v330
                %v332 = vld [vmem:[%s152 + $0x284] sm:%s145]
                %333 = vst [vmem:[%s153 + $0x164] sm:%s145] %v332
                %v334 = vld [vmem:[%s152 + $0x288] sm:%s145]
                %335 = vst [vmem:[%s153 + $0x168] sm:%s145] %v334
                %v336 = vld [vmem:[%s152 + $0x28c] sm:%s145]
                %337 = vst [vmem:[%s153 + $0x16c] sm:%s145] %v336
                %v338 = vld [vmem:[%s152 + $0x290] sm:%s145]
                %339 = vst [vmem:[%s153 + $0x170] sm:%s145] %v338
                %v340 = vld [vmem:[%s152 + $0x294] sm:%s145]
                %341 = vst [vmem:[%s153 + $0x174] sm:%s145] %v340
                %v342 = vld [vmem:[%s152 + $0x298] sm:%s145]
                %343 = vst [vmem:[%s153 + $0x178] sm:%s145] %v342
                %v344 = vld [vmem:[%s152 + $0x29c] sm:%s145]
                %345 = vst [vmem:[%s153 + $0x17c] sm:%s145] %v344
                %v346 = vld [vmem:[%s152 + $0x2a0] sm:%s145]
                %347 = vst [vmem:[%s153 + $0x180] sm:%s145] %v346
                %v348 = vld [vmem:[%s152 + $0x2a4] sm:%s145]
                %349 = vst [vmem:[%s153 + $0x184] sm:%s145] %v348
                %v350 = vld [vmem:[%s152 + $0x2a8] sm:%s145]
                %351 = vst [vmem:[%s153 + $0x188] sm:%s145] %v350
                %v352 = vld [vmem:[%s152 + $0x2ac] sm:%s145]
                %353 = vst [vmem:[%s153 + $0x18c] sm:%s145] %v352
                %v354 = vld [vmem:[%s152 + $0x2b0] sm:%s145]
                %355 = vst [vmem:[%s153 + $0x190] sm:%s145] %v354
                %v356 = vld [vmem:[%s152 + $0x2b4] sm:%s145]
                %357 = vst [vmem:[%s153 + $0x194] sm:%s145] %v356
                %v358 = vld [vmem:[%s152 + $0x2b8] sm:%s145]
                %359 = vst [vmem:[%s153 + $0x198] sm:%s145] %v358
                %v360 = vld [vmem:[%s152 + $0x2bc] sm:%s145]
                %361 = vst [vmem:[%s153 + $0x19c] sm:%s145] %v360
                %v362 = vld [vmem:[%s152 + $0x2c0] sm:%s145]
                %363 = vst [vmem:[%s153 + $0x1a0] sm:%s145] %v362
                %v364 = vld [vmem:[%s152 + $0x2c4] sm:%s145]
                %365 = vst [vmem:[%s153 + $0x1a4] sm:%s145] %v364
                %v366 = vld [vmem:[%s152 + $0x2c8] sm:%s145]
                %367 = vst [vmem:[%s153 + $0x1a8] sm:%s145] %v366
                %v368 = vld [vmem:[%s152 + $0x2cc] sm:%s145]
                %369 = vst [vmem:[%s153 + $0x1ac] sm:%s145] %v368
              $region45: #{tpu_custom_call.1} parent=39 // loop_footer
                %s151 = sadd.s32 1, %s147
              $region46: #{tpu_custom_call.1} parent=39 // loop_footer_branch
                %146 = sbr.rel target = $region42
              $region47: #{tpu_custom_call.1} parent=39 // loop_exit
                _
            $region40: #{tpu_custom_call.1} parent=31 // pred_fallthru
              _
          $region32: #{tpu_custom_call.1} parent=27 // pred_fallthru
            _
          %606 = vnop
        $region28: #{tpu_custom_call.1} parent=23 // pred_fallthru
          _
      $region24: #{tpu_custom_call.1} parent=5 // pred_fallthru
        _
      %p607 = scmp.le.s32.totalorder 1, %s9
      %p608 = scmp.lt.s32.totalorder %s9, 3
      %p609 = pnand %p607, %p608
      %p610 = pneg %p609
      // Predicated region
      $region66: #{tpu_custom_call.1} parent=5 // pred_check
        _
      $region67: #{tpu_custom_call.1} parent=5 // pred_check_branch
        %612 = sbr.rel (%p609) target = $region69
      $region68: #{tpu_custom_call.1} parent=5 // pred_region
        %s613 = ssub.s32 %s9, 1
        %s614 = sand.u32 %s22, 1
        %s615 = sand.u32 %s22, 1
        %s616 = smul.addr %s615, 432
        %s617 = scalar_lea.vmem [#allocation2], %s616
        // Predicated region
        $region70: #{tpu_custom_call.1} parent=68 // pred_check
          %p618 = pneg %p35
        $region71: #{tpu_custom_call.1} parent=68 // pred_check_branch
          %620 = sbr.rel (%p618) target = $region73
        $region72: #{tpu_custom_call.1} parent=68 // pred_region
          _
        $region73: #{tpu_custom_call.1} parent=68 // pred_fallthru
          _
        %s621 = sand.u32 %s22, 1
        %s622 = sand.u32 %s22, 1
        %s623 = smul.addr %s622, 432
        %s624 = scalar_lea.vmem [#allocation2], %s623
        %p625 = pneg %p35
        %p626 = pneg %p32
        %p627 = pneg %p56
        %p628 = pneg %p53
        %p629 = pneg %p77
        %p630 = pneg %p74
        %p631 = pneg %p103
        %p632 = pneg %p100
        %p633 = scmp.lt.s32.totalorder %s14, 1
        %s634 = scalar_select %p633, %s14, 1
        %s635 = smul.addr %s634, 32
        %s636 = smul.addr %s635, 4
        %s637 = scalar_lea.vmem %s3, %s636
        %p638 = scmp.lt.s32.totalorder %s14, 1
        %s639 = scalar_select %p638, %s14, 1
        %s640 = smul.addr %s639, 32
        %s641 = smul.addr %s640, 4
        %s642 = scalar_lea.vmem %s3, %s641
        %v644 = vld [vmem:[%s617] sm:$0xf]
        %v645 = vld [vmem:[%s617 + $0x4] sm:$0xf]
        %v646 = vld [vmem:[%s617 + $0x8] sm:$0xf]
        %v647 = vld [vmem:[%s617 + $0xc] sm:$0xf]
        %v648 = vld [vmem:[%s617 + $0x10] sm:$0xf]
        %v649 = vld [vmem:[%s617 + $0x14] sm:$0xf]
        %v650 = vld [vmem:[%s617 + $0x18] sm:$0xf]
        %v651 = vld [vmem:[%s617 + $0x1c] sm:$0xf]
        %v652 = vld [vmem:[%s617 + $0x20] sm:$0xf]
        %v653 = vld [vmem:[%s617 + $0x24] sm:$0xf]
        %v654 = vld [vmem:[%s617 + $0x28] sm:$0xf]
        %v655 = vld [vmem:[%s617 + $0x2c] sm:$0xf]
        %v656 = vld [vmem:[%s617 + $0x30] sm:$0xf]
        %v657 = vld [vmem:[%s617 + $0x34] sm:$0xf]
        %v658 = vld [vmem:[%s617 + $0x38] sm:$0xf]
        %v659 = vld [vmem:[%s617 + $0x3c] sm:$0xf]
        %v660 = vld [vmem:[%s617 + $0x40] sm:$0xf]
        %v661 = vld [vmem:[%s617 + $0x44] sm:$0xf]
        %v662 = vld [vmem:[%s617 + $0x48] sm:$0xf]
        %v663 = vld [vmem:[%s617 + $0x4c] sm:$0xf]
        %v664 = vld [vmem:[%s617 + $0x50] sm:$0xf]
        %v665 = vld [vmem:[%s617 + $0x54] sm:$0xf]
        %v666 = vld [vmem:[%s617 + $0x58] sm:$0xf]
        %v667 = vld [vmem:[%s617 + $0x5c] sm:$0xf]
        %v668 = vld [vmem:[%s617 + $0x60] sm:$0xf]
        %v669 = vld [vmem:[%s617 + $0x64] sm:$0xf]
        %v670 = vld [vmem:[%s617 + $0x68] sm:$0xf]
        %v671 = vld [vmem:[%s617 + $0x6c] sm:$0xf]
        %v672 = vld [vmem:[%s617 + $0x70] sm:$0xf]
        %v673 = vld [vmem:[%s617 + $0x74] sm:$0xf]
        %v674 = vld [vmem:[%s617 + $0x78] sm:$0xf]
        %v675 = vld [vmem:[%s617 + $0x7c] sm:$0xf]
        %v676 = vld [vmem:[%s1] sm:$0xf]
        %v677 = vld [vmem:[%s1 + $0x4] sm:$0xf]
        %v678 = vld [vmem:[%s1 + $0x8] sm:$0xf]
        %v679 = vld [vmem:[%s1 + $0xc] sm:$0xf]
        %s680 = scalar_lea.vmem %s617, 144 [#allocation2]
        %v681 = vld [vmem:[%s680] sm:$0xf]
        %v682 = vld [vmem:[%s680 + $0x4] sm:$0xf]
        %v683 = vld [vmem:[%s680 + $0x8] sm:$0xf]
        %v684 = vld [vmem:[%s680 + $0xc] sm:$0xf]
        %v685 = vld [vmem:[%s680 + $0x10] sm:$0xf]
        %v686 = vld [vmem:[%s680 + $0x14] sm:$0xf]
        %v687 = vld [vmem:[%s680 + $0x18] sm:$0xf]
        %v688 = vld [vmem:[%s680 + $0x1c] sm:$0xf]
        %v689 = vld [vmem:[%s680 + $0x20] sm:$0xf]
        %v690 = vld [vmem:[%s680 + $0x24] sm:$0xf]
        %v691 = vld [vmem:[%s680 + $0x28] sm:$0xf]
        %v692 = vld [vmem:[%s680 + $0x2c] sm:$0xf]
        %v693 = vld [vmem:[%s680 + $0x30] sm:$0xf]
        %v694 = vld [vmem:[%s680 + $0x34] sm:$0xf]
        %v695 = vld [vmem:[%s680 + $0x38] sm:$0xf]
        %v696 = vld [vmem:[%s680 + $0x3c] sm:$0xf]
        %v697 = vld [vmem:[%s680 + $0x40] sm:$0xf]
        %v698 = vld [vmem:[%s680 + $0x44] sm:$0xf]
        %v699 = vld [vmem:[%s680 + $0x48] sm:$0xf]
        %v700 = vld [vmem:[%s680 + $0x4c] sm:$0xf]
        %v701 = vld [vmem:[%s680 + $0x50] sm:$0xf]
        %v702 = vld [vmem:[%s680 + $0x54] sm:$0xf]
        %v703 = vld [vmem:[%s680 + $0x58] sm:$0xf]
        %v704 = vld [vmem:[%s680 + $0x5c] sm:$0xf]
        %v705 = vld [vmem:[%s680 + $0x60] sm:$0xf]
        %v706 = vld [vmem:[%s680 + $0x64] sm:$0xf]
        %v707 = vld [vmem:[%s680 + $0x68] sm:$0xf]
        %v708 = vld [vmem:[%s680 + $0x6c] sm:$0xf]
        %v709 = vld [vmem:[%s680 + $0x70] sm:$0xf]
        %v710 = vld [vmem:[%s680 + $0x74] sm:$0xf]
        %v711 = vld [vmem:[%s680 + $0x78] sm:$0xf]
        %v712 = vld [vmem:[%s680 + $0x7c] sm:$0xf]
        %s713 = scalar_lea.vmem %s1, 16
        %v714 = vld [vmem:[%s713] sm:$0xf]
        %v715 = vld [vmem:[%s713 + $0x4] sm:$0xf]
        %v716 = vld [vmem:[%s713 + $0x8] sm:$0xf]
        %v717 = vld [vmem:[%s713 + $0xc] sm:$0xf]
        %v750 = vunpack.c.l.b16 %v681
        %v751 = vunpack.c.l.b16 %v682
        %v752 = vunpack.c.l.b16 %v683
        %v753 = vunpack.c.l.b16 %v684
        %v754 = vunpack.c.l.b16 %v685
        %v755 = vunpack.c.l.b16 %v686
        %v756 = vunpack.c.l.b16 %v687
        %v757 = vunpack.c.l.b16 %v688
        %v758 = vunpack.c.l.b16 %v689
        %v759 = vunpack.c.l.b16 %v690
        %v760 = vunpack.c.l.b16 %v691
        %v761 = vunpack.c.l.b16 %v692
        %v762 = vunpack.c.l.b16 %v693
        %v763 = vunpack.c.l.b16 %v694
        %v764 = vunpack.c.l.b16 %v695
        %v765 = vunpack.c.l.b16 %v696
        %v766 = vunpack.c.l.b16 %v697
        %v767 = vunpack.c.l.b16 %v698
        %v768 = vunpack.c.l.b16 %v699
        %v769 = vunpack.c.l.b16 %v700
        %v770 = vunpack.c.l.b16 %v701
        %v771 = vunpack.c.l.b16 %v702
        %v772 = vunpack.c.l.b16 %v703
        %v773 = vunpack.c.l.b16 %v704
        %v774 = vunpack.c.l.b16 %v705
        %v775 = vunpack.c.l.b16 %v706
        %v776 = vunpack.c.l.b16 %v707
        %v777 = vunpack.c.l.b16 %v708
        %v778 = vunpack.c.l.b16 %v709
        %v779 = vunpack.c.l.b16 %v710
        %v780 = vunpack.c.l.b16 %v711
        %v781 = vunpack.c.l.b16 %v712
        %v782 = vpack.c.b16 %v751, %v750
        %v783 = vpack.c.b16 %v753, %v752
        %v784 = vpack.c.b16 %v755, %v754
        %v785 = vpack.c.b16 %v757, %v756
        %v786 = vpack.c.b16 %v759, %v758
        %v787 = vpack.c.b16 %v761, %v760
        %v788 = vpack.c.b16 %v763, %v762
        %v789 = vpack.c.b16 %v765, %v764
        %v790 = vpack.c.b16 %v767, %v766
        %v791 = vpack.c.b16 %v769, %v768
        %v792 = vpack.c.b16 %v771, %v770
        %v793 = vpack.c.b16 %v773, %v772
        %v794 = vpack.c.b16 %v775, %v774
        %v795 = vpack.c.b16 %v777, %v776
        %v796 = vpack.c.b16 %v779, %v778
        %v797 = vpack.c.b16 %v781, %v780
        %v802 = vunpack.c.l.b16 %v714
        %v803 = vunpack.c.l.b16 %v715
        %v804 = vunpack.c.l.b16 %v716
        %v805 = vunpack.c.l.b16 %v717
        %v806 = vpack.c.b16 %v803, %v802
        %v807 = vpack.c.b16 %v805, %v804
        %vm810 = vcmask 261120
        %v812 = vsel %vm810, %v782, 0
        %v815 = vsel %vm810, %v783, 0
        %v818 = vsel %vm810, %v784, 0
        %v821 = vsel %vm810, %v785, 0
        %v824 = vsel %vm810, %v786, 0
        %v827 = vsel %vm810, %v787, 0
        %v830 = vsel %vm810, %v788, 0
        %v833 = vsel %vm810, %v789, 0
        %v836 = vsel %vm810, %v790, 0
        %v839 = vsel %vm810, %v791, 0
        %v842 = vsel %vm810, %v792, 0
        %v845 = vsel %vm810, %v793, 0
        %v848 = vsel %vm810, %v794, 0
        %v851 = vsel %vm810, %v795, 0
        %v854 = vsel %vm810, %v796, 0
        %v857 = vsel %vm810, %v797, 0
        %859 = vmatpush.bf16.msra.mxu0 0
        %860 = vmatpush.bf16.msra.mxu0 0
        %861 = vmatpush.bf16.msra.mxu0 0
        %862 = vmatpush.bf16.msra.mxu0 0
        %863 = vmatpush.bf16.msra.mxu0 0
        %864 = vmatpush.bf16.msra.mxu0 0
        %865 = vmatpush.bf16.msra.mxu0 %v807
        %866 = vmatpush.bf16.msra.mxu0 %v806
        %867 = vmatmul.bf16.gmra.mxu0 %v812
        %v868 = vpop.f32.mrf.mxu0
        %v869 = vadd.f32 0.0, %v868
        %v870 = vpop.f32.mrf.mxu0
        %v871 = vadd.f32 0.0, %v870
        %872 = vmatmul.bf16.gmra.mxu0 %v815
        %v873 = vpop.f32.mrf.mxu0
        %v874 = vadd.f32 0.0, %v873
        %v875 = vpop.f32.mrf.mxu0
        %v876 = vadd.f32 0.0, %v875
        %877 = vmatmul.bf16.gmra.mxu0 %v818
        %v878 = vpop.f32.mrf.mxu0
        %v879 = vadd.f32 0.0, %v878
        %v880 = vpop.f32.mrf.mxu0
        %v881 = vadd.f32 0.0, %v880
        %882 = vmatmul.bf16.gmra.mxu0 %v821
        %v883 = vpop.f32.mrf.mxu0
        %v884 = vadd.f32 0.0, %v883
        %v885 = vpop.f32.mrf.mxu0
        %v886 = vadd.f32 0.0, %v885
        %887 = vmatmul.bf16.gmra.mxu0 %v824
        %v888 = vpop.f32.mrf.mxu0
        %v889 = vadd.f32 0.0, %v888
        %v890 = vpop.f32.mrf.mxu0
        %v891 = vadd.f32 0.0, %v890
        %892 = vmatmul.bf16.gmra.mxu0 %v827
        %v893 = vpop.f32.mrf.mxu0
        %v894 = vadd.f32 0.0, %v893
        %v895 = vpop.f32.mrf.mxu0
        %v896 = vadd.f32 0.0, %v895
        %897 = vmatmul.bf16.gmra.mxu0 %v830
        %v898 = vpop.f32.mrf.mxu0
        %v899 = vadd.f32 0.0, %v898
        %v900 = vpop.f32.mrf.mxu0
        %v901 = vadd.f32 0.0, %v900
        %902 = vmatmul.bf16.gmra.mxu0 %v833
        %v903 = vpop.f32.mrf.mxu0
        %v904 = vadd.f32 0.0, %v903
        %v905 = vpop.f32.mrf.mxu0
        %v906 = vadd.f32 0.0, %v905
        %907 = vmatmul.bf16.gmra.mxu0 %v836
        %v908 = vpop.f32.mrf.mxu0
        %v909 = vadd.f32 0.0, %v908
        %v910 = vpop.f32.mrf.mxu0
        %v911 = vadd.f32 0.0, %v910
        %912 = vmatmul.bf16.gmra.mxu0 %v839
        %v913 = vpop.f32.mrf.mxu0
        %v914 = vadd.f32 0.0, %v913
        %v915 = vpop.f32.mrf.mxu0
        %v916 = vadd.f32 0.0, %v915
        %917 = vmatmul.bf16.gmra.mxu0 %v842
        %v918 = vpop.f32.mrf.mxu0
        %v919 = vadd.f32 0.0, %v918
        %v920 = vpop.f32.mrf.mxu0
        %v921 = vadd.f32 0.0, %v920
        %922 = vmatmul.bf16.gmra.mxu0 %v845
        %v923 = vpop.f32.mrf.mxu0
        %v924 = vadd.f32 0.0, %v923
        %v925 = vpop.f32.mrf.mxu0
        %v926 = vadd.f32 0.0, %v925
        %927 = vmatmul.bf16.gmra.mxu0 %v848
        %v928 = vpop.f32.mrf.mxu0
        %v929 = vadd.f32 0.0, %v928
        %v930 = vpop.f32.mrf.mxu0
        %v931 = vadd.f32 0.0, %v930
        %932 = vmatmul.bf16.gmra.mxu0 %v851
        %v933 = vpop.f32.mrf.mxu0
        %v934 = vadd.f32 0.0, %v933
        %v935 = vpop.f32.mrf.mxu0
        %v936 = vadd.f32 0.0, %v935
        %937 = vmatmul.bf16.gmra.mxu0 %v854
        %v938 = vpop.f32.mrf.mxu0
        %v939 = vadd.f32 0.0, %v938
        %v940 = vpop.f32.mrf.mxu0
        %v941 = vadd.f32 0.0, %v940
        %942 = vmatmul.bf16.gmra.mxu0 %v857
        %v943 = vpop.f32.mrf.mxu0
        %v944 = vadd.f32 0.0, %v943
        %v945 = vpop.f32.mrf.mxu0
        %v946 = vadd.f32 0.0, %v945
        %947 = vdwg.mxu0
        %v980 = vunpack.c.l.b16 %v644
        %v981 = vunpack.c.l.b16 %v645
        %v982 = vunpack.c.l.b16 %v646
        %v983 = vunpack.c.l.b16 %v647
        %v984 = vunpack.c.l.b16 %v648
        %v985 = vunpack.c.l.b16 %v649
        %v986 = vunpack.c.l.b16 %v650
        %v987 = vunpack.c.l.b16 %v651
        %v988 = vunpack.c.l.b16 %v652
        %v989 = vunpack.c.l.b16 %v653
        %v990 = vunpack.c.l.b16 %v654
        %v991 = vunpack.c.l.b16 %v655
        %v992 = vunpack.c.l.b16 %v656
        %v993 = vunpack.c.l.b16 %v657
        %v994 = vunpack.c.l.b16 %v658
        %v995 = vunpack.c.l.b16 %v659
        %v996 = vunpack.c.l.b16 %v660
        %v997 = vunpack.c.l.b16 %v661
        %v998 = vunpack.c.l.b16 %v662
        %v999 = vunpack.c.l.b16 %v663
        %v1000 = vunpack.c.l.b16 %v664
        %v1001 = vunpack.c.l.b16 %v665
        %v1002 = vunpack.c.l.b16 %v666
        %v1003 = vunpack.c.l.b16 %v667
        %v1004 = vunpack.c.l.b16 %v668
        %v1005 = vunpack.c.l.b16 %v669
        %v1006 = vunpack.c.l.b16 %v670
        %v1007 = vunpack.c.l.b16 %v671
        %v1008 = vunpack.c.l.b16 %v672
        %v1009 = vunpack.c.l.b16 %v673
        %v1010 = vunpack.c.l.b16 %v674
        %v1011 = vunpack.c.l.b16 %v675
        %v1012 = vpack.c.b16 %v981, %v980
        %v1013 = vpack.c.b16 %v983, %v982
        %v1014 = vpack.c.b16 %v985, %v984
        %v1015 = vpack.c.b16 %v987, %v986
        %v1016 = vpack.c.b16 %v989, %v988
        %v1017 = vpack.c.b16 %v991, %v990
        %v1018 = vpack.c.b16 %v993, %v992
        %v1019 = vpack.c.b16 %v995, %v994
        %v1020 = vpack.c.b16 %v997, %v996
        %v1021 = vpack.c.b16 %v999, %v998
        %v1022 = vpack.c.b16 %v1001, %v1000
        %v1023 = vpack.c.b16 %v1003, %v1002
        %v1024 = vpack.c.b16 %v1005, %v1004
        %v1025 = vpack.c.b16 %v1007, %v1006
        %v1026 = vpack.c.b16 %v1009, %v1008
        %v1027 = vpack.c.b16 %v1011, %v1010
        %v1032 = vunpack.c.l.b16 %v676
        %v1033 = vunpack.c.l.b16 %v677
        %v1034 = vunpack.c.l.b16 %v678
        %v1035 = vunpack.c.l.b16 %v679
        %v1036 = vpack.c.b16 %v1033, %v1032
        %v1037 = vpack.c.b16 %v1035, %v1034
        %v1041 = vsel %vm810, %v1012, 0
        %v1044 = vsel %vm810, %v1013, 0
        %v1047 = vsel %vm810, %v1014, 0
        %v1050 = vsel %vm810, %v1015, 0
        %v1053 = vsel %vm810, %v1016, 0
        %v1056 = vsel %vm810, %v1017, 0
        %v1059 = vsel %vm810, %v1018, 0
        %v1062 = vsel %vm810, %v1019, 0
        %v1065 = vsel %vm810, %v1020, 0
        %v1068 = vsel %vm810, %v1021, 0
        %v1071 = vsel %vm810, %v1022, 0
        %v1074 = vsel %vm810, %v1023, 0
        %v1077 = vsel %vm810, %v1024, 0
        %v1080 = vsel %vm810, %v1025, 0
        %v1083 = vsel %vm810, %v1026, 0
        %v1086 = vsel %vm810, %v1027, 0
        %1088 = vmatpush.bf16.msra.mxu0 0
        %1089 = vmatpush.bf16.msra.mxu0 0
        %1090 = vmatpush.bf16.msra.mxu0 0
        %1091 = vmatpush.bf16.msra.mxu0 0
        %1092 = vmatpush.bf16.msra.mxu0 0
        %1093 = vmatpush.bf16.msra.mxu0 0
        %1094 = vmatpush.bf16.msra.mxu0 %v1037
        %1095 = vmatpush.bf16.msra.mxu0 %v1036
        %1096 = vmatmul.bf16.gmra.mxu0 %v1041
        %v1097 = vpop.f32.mrf.mxu0
        %v1098 = vadd.f32 %v869, %v1097
        %v1099 = vpop.f32.mrf.mxu0
        %v1100 = vadd.f32 %v871, %v1099
        %1101 = vmatmul.bf16.gmra.mxu0 %v1044
        %v1102 = vpop.f32.mrf.mxu0
        %v1103 = vadd.f32 %v874, %v1102
        %v1104 = vpop.f32.mrf.mxu0
        %v1105 = vadd.f32 %v876, %v1104
        %1106 = vmatmul.bf16.gmra.mxu0 %v1047
        %v1107 = vpop.f32.mrf.mxu0
        %v1108 = vadd.f32 %v879, %v1107
        %v1109 = vpop.f32.mrf.mxu0
        %v1110 = vadd.f32 %v881, %v1109
        %1111 = vmatmul.bf16.gmra.mxu0 %v1050
        %v1112 = vpop.f32.mrf.mxu0
        %v1113 = vadd.f32 %v884, %v1112
        %v1114 = vpop.f32.mrf.mxu0
        %v1115 = vadd.f32 %v886, %v1114
        %1116 = vmatmul.bf16.gmra.mxu0 %v1053
        %v1117 = vpop.f32.mrf.mxu0
        %v1118 = vadd.f32 %v889, %v1117
        %v1119 = vpop.f32.mrf.mxu0
        %v1120 = vadd.f32 %v891, %v1119
        %1121 = vmatmul.bf16.gmra.mxu0 %v1056
        %v1122 = vpop.f32.mrf.mxu0
        %v1123 = vadd.f32 %v894, %v1122
        %v1124 = vpop.f32.mrf.mxu0
        %v1125 = vadd.f32 %v896, %v1124
        %1126 = vmatmul.bf16.gmra.mxu0 %v1059
        %v1127 = vpop.f32.mrf.mxu0
        %v1128 = vadd.f32 %v899, %v1127
        %v1129 = vpop.f32.mrf.mxu0
        %v1130 = vadd.f32 %v901, %v1129
        %1131 = vmatmul.bf16.gmra.mxu0 %v1062
        %v1132 = vpop.f32.mrf.mxu0
        %v1133 = vadd.f32 %v904, %v1132
        %v1134 = vpop.f32.mrf.mxu0
        %v1135 = vadd.f32 %v906, %v1134
        %1136 = vmatmul.bf16.gmra.mxu0 %v1065
        %v1137 = vpop.f32.mrf.mxu0
        %v1138 = vadd.f32 %v909, %v1137
        %v1139 = vpop.f32.mrf.mxu0
        %v1140 = vadd.f32 %v911, %v1139
        %1141 = vmatmul.bf16.gmra.mxu0 %v1068
        %v1142 = vpop.f32.mrf.mxu0
        %v1143 = vadd.f32 %v914, %v1142
        %v1144 = vpop.f32.mrf.mxu0
        %v1145 = vadd.f32 %v916, %v1144
        %1146 = vmatmul.bf16.gmra.mxu0 %v1071
        %v1147 = vpop.f32.mrf.mxu0
        %v1148 = vadd.f32 %v919, %v1147
        %v1149 = vpop.f32.mrf.mxu0
        %v1150 = vadd.f32 %v921, %v1149
        %1151 = vmatmul.bf16.gmra.mxu0 %v1074
        %v1152 = vpop.f32.mrf.mxu0
        %v1153 = vadd.f32 %v924, %v1152
        %v1154 = vpop.f32.mrf.mxu0
        %v1155 = vadd.f32 %v926, %v1154
        %1156 = vmatmul.bf16.gmra.mxu0 %v1077
        %v1157 = vpop.f32.mrf.mxu0
        %v1158 = vadd.f32 %v929, %v1157
        %v1159 = vpop.f32.mrf.mxu0
        %v1160 = vadd.f32 %v931, %v1159
        %1161 = vmatmul.bf16.gmra.mxu0 %v1080
        %v1162 = vpop.f32.mrf.mxu0
        %v1163 = vadd.f32 %v934, %v1162
        %v1164 = vpop.f32.mrf.mxu0
        %v1165 = vadd.f32 %v936, %v1164
        %1166 = vmatmul.bf16.gmra.mxu0 %v1083
        %v1167 = vpop.f32.mrf.mxu0
        %v1168 = vadd.f32 %v939, %v1167
        %v1169 = vpop.f32.mrf.mxu0
        %v1170 = vadd.f32 %v941, %v1169
        %1171 = vmatmul.bf16.gmra.mxu0 %v1086
        %v1172 = vpop.f32.mrf.mxu0
        %v1173 = vadd.f32 %v944, %v1172
        %v1174 = vpop.f32.mrf.mxu0
        %v1175 = vadd.f32 %v946, %v1174
        %1176 = vdwg.mxu0
        %s1177 = scalar_lea.vmem %s617, 288 [#allocation2]
        %v1178 = vld [vmem:[%s1177] sm:$0xf]
        %v1179 = vld [vmem:[%s1177 + $0x4] sm:$0xf]
        %v1180 = vld [vmem:[%s1177 + $0x8] sm:$0xf]
        %v1181 = vld [vmem:[%s1177 + $0xc] sm:$0xf]
        %v1182 = vld [vmem:[%s1177 + $0x10] sm:$0xf]
        %v1183 = vld [vmem:[%s1177 + $0x14] sm:$0xf]
        %v1184 = vld [vmem:[%s1177 + $0x18] sm:$0xf]
        %v1185 = vld [vmem:[%s1177 + $0x1c] sm:$0xf]
        %v1186 = vld [vmem:[%s1177 + $0x20] sm:$0xf]
        %v1187 = vld [vmem:[%s1177 + $0x24] sm:$0xf]
        %v1188 = vld [vmem:[%s1177 + $0x28] sm:$0xf]
        %v1189 = vld [vmem:[%s1177 + $0x2c] sm:$0xf]
        %v1190 = vld [vmem:[%s1177 + $0x30] sm:$0xf]
        %v1191 = vld [vmem:[%s1177 + $0x34] sm:$0xf]
        %v1192 = vld [vmem:[%s1177 + $0x38] sm:$0xf]
        %v1193 = vld [vmem:[%s1177 + $0x3c] sm:$0xf]
        %v1194 = vld [vmem:[%s1177 + $0x40] sm:$0xf]
        %v1195 = vld [vmem:[%s1177 + $0x44] sm:$0xf]
        %v1196 = vld [vmem:[%s1177 + $0x48] sm:$0xf]
        %v1197 = vld [vmem:[%s1177 + $0x4c] sm:$0xf]
        %v1198 = vld [vmem:[%s1177 + $0x50] sm:$0xf]
        %v1199 = vld [vmem:[%s1177 + $0x54] sm:$0xf]
        %v1200 = vld [vmem:[%s1177 + $0x58] sm:$0xf]
        %v1201 = vld [vmem:[%s1177 + $0x5c] sm:$0xf]
        %v1202 = vld [vmem:[%s1177 + $0x60] sm:$0xf]
        %v1203 = vld [vmem:[%s1177 + $0x64] sm:$0xf]
        %v1204 = vld [vmem:[%s1177 + $0x68] sm:$0xf]
        %v1205 = vld [vmem:[%s1177 + $0x6c] sm:$0xf]
        %v1206 = vld [vmem:[%s1177 + $0x70] sm:$0xf]
        %v1207 = vld [vmem:[%s1177 + $0x74] sm:$0xf]
        %v1208 = vld [vmem:[%s1177 + $0x78] sm:$0xf]
        %v1209 = vld [vmem:[%s1177 + $0x7c] sm:$0xf]
        %s1210 = scalar_lea.vmem %s1, 32
        %v1211 = vld [vmem:[%s1210] sm:$0xf]
        %v1212 = vld [vmem:[%s1210 + $0x4] sm:$0xf]
        %v1213 = vld [vmem:[%s1210 + $0x8] sm:$0xf]
        %v1214 = vld [vmem:[%s1210 + $0xc] sm:$0xf]
        %v1247 = vunpack.c.l.b16 %v1178
        %v1248 = vunpack.c.l.b16 %v1179
        %v1249 = vunpack.c.l.b16 %v1180
        %v1250 = vunpack.c.l.b16 %v1181
        %v1251 = vunpack.c.l.b16 %v1182
        %v1252 = vunpack.c.l.b16 %v1183
        %v1253 = vunpack.c.l.b16 %v1184
        %v1254 = vunpack.c.l.b16 %v1185
        %v1255 = vunpack.c.l.b16 %v1186
        %v1256 = vunpack.c.l.b16 %v1187
        %v1257 = vunpack.c.l.b16 %v1188
        %v1258 = vunpack.c.l.b16 %v1189
        %v1259 = vunpack.c.l.b16 %v1190
        %v1260 = vunpack.c.l.b16 %v1191
        %v1261 = vunpack.c.l.b16 %v1192
        %v1262 = vunpack.c.l.b16 %v1193
        %v1263 = vunpack.c.l.b16 %v1194
        %v1264 = vunpack.c.l.b16 %v1195
        %v1265 = vunpack.c.l.b16 %v1196
        %v1266 = vunpack.c.l.b16 %v1197
        %v1267 = vunpack.c.l.b16 %v1198
        %v1268 = vunpack.c.l.b16 %v1199
        %v1269 = vunpack.c.l.b16 %v1200
        %v1270 = vunpack.c.l.b16 %v1201
        %v1271 = vunpack.c.l.b16 %v1202
        %v1272 = vunpack.c.l.b16 %v1203
        %v1273 = vunpack.c.l.b16 %v1204
        %v1274 = vunpack.c.l.b16 %v1205
        %v1275 = vunpack.c.l.b16 %v1206
        %v1276 = vunpack.c.l.b16 %v1207
        %v1277 = vunpack.c.l.b16 %v1208
        %v1278 = vunpack.c.l.b16 %v1209
        %v1279 = vpack.c.b16 %v1248, %v1247
        %v1280 = vpack.c.b16 %v1250, %v1249
        %v1281 = vpack.c.b16 %v1252, %v1251
        %v1282 = vpack.c.b16 %v1254, %v1253
        %v1283 = vpack.c.b16 %v1256, %v1255
        %v1284 = vpack.c.b16 %v1258, %v1257
        %v1285 = vpack.c.b16 %v1260, %v1259
        %v1286 = vpack.c.b16 %v1262, %v1261
        %v1287 = vpack.c.b16 %v1264, %v1263
        %v1288 = vpack.c.b16 %v1266, %v1265
        %v1289 = vpack.c.b16 %v1268, %v1267
        %v1290 = vpack.c.b16 %v1270, %v1269
        %v1291 = vpack.c.b16 %v1272, %v1271
        %v1292 = vpack.c.b16 %v1274, %v1273
        %v1293 = vpack.c.b16 %v1276, %v1275
        %v1294 = vpack.c.b16 %v1278, %v1277
        %v1299 = vunpack.c.l.b16 %v1211
        %v1300 = vunpack.c.l.b16 %v1212
        %v1301 = vunpack.c.l.b16 %v1213
        %v1302 = vunpack.c.l.b16 %v1214
        %v1303 = vpack.c.b16 %v1300, %v1299
        %v1304 = vpack.c.b16 %v1302, %v1301
        %v1308 = vsel %vm810, %v1279, 0
        %v1311 = vsel %vm810, %v1280, 0
        %v1314 = vsel %vm810, %v1281, 0
        %v1317 = vsel %vm810, %v1282, 0
        %v1320 = vsel %vm810, %v1283, 0
        %v1323 = vsel %vm810, %v1284, 0
        %v1326 = vsel %vm810, %v1285, 0
        %v1329 = vsel %vm810, %v1286, 0
        %v1332 = vsel %vm810, %v1287, 0
        %v1335 = vsel %vm810, %v1288, 0
        %v1338 = vsel %vm810, %v1289, 0
        %v1341 = vsel %vm810, %v1290, 0
        %v1344 = vsel %vm810, %v1291, 0
        %v1347 = vsel %vm810, %v1292, 0
        %v1350 = vsel %vm810, %v1293, 0
        %v1353 = vsel %vm810, %v1294, 0
        %1355 = vmatpush.bf16.msra.mxu0 0
        %1356 = vmatpush.bf16.msra.mxu0 0
        %1357 = vmatpush.bf16.msra.mxu0 0
        %1358 = vmatpush.bf16.msra.mxu0 0
        %1359 = vmatpush.bf16.msra.mxu0 0
        %1360 = vmatpush.bf16.msra.mxu0 0
        %1361 = vmatpush.bf16.msra.mxu0 %v1304
        %1362 = vmatpush.bf16.msra.mxu0 %v1303
        %1363 = vmatmul.bf16.gmra.mxu0 %v1308
        %v1364 = vpop.f32.mrf.mxu0
        %v1365 = vadd.f32 0.0, %v1364
        %v1366 = vpop.f32.mrf.mxu0
        %v1367 = vadd.f32 0.0, %v1366
        %1368 = vmatmul.bf16.gmra.mxu0 %v1311
        %v1369 = vpop.f32.mrf.mxu0
        %v1370 = vadd.f32 0.0, %v1369
        %v1371 = vpop.f32.mrf.mxu0
        %v1372 = vadd.f32 0.0, %v1371
        %1373 = vmatmul.bf16.gmra.mxu0 %v1314
        %v1374 = vpop.f32.mrf.mxu0
        %v1375 = vadd.f32 0.0, %v1374
        %v1376 = vpop.f32.mrf.mxu0
        %v1377 = vadd.f32 0.0, %v1376
        %1378 = vmatmul.bf16.gmra.mxu0 %v1317
        %v1379 = vpop.f32.mrf.mxu0
        %v1380 = vadd.f32 0.0, %v1379
        %v1381 = vpop.f32.mrf.mxu0
        %v1382 = vadd.f32 0.0, %v1381
        %1383 = vmatmul.bf16.gmra.mxu0 %v1320
        %v1384 = vpop.f32.mrf.mxu0
        %v1385 = vadd.f32 0.0, %v1384
        %v1386 = vpop.f32.mrf.mxu0
        %v1387 = vadd.f32 0.0, %v1386
        %1388 = vmatmul.bf16.gmra.mxu0 %v1323
        %v1389 = vpop.f32.mrf.mxu0
        %v1390 = vadd.f32 0.0, %v1389
        %v1391 = vpop.f32.mrf.mxu0
        %v1392 = vadd.f32 0.0, %v1391
        %1393 = vmatmul.bf16.gmra.mxu0 %v1326
        %v1394 = vpop.f32.mrf.mxu0
        %v1395 = vadd.f32 0.0, %v1394
        %v1396 = vpop.f32.mrf.mxu0
        %v1397 = vadd.f32 0.0, %v1396
        %1398 = vmatmul.bf16.gmra.mxu0 %v1329
        %v1399 = vpop.f32.mrf.mxu0
        %v1400 = vadd.f32 0.0, %v1399
        %v1401 = vpop.f32.mrf.mxu0
        %v1402 = vadd.f32 0.0, %v1401
        %1403 = vmatmul.bf16.gmra.mxu0 %v1332
        %v1404 = vpop.f32.mrf.mxu0
        %v1405 = vadd.f32 0.0, %v1404
        %v1406 = vpop.f32.mrf.mxu0
        %v1407 = vadd.f32 0.0, %v1406
        %1408 = vmatmul.bf16.gmra.mxu0 %v1335
        %v1409 = vpop.f32.mrf.mxu0
        %v1410 = vadd.f32 0.0, %v1409
        %v1411 = vpop.f32.mrf.mxu0
        %v1412 = vadd.f32 0.0, %v1411
        %1413 = vmatmul.bf16.gmra.mxu0 %v1338
        %v1414 = vpop.f32.mrf.mxu0
        %v1415 = vadd.f32 0.0, %v1414
        %v1416 = vpop.f32.mrf.mxu0
        %v1417 = vadd.f32 0.0, %v1416
        %1418 = vmatmul.bf16.gmra.mxu0 %v1341
        %v1419 = vpop.f32.mrf.mxu0
        %v1420 = vadd.f32 0.0, %v1419
        %v1421 = vpop.f32.mrf.mxu0
        %v1422 = vadd.f32 0.0, %v1421
        %1423 = vmatmul.bf16.gmra.mxu0 %v1344
        %v1424 = vpop.f32.mrf.mxu0
        %v1425 = vadd.f32 0.0, %v1424
        %v1426 = vpop.f32.mrf.mxu0
        %v1427 = vadd.f32 0.0, %v1426
        %1428 = vmatmul.bf16.gmra.mxu0 %v1347
        %v1429 = vpop.f32.mrf.mxu0
        %v1430 = vadd.f32 0.0, %v1429
        %v1431 = vpop.f32.mrf.mxu0
        %v1432 = vadd.f32 0.0, %v1431
        %1433 = vmatmul.bf16.gmra.mxu0 %v1350
        %v1434 = vpop.f32.mrf.mxu0
        %v1435 = vadd.f32 0.0, %v1434
        %v1436 = vpop.f32.mrf.mxu0
        %v1437 = vadd.f32 0.0, %v1436
        %1438 = vmatmul.bf16.gmra.mxu0 %v1353
        %v1439 = vpop.f32.mrf.mxu0
        %v1440 = vadd.f32 0.0, %v1439
        %v1441 = vpop.f32.mrf.mxu0
        %v1442 = vadd.f32 0.0, %v1441
        %1443 = vdwg.mxu0
        %v1444 = vadd.f32 %v1098, %v1365
        %v1445 = vadd.f32 %v1100, %v1367
        %v1446 = vadd.f32 %v1103, %v1370
        %v1447 = vadd.f32 %v1105, %v1372
        %v1448 = vadd.f32 %v1108, %v1375
        %v1449 = vadd.f32 %v1110, %v1377
        %v1450 = vadd.f32 %v1113, %v1380
        %v1451 = vadd.f32 %v1115, %v1382
        %v1452 = vadd.f32 %v1118, %v1385
        %v1453 = vadd.f32 %v1120, %v1387
        %v1454 = vadd.f32 %v1123, %v1390
        %v1455 = vadd.f32 %v1125, %v1392
        %v1456 = vadd.f32 %v1128, %v1395
        %v1457 = vadd.f32 %v1130, %v1397
        %v1458 = vadd.f32 %v1133, %v1400
        %v1459 = vadd.f32 %v1135, %v1402
        %v1460 = vadd.f32 %v1138, %v1405
        %v1461 = vadd.f32 %v1140, %v1407
        %v1462 = vadd.f32 %v1143, %v1410
        %v1463 = vadd.f32 %v1145, %v1412
        %v1464 = vadd.f32 %v1148, %v1415
        %v1465 = vadd.f32 %v1150, %v1417
        %v1466 = vadd.f32 %v1153, %v1420
        %v1467 = vadd.f32 %v1155, %v1422
        %v1468 = vadd.f32 %v1158, %v1425
        %v1469 = vadd.f32 %v1160, %v1427
        %v1470 = vadd.f32 %v1163, %v1430
        %v1471 = vadd.f32 %v1165, %v1432
        %v1472 = vadd.f32 %v1168, %v1435
        %v1473 = vadd.f32 %v1170, %v1437
        %v1474 = vadd.f32 %v1173, %v1440
        %v1475 = vadd.f32 %v1175, %v1442
        %v1476 = vld [vmem:[%s617 + $0x8] sm:$0xf]
        %v1477 = vld [vmem:[%s617 + $0xc] sm:$0xf]
        %v1478 = vld [vmem:[%s617 + $0x10] sm:$0xf]
        %v1479 = vld [vmem:[%s617 + $0x14] sm:$0xf]
        %v1480 = vld [vmem:[%s617 + $0x18] sm:$0xf]
        %v1481 = vld [vmem:[%s617 + $0x1c] sm:$0xf]
        %v1482 = vld [vmem:[%s617 + $0x20] sm:$0xf]
        %v1483 = vld [vmem:[%s617 + $0x24] sm:$0xf]
        %v1484 = vld [vmem:[%s617 + $0x28] sm:$0xf]
        %v1485 = vld [vmem:[%s617 + $0x2c] sm:$0xf]
        %v1486 = vld [vmem:[%s617 + $0x30] sm:$0xf]
        %v1487 = vld [vmem:[%s617 + $0x34] sm:$0xf]
        %v1488 = vld [vmem:[%s617 + $0x38] sm:$0xf]
        %v1489 = vld [vmem:[%s617 + $0x3c] sm:$0xf]
        %v1490 = vld [vmem:[%s617 + $0x40] sm:$0xf]
        %v1491 = vld [vmem:[%s617 + $0x44] sm:$0xf]
        %v1492 = vld [vmem:[%s617 + $0x48] sm:$0xf]
        %v1493 = vld [vmem:[%s617 + $0x4c] sm:$0xf]
        %v1494 = vld [vmem:[%s617 + $0x50] sm:$0xf]
        %v1495 = vld [vmem:[%s617 + $0x54] sm:$0xf]
        %v1496 = vld [vmem:[%s617 + $0x58] sm:$0xf]
        %v1497 = vld [vmem:[%s617 + $0x5c] sm:$0xf]
        %v1498 = vld [vmem:[%s617 + $0x60] sm:$0xf]
        %v1499 = vld [vmem:[%s617 + $0x64] sm:$0xf]
        %v1500 = vld [vmem:[%s617 + $0x68] sm:$0xf]
        %v1501 = vld [vmem:[%s617 + $0x6c] sm:$0xf]
        %v1502 = vld [vmem:[%s617 + $0x70] sm:$0xf]
        %v1503 = vld [vmem:[%s617 + $0x74] sm:$0xf]
        %v1504 = vld [vmem:[%s617 + $0x78] sm:$0xf]
        %v1505 = vld [vmem:[%s617 + $0x7c] sm:$0xf]
        %v1506 = vld [vmem:[%s617 + $0x80] sm:$0xf]
        %v1507 = vld [vmem:[%s617 + $0x84] sm:$0xf]
        %s1508 = scalar_lea.vmem %s1, 48
        %v1509 = vld [vmem:[%s1508] sm:$0xf]
        %v1510 = vld [vmem:[%s1508 + $0x4] sm:$0xf]
        %v1511 = vld [vmem:[%s1508 + $0x8] sm:$0xf]
        %v1512 = vld [vmem:[%s1508 + $0xc] sm:$0xf]
        %v1545 = vunpack.c.l.b16 %v1476
        %v1546 = vunpack.c.l.b16 %v1477
        %v1547 = vunpack.c.l.b16 %v1478
        %v1548 = vunpack.c.l.b16 %v1479
        %v1549 = vunpack.c.l.b16 %v1480
        %v1550 = vunpack.c.l.b16 %v1481
        %v1551 = vunpack.c.l.b16 %v1482
        %v1552 = vunpack.c.l.b16 %v1483
        %v1553 = vunpack.c.l.b16 %v1484
        %v1554 = vunpack.c.l.b16 %v1485
        %v1555 = vunpack.c.l.b16 %v1486
        %v1556 = vunpack.c.l.b16 %v1487
        %v1557 = vunpack.c.l.b16 %v1488
        %v1558 = vunpack.c.l.b16 %v1489
        %v1559 = vunpack.c.l.b16 %v1490
        %v1560 = vunpack.c.l.b16 %v1491
        %v1561 = vunpack.c.l.b16 %v1492
        %v1562 = vunpack.c.l.b16 %v1493
        %v1563 = vunpack.c.l.b16 %v1494
        %v1564 = vunpack.c.l.b16 %v1495
        %v1565 = vunpack.c.l.b16 %v1496
        %v1566 = vunpack.c.l.b16 %v1497
        %v1567 = vunpack.c.l.b16 %v1498
        %v1568 = vunpack.c.l.b16 %v1499
        %v1569 = vunpack.c.l.b16 %v1500
        %v1570 = vunpack.c.l.b16 %v1501
        %v1571 = vunpack.c.l.b16 %v1502
        %v1572 = vunpack.c.l.b16 %v1503
        %v1573 = vunpack.c.l.b16 %v1504
        %v1574 = vunpack.c.l.b16 %v1505
        %v1575 = vunpack.c.l.b16 %v1506
        %v1576 = vunpack.c.l.b16 %v1507
        %v1577 = vpack.c.b16 %v1546, %v1545
        %v1578 = vpack.c.b16 %v1548, %v1547
        %v1579 = vpack.c.b16 %v1550, %v1549
        %v1580 = vpack.c.b16 %v1552, %v1551
        %v1581 = vpack.c.b16 %v1554, %v1553
        %v1582 = vpack.c.b16 %v1556, %v1555
        %v1583 = vpack.c.b16 %v1558, %v1557
        %v1584 = vpack.c.b16 %v1560, %v1559
        %v1585 = vpack.c.b16 %v1562, %v1561
        %v1586 = vpack.c.b16 %v1564, %v1563
        %v1587 = vpack.c.b16 %v1566, %v1565
        %v1588 = vpack.c.b16 %v1568, %v1567
        %v1589 = vpack.c.b16 %v1570, %v1569
        %v1590 = vpack.c.b16 %v1572, %v1571
        %v1591 = vpack.c.b16 %v1574, %v1573
        %v1592 = vpack.c.b16 %v1576, %v1575
        %v1597 = vunpack.c.l.b16 %v1509
        %v1598 = vunpack.c.l.b16 %v1510
        %v1599 = vunpack.c.l.b16 %v1511
        %v1600 = vunpack.c.l.b16 %v1512
        %v1601 = vpack.c.b16 %v1598, %v1597
        %v1602 = vpack.c.b16 %v1600, %v1599
        %v1606 = vsel %vm810, %v1577, 0
        %v1609 = vsel %vm810, %v1578, 0
        %v1612 = vsel %vm810, %v1579, 0
        %v1615 = vsel %vm810, %v1580, 0
        %v1618 = vsel %vm810, %v1581, 0
        %v1621 = vsel %vm810, %v1582, 0
        %v1624 = vsel %vm810, %v1583, 0
        %v1627 = vsel %vm810, %v1584, 0
        %v1630 = vsel %vm810, %v1585, 0
        %v1633 = vsel %vm810, %v1586, 0
        %v1636 = vsel %vm810, %v1587, 0
        %v1639 = vsel %vm810, %v1588, 0
        %v1642 = vsel %vm810, %v1589, 0
        %v1645 = vsel %vm810, %v1590, 0
        %v1648 = vsel %vm810, %v1591, 0
        %v1651 = vsel %vm810, %v1592, 0
        %1653 = vmatpush.bf16.msra.mxu0 0
        %1654 = vmatpush.bf16.msra.mxu0 0
        %1655 = vmatpush.bf16.msra.mxu0 0
        %1656 = vmatpush.bf16.msra.mxu0 0
        %1657 = vmatpush.bf16.msra.mxu0 0
        %1658 = vmatpush.bf16.msra.mxu0 0
        %1659 = vmatpush.bf16.msra.mxu0 %v1602
        %1660 = vmatpush.bf16.msra.mxu0 %v1601
        %1661 = vmatmul.bf16.gmra.mxu0 %v1606
        %v1662 = vpop.f32.mrf.mxu0
        %v1663 = vadd.f32 0.0, %v1662
        %v1664 = vpop.f32.mrf.mxu0
        %v1665 = vadd.f32 0.0, %v1664
        %1666 = vmatmul.bf16.gmra.mxu0 %v1609
        %v1667 = vpop.f32.mrf.mxu0
        %v1668 = vadd.f32 0.0, %v1667
        %v1669 = vpop.f32.mrf.mxu0
        %v1670 = vadd.f32 0.0, %v1669
        %1671 = vmatmul.bf16.gmra.mxu0 %v1612
        %v1672 = vpop.f32.mrf.mxu0
        %v1673 = vadd.f32 0.0, %v1672
        %v1674 = vpop.f32.mrf.mxu0
        %v1675 = vadd.f32 0.0, %v1674
        %1676 = vmatmul.bf16.gmra.mxu0 %v1615
        %v1677 = vpop.f32.mrf.mxu0
        %v1678 = vadd.f32 0.0, %v1677
        %v1679 = vpop.f32.mrf.mxu0
        %v1680 = vadd.f32 0.0, %v1679
        %1681 = vmatmul.bf16.gmra.mxu0 %v1618
        %v1682 = vpop.f32.mrf.mxu0
        %v1683 = vadd.f32 0.0, %v1682
        %v1684 = vpop.f32.mrf.mxu0
        %v1685 = vadd.f32 0.0, %v1684
        %1686 = vmatmul.bf16.gmra.mxu0 %v1621
        %v1687 = vpop.f32.mrf.mxu0
        %v1688 = vadd.f32 0.0, %v1687
        %v1689 = vpop.f32.mrf.mxu0
        %v1690 = vadd.f32 0.0, %v1689
        %1691 = vmatmul.bf16.gmra.mxu0 %v1624
        %v1692 = vpop.f32.mrf.mxu0
        %v1693 = vadd.f32 0.0, %v1692
        %v1694 = vpop.f32.mrf.mxu0
        %v1695 = vadd.f32 0.0, %v1694
        %1696 = vmatmul.bf16.gmra.mxu0 %v1627
        %v1697 = vpop.f32.mrf.mxu0
        %v1698 = vadd.f32 0.0, %v1697
        %v1699 = vpop.f32.mrf.mxu0
        %v1700 = vadd.f32 0.0, %v1699
        %1701 = vmatmul.bf16.gmra.mxu0 %v1630
        %v1702 = vpop.f32.mrf.mxu0
        %v1703 = vadd.f32 0.0, %v1702
        %v1704 = vpop.f32.mrf.mxu0
        %v1705 = vadd.f32 0.0, %v1704
        %1706 = vmatmul.bf16.gmra.mxu0 %v1633
        %v1707 = vpop.f32.mrf.mxu0
        %v1708 = vadd.f32 0.0, %v1707
        %v1709 = vpop.f32.mrf.mxu0
        %v1710 = vadd.f32 0.0, %v1709
        %1711 = vmatmul.bf16.gmra.mxu0 %v1636
        %v1712 = vpop.f32.mrf.mxu0
        %v1713 = vadd.f32 0.0, %v1712
        %v1714 = vpop.f32.mrf.mxu0
        %v1715 = vadd.f32 0.0, %v1714
        %1716 = vmatmul.bf16.gmra.mxu0 %v1639
        %v1717 = vpop.f32.mrf.mxu0
        %v1718 = vadd.f32 0.0, %v1717
        %v1719 = vpop.f32.mrf.mxu0
        %v1720 = vadd.f32 0.0, %v1719
        %1721 = vmatmul.bf16.gmra.mxu0 %v1642
        %v1722 = vpop.f32.mrf.mxu0
        %v1723 = vadd.f32 0.0, %v1722
        %v1724 = vpop.f32.mrf.mxu0
        %v1725 = vadd.f32 0.0, %v1724
        %1726 = vmatmul.bf16.gmra.mxu0 %v1645
        %v1727 = vpop.f32.mrf.mxu0
        %v1728 = vadd.f32 0.0, %v1727
        %v1729 = vpop.f32.mrf.mxu0
        %v1730 = vadd.f32 0.0, %v1729
        %1731 = vmatmul.bf16.gmra.mxu0 %v1648
        %v1732 = vpop.f32.mrf.mxu0
        %v1733 = vadd.f32 0.0, %v1732
        %v1734 = vpop.f32.mrf.mxu0
        %v1735 = vadd.f32 0.0, %v1734
        %1736 = vmatmul.bf16.gmra.mxu0 %v1651
        %v1737 = vpop.f32.mrf.mxu0
        %v1738 = vadd.f32 0.0, %v1737
        %v1739 = vpop.f32.mrf.mxu0
        %v1740 = vadd.f32 0.0, %v1739
        %1741 = vdwg.mxu0
        %v1742 = vadd.f32 %v1444, %v1663
        %v1743 = vadd.f32 %v1445, %v1665
        %v1744 = vadd.f32 %v1446, %v1668
        %v1745 = vadd.f32 %v1447, %v1670
        %v1746 = vadd.f32 %v1448, %v1673
        %v1747 = vadd.f32 %v1449, %v1675
        %v1748 = vadd.f32 %v1450, %v1678
        %v1749 = vadd.f32 %v1451, %v1680
        %v1750 = vadd.f32 %v1452, %v1683
        %v1751 = vadd.f32 %v1453, %v1685
        %v1752 = vadd.f32 %v1454, %v1688
        %v1753 = vadd.f32 %v1455, %v1690
        %v1754 = vadd.f32 %v1456, %v1693
        %v1755 = vadd.f32 %v1457, %v1695
        %v1756 = vadd.f32 %v1458, %v1698
        %v1757 = vadd.f32 %v1459, %v1700
        %v1758 = vadd.f32 %v1460, %v1703
        %v1759 = vadd.f32 %v1461, %v1705
        %v1760 = vadd.f32 %v1462, %v1708
        %v1761 = vadd.f32 %v1463, %v1710
        %v1762 = vadd.f32 %v1464, %v1713
        %v1763 = vadd.f32 %v1465, %v1715
        %v1764 = vadd.f32 %v1466, %v1718
        %v1765 = vadd.f32 %v1467, %v1720
        %v1766 = vadd.f32 %v1468, %v1723
        %v1767 = vadd.f32 %v1469, %v1725
        %v1768 = vadd.f32 %v1470, %v1728
        %v1769 = vadd.f32 %v1471, %v1730
        %v1770 = vadd.f32 %v1472, %v1733
        %v1771 = vadd.f32 %v1473, %v1735
        %v1772 = vadd.f32 %v1474, %v1738
        %v1773 = vadd.f32 %v1475, %v1740
        %v1774 = vld [vmem:[%s680 + $0x8] sm:$0xf]
        %v1775 = vld [vmem:[%s680 + $0xc] sm:$0xf]
        %v1776 = vld [vmem:[%s680 + $0x10] sm:$0xf]
        %v1777 = vld [vmem:[%s680 + $0x14] sm:$0xf]
        %v1778 = vld [vmem:[%s680 + $0x18] sm:$0xf]
        %v1779 = vld [vmem:[%s680 + $0x1c] sm:$0xf]
        %v1780 = vld [vmem:[%s680 + $0x20] sm:$0xf]
        %v1781 = vld [vmem:[%s680 + $0x24] sm:$0xf]
        %v1782 = vld [vmem:[%s680 + $0x28] sm:$0xf]
        %v1783 = vld [vmem:[%s680 + $0x2c] sm:$0xf]
        %v1784 = vld [vmem:[%s680 + $0x30] sm:$0xf]
        %v1785 = vld [vmem:[%s680 + $0x34] sm:$0xf]
        %v1786 = vld [vmem:[%s680 + $0x38] sm:$0xf]
        %v1787 = vld [vmem:[%s680 + $0x3c] sm:$0xf]
        %v1788 = vld [vmem:[%s680 + $0x40] sm:$0xf]
        %v1789 = vld [vmem:[%s680 + $0x44] sm:$0xf]
        %v1790 = vld [vmem:[%s680 + $0x48] sm:$0xf]
        %v1791 = vld [vmem:[%s680 + $0x4c] sm:$0xf]
        %v1792 = vld [vmem:[%s680 + $0x50] sm:$0xf]
        %v1793 = vld [vmem:[%s680 + $0x54] sm:$0xf]
        %v1794 = vld [vmem:[%s680 + $0x58] sm:$0xf]
        %v1795 = vld [vmem:[%s680 + $0x5c] sm:$0xf]
        %v1796 = vld [vmem:[%s680 + $0x60] sm:$0xf]
        %v1797 = vld [vmem:[%s680 + $0x64] sm:$0xf]
        %v1798 = vld [vmem:[%s680 + $0x68] sm:$0xf]
        %v1799 = vld [vmem:[%s680 + $0x6c] sm:$0xf]
        %v1800 = vld [vmem:[%s680 + $0x70] sm:$0xf]
        %v1801 = vld [vmem:[%s680 + $0x74] sm:$0xf]
        %v1802 = vld [vmem:[%s680 + $0x78] sm:$0xf]
        %v1803 = vld [vmem:[%s680 + $0x7c] sm:$0xf]
        %v1804 = vld [vmem:[%s680 + $0x80] sm:$0xf]
        %v1805 = vld [vmem:[%s680 + $0x84] sm:$0xf]
        %s1806 = scalar_lea.vmem %s1, 64
        %v1807 = vld [vmem:[%s1806] sm:$0xf]
        %v1808 = vld [vmem:[%s1806 + $0x4] sm:$0xf]
        %v1809 = vld [vmem:[%s1806 + $0x8] sm:$0xf]
        %v1810 = vld [vmem:[%s1806 + $0xc] sm:$0xf]
        %v1843 = vunpack.c.l.b16 %v1774
        %v1844 = vunpack.c.l.b16 %v1775
        %v1845 = vunpack.c.l.b16 %v1776
        %v1846 = vunpack.c.l.b16 %v1777
        %v1847 = vunpack.c.l.b16 %v1778
        %v1848 = vunpack.c.l.b16 %v1779
        %v1849 = vunpack.c.l.b16 %v1780
        %v1850 = vunpack.c.l.b16 %v1781
        %v1851 = vunpack.c.l.b16 %v1782
        %v1852 = vunpack.c.l.b16 %v1783
        %v1853 = vunpack.c.l.b16 %v1784
        %v1854 = vunpack.c.l.b16 %v1785
        %v1855 = vunpack.c.l.b16 %v1786
        %v1856 = vunpack.c.l.b16 %v1787
        %v1857 = vunpack.c.l.b16 %v1788
        %v1858 = vunpack.c.l.b16 %v1789
        %v1859 = vunpack.c.l.b16 %v1790
        %v1860 = vunpack.c.l.b16 %v1791
        %v1861 = vunpack.c.l.b16 %v1792
        %v1862 = vunpack.c.l.b16 %v1793
        %v1863 = vunpack.c.l.b16 %v1794
        %v1864 = vunpack.c.l.b16 %v1795
        %v1865 = vunpack.c.l.b16 %v1796
        %v1866 = vunpack.c.l.b16 %v1797
        %v1867 = vunpack.c.l.b16 %v1798
        %v1868 = vunpack.c.l.b16 %v1799
        %v1869 = vunpack.c.l.b16 %v1800
        %v1870 = vunpack.c.l.b16 %v1801
        %v1871 = vunpack.c.l.b16 %v1802
        %v1872 = vunpack.c.l.b16 %v1803
        %v1873 = vunpack.c.l.b16 %v1804
        %v1874 = vunpack.c.l.b16 %v1805
        %v1875 = vpack.c.b16 %v1844, %v1843
        %v1876 = vpack.c.b16 %v1846, %v1845
        %v1877 = vpack.c.b16 %v1848, %v1847
        %v1878 = vpack.c.b16 %v1850, %v1849
        %v1879 = vpack.c.b16 %v1852, %v1851
        %v1880 = vpack.c.b16 %v1854, %v1853
        %v1881 = vpack.c.b16 %v1856, %v1855
        %v1882 = vpack.c.b16 %v1858, %v1857
        %v1883 = vpack.c.b16 %v1860, %v1859
        %v1884 = vpack.c.b16 %v1862, %v1861
        %v1885 = vpack.c.b16 %v1864, %v1863
        %v1886 = vpack.c.b16 %v1866, %v1865
        %v1887 = vpack.c.b16 %v1868, %v1867
        %v1888 = vpack.c.b16 %v1870, %v1869
        %v1889 = vpack.c.b16 %v1872, %v1871
        %v1890 = vpack.c.b16 %v1874, %v1873
        %v1895 = vunpack.c.l.b16 %v1807
        %v1896 = vunpack.c.l.b16 %v1808
        %v1897 = vunpack.c.l.b16 %v1809
        %v1898 = vunpack.c.l.b16 %v1810
        %v1899 = vpack.c.b16 %v1896, %v1895
        %v1900 = vpack.c.b16 %v1898, %v1897
        %v1904 = vsel %vm810, %v1875, 0
        %v1907 = vsel %vm810, %v1876, 0
        %v1910 = vsel %vm810, %v1877, 0
        %v1913 = vsel %vm810, %v1878, 0
        %v1916 = vsel %vm810, %v1879, 0
        %v1919 = vsel %vm810, %v1880, 0
        %v1922 = vsel %vm810, %v1881, 0
        %v1925 = vsel %vm810, %v1882, 0
        %v1928 = vsel %vm810, %v1883, 0
        %v1931 = vsel %vm810, %v1884, 0
        %v1934 = vsel %vm810, %v1885, 0
        %v1937 = vsel %vm810, %v1886, 0
        %v1940 = vsel %vm810, %v1887, 0
        %v1943 = vsel %vm810, %v1888, 0
        %v1946 = vsel %vm810, %v1889, 0
        %v1949 = vsel %vm810, %v1890, 0
        %1951 = vmatpush.bf16.msra.mxu0 0
        %1952 = vmatpush.bf16.msra.mxu0 0
        %1953 = vmatpush.bf16.msra.mxu0 0
        %1954 = vmatpush.bf16.msra.mxu0 0
        %1955 = vmatpush.bf16.msra.mxu0 0
        %1956 = vmatpush.bf16.msra.mxu0 0
        %1957 = vmatpush.bf16.msra.mxu0 %v1900
        %1958 = vmatpush.bf16.msra.mxu0 %v1899
        %1959 = vmatmul.bf16.gmra.mxu0 %v1904
        %v1960 = vpop.f32.mrf.mxu0
        %v1961 = vadd.f32 0.0, %v1960
        %v1962 = vpop.f32.mrf.mxu0
        %v1963 = vadd.f32 0.0, %v1962
        %1964 = vmatmul.bf16.gmra.mxu0 %v1907
        %v1965 = vpop.f32.mrf.mxu0
        %v1966 = vadd.f32 0.0, %v1965
        %v1967 = vpop.f32.mrf.mxu0
        %v1968 = vadd.f32 0.0, %v1967
        %1969 = vmatmul.bf16.gmra.mxu0 %v1910
        %v1970 = vpop.f32.mrf.mxu0
        %v1971 = vadd.f32 0.0, %v1970
        %v1972 = vpop.f32.mrf.mxu0
        %v1973 = vadd.f32 0.0, %v1972
        %1974 = vmatmul.bf16.gmra.mxu0 %v1913
        %v1975 = vpop.f32.mrf.mxu0
        %v1976 = vadd.f32 0.0, %v1975
        %v1977 = vpop.f32.mrf.mxu0
        %v1978 = vadd.f32 0.0, %v1977
        %1979 = vmatmul.bf16.gmra.mxu0 %v1916
        %v1980 = vpop.f32.mrf.mxu0
        %v1981 = vadd.f32 0.0, %v1980
        %v1982 = vpop.f32.mrf.mxu0
        %v1983 = vadd.f32 0.0, %v1982
        %1984 = vmatmul.bf16.gmra.mxu0 %v1919
        %v1985 = vpop.f32.mrf.mxu0
        %v1986 = vadd.f32 0.0, %v1985
        %v1987 = vpop.f32.mrf.mxu0
        %v1988 = vadd.f32 0.0, %v1987
        %1989 = vmatmul.bf16.gmra.mxu0 %v1922
        %v1990 = vpop.f32.mrf.mxu0
        %v1991 = vadd.f32 0.0, %v1990
        %v1992 = vpop.f32.mrf.mxu0
        %v1993 = vadd.f32 0.0, %v1992
        %1994 = vmatmul.bf16.gmra.mxu0 %v1925
        %v1995 = vpop.f32.mrf.mxu0
        %v1996 = vadd.f32 0.0, %v1995
        %v1997 = vpop.f32.mrf.mxu0
        %v1998 = vadd.f32 0.0, %v1997
        %1999 = vmatmul.bf16.gmra.mxu0 %v1928
        %v2000 = vpop.f32.mrf.mxu0
        %v2001 = vadd.f32 0.0, %v2000
        %v2002 = vpop.f32.mrf.mxu0
        %v2003 = vadd.f32 0.0, %v2002
        %2004 = vmatmul.bf16.gmra.mxu0 %v1931
        %v2005 = vpop.f32.mrf.mxu0
        %v2006 = vadd.f32 0.0, %v2005
        %v2007 = vpop.f32.mrf.mxu0
        %v2008 = vadd.f32 0.0, %v2007
        %2009 = vmatmul.bf16.gmra.mxu0 %v1934
        %v2010 = vpop.f32.mrf.mxu0
        %v2011 = vadd.f32 0.0, %v2010
        %v2012 = vpop.f32.mrf.mxu0
        %v2013 = vadd.f32 0.0, %v2012
        %2014 = vmatmul.bf16.gmra.mxu0 %v1937
        %v2015 = vpop.f32.mrf.mxu0
        %v2016 = vadd.f32 0.0, %v2015
        %v2017 = vpop.f32.mrf.mxu0
        %v2018 = vadd.f32 0.0, %v2017
        %2019 = vmatmul.bf16.gmra.mxu0 %v1940
        %v2020 = vpop.f32.mrf.mxu0
        %v2021 = vadd.f32 0.0, %v2020
        %v2022 = vpop.f32.mrf.mxu0
        %v2023 = vadd.f32 0.0, %v2022
        %2024 = vmatmul.bf16.gmra.mxu0 %v1943
        %v2025 = vpop.f32.mrf.mxu0
        %v2026 = vadd.f32 0.0, %v2025
        %v2027 = vpop.f32.mrf.mxu0
        %v2028 = vadd.f32 0.0, %v2027
        %2029 = vmatmul.bf16.gmra.mxu0 %v1946
        %v2030 = vpop.f32.mrf.mxu0
        %v2031 = vadd.f32 0.0, %v2030
        %v2032 = vpop.f32.mrf.mxu0
        %v2033 = vadd.f32 0.0, %v2032
        %2034 = vmatmul.bf16.gmra.mxu0 %v1949
        %v2035 = vpop.f32.mrf.mxu0
        %v2036 = vadd.f32 0.0, %v2035
        %v2037 = vpop.f32.mrf.mxu0
        %v2038 = vadd.f32 0.0, %v2037
        %2039 = vdwg.mxu0
        %v2040 = vadd.f32 %v1742, %v1961
        %v2041 = vadd.f32 %v1743, %v1963
        %v2042 = vadd.f32 %v1744, %v1966
        %v2043 = vadd.f32 %v1745, %v1968
        %v2044 = vadd.f32 %v1746, %v1971
        %v2045 = vadd.f32 %v1747, %v1973
        %v2046 = vadd.f32 %v1748, %v1976
        %v2047 = vadd.f32 %v1749, %v1978
        %v2048 = vadd.f32 %v1750, %v1981
        %v2049 = vadd.f32 %v1751, %v1983
        %v2050 = vadd.f32 %v1752, %v1986
        %v2051 = vadd.f32 %v1753, %v1988
        %v2052 = vadd.f32 %v1754, %v1991
        %v2053 = vadd.f32 %v1755, %v1993
        %v2054 = vadd.f32 %v1756, %v1996
        %v2055 = vadd.f32 %v1757, %v1998
        %v2056 = vadd.f32 %v1758, %v2001
        %v2057 = vadd.f32 %v1759, %v2003
        %v2058 = vadd.f32 %v1760, %v2006
        %v2059 = vadd.f32 %v1761, %v2008
        %v2060 = vadd.f32 %v1762, %v2011
        %v2061 = vadd.f32 %v1763, %v2013
        %v2062 = vadd.f32 %v1764, %v2016
        %v2063 = vadd.f32 %v1765, %v2018
        %v2064 = vadd.f32 %v1766, %v2021
        %v2065 = vadd.f32 %v1767, %v2023
        %v2066 = vadd.f32 %v1768, %v2026
        %v2067 = vadd.f32 %v1769, %v2028
        %v2068 = vadd.f32 %v1770, %v2031
        %v2069 = vadd.f32 %v1771, %v2033
        %v2070 = vadd.f32 %v1772, %v2036
        %v2071 = vadd.f32 %v1773, %v2038
        %v2072 = vld [vmem:[%s1177 + $0x8] sm:$0xf]
        %v2073 = vld [vmem:[%s1177 + $0xc] sm:$0xf]
        %v2074 = vld [vmem:[%s1177 + $0x10] sm:$0xf]
        %v2075 = vld [vmem:[%s1177 + $0x14] sm:$0xf]
        %v2076 = vld [vmem:[%s1177 + $0x18] sm:$0xf]
        %v2077 = vld [vmem:[%s1177 + $0x1c] sm:$0xf]
        %v2078 = vld [vmem:[%s1177 + $0x20] sm:$0xf]
        %v2079 = vld [vmem:[%s1177 + $0x24] sm:$0xf]
        %v2080 = vld [vmem:[%s1177 + $0x28] sm:$0xf]
        %v2081 = vld [vmem:[%s1177 + $0x2c] sm:$0xf]
        %v2082 = vld [vmem:[%s1177 + $0x30] sm:$0xf]
        %v2083 = vld [vmem:[%s1177 + $0x34] sm:$0xf]
        %v2084 = vld [vmem:[%s1177 + $0x38] sm:$0xf]
        %v2085 = vld [vmem:[%s1177 + $0x3c] sm:$0xf]
        %v2086 = vld [vmem:[%s1177 + $0x40] sm:$0xf]
        %v2087 = vld [vmem:[%s1177 + $0x44] sm:$0xf]
        %v2088 = vld [vmem:[%s1177 + $0x48] sm:$0xf]
        %v2089 = vld [vmem:[%s1177 + $0x4c] sm:$0xf]
        %v2090 = vld [vmem:[%s1177 + $0x50] sm:$0xf]
        %v2091 = vld [vmem:[%s1177 + $0x54] sm:$0xf]
        %v2092 = vld [vmem:[%s1177 + $0x58] sm:$0xf]
        %v2093 = vld [vmem:[%s1177 + $0x5c] sm:$0xf]
        %v2094 = vld [vmem:[%s1177 + $0x60] sm:$0xf]
        %v2095 = vld [vmem:[%s1177 + $0x64] sm:$0xf]
        %v2096 = vld [vmem:[%s1177 + $0x68] sm:$0xf]
        %v2097 = vld [vmem:[%s1177 + $0x6c] sm:$0xf]
        %v2098 = vld [vmem:[%s1177 + $0x70] sm:$0xf]
        %v2099 = vld [vmem:[%s1177 + $0x74] sm:$0xf]
        %v2100 = vld [vmem:[%s1177 + $0x78] sm:$0xf]
        %v2101 = vld [vmem:[%s1177 + $0x7c] sm:$0xf]
        %v2102 = vld [vmem:[%s1177 + $0x80] sm:$0xf]
        %v2103 = vld [vmem:[%s1177 + $0x84] sm:$0xf]
        %s2104 = scalar_lea.vmem %s1, 80
        %v2105 = vld [vmem:[%s2104] sm:$0xf]
        %v2106 = vld [vmem:[%s2104 + $0x4] sm:$0xf]
        %v2107 = vld [vmem:[%s2104 + $0x8] sm:$0xf]
        %v2108 = vld [vmem:[%s2104 + $0xc] sm:$0xf]
        %v2141 = vunpack.c.l.b16 %v2072
        %v2142 = vunpack.c.l.b16 %v2073
        %v2143 = vunpack.c.l.b16 %v2074
        %v2144 = vunpack.c.l.b16 %v2075
        %v2145 = vunpack.c.l.b16 %v2076
        %v2146 = vunpack.c.l.b16 %v2077
        %v2147 = vunpack.c.l.b16 %v2078
        %v2148 = vunpack.c.l.b16 %v2079
        %v2149 = vunpack.c.l.b16 %v2080
        %v2150 = vunpack.c.l.b16 %v2081
        %v2151 = vunpack.c.l.b16 %v2082
        %v2152 = vunpack.c.l.b16 %v2083
        %v2153 = vunpack.c.l.b16 %v2084
        %v2154 = vunpack.c.l.b16 %v2085
        %v2155 = vunpack.c.l.b16 %v2086
        %v2156 = vunpack.c.l.b16 %v2087
        %v2157 = vunpack.c.l.b16 %v2088
        %v2158 = vunpack.c.l.b16 %v2089
        %v2159 = vunpack.c.l.b16 %v2090
        %v2160 = vunpack.c.l.b16 %v2091
        %v2161 = vunpack.c.l.b16 %v2092
        %v2162 = vunpack.c.l.b16 %v2093
        %v2163 = vunpack.c.l.b16 %v2094
        %v2164 = vunpack.c.l.b16 %v2095
        %v2165 = vunpack.c.l.b16 %v2096
        %v2166 = vunpack.c.l.b16 %v2097
        %v2167 = vunpack.c.l.b16 %v2098
        %v2168 = vunpack.c.l.b16 %v2099
        %v2169 = vunpack.c.l.b16 %v2100
        %v2170 = vunpack.c.l.b16 %v2101
        %v2171 = vunpack.c.l.b16 %v2102
        %v2172 = vunpack.c.l.b16 %v2103
        %v2173 = vpack.c.b16 %v2142, %v2141
        %v2174 = vpack.c.b16 %v2144, %v2143
        %v2175 = vpack.c.b16 %v2146, %v2145
        %v2176 = vpack.c.b16 %v2148, %v2147
        %v2177 = vpack.c.b16 %v2150, %v2149
        %v2178 = vpack.c.b16 %v2152, %v2151
        %v2179 = vpack.c.b16 %v2154, %v2153
        %v2180 = vpack.c.b16 %v2156, %v2155
        %v2181 = vpack.c.b16 %v2158, %v2157
        %v2182 = vpack.c.b16 %v2160, %v2159
        %v2183 = vpack.c.b16 %v2162, %v2161
        %v2184 = vpack.c.b16 %v2164, %v2163
        %v2185 = vpack.c.b16 %v2166, %v2165
        %v2186 = vpack.c.b16 %v2168, %v2167
        %v2187 = vpack.c.b16 %v2170, %v2169
        %v2188 = vpack.c.b16 %v2172, %v2171
        %v2193 = vunpack.c.l.b16 %v2105
        %v2194 = vunpack.c.l.b16 %v2106
        %v2195 = vunpack.c.l.b16 %v2107
        %v2196 = vunpack.c.l.b16 %v2108
        %v2197 = vpack.c.b16 %v2194, %v2193
        %v2198 = vpack.c.b16 %v2196, %v2195
        %v2202 = vsel %vm810, %v2173, 0
        %v2205 = vsel %vm810, %v2174, 0
        %v2208 = vsel %vm810, %v2175, 0
        %v2211 = vsel %vm810, %v2176, 0
        %v2214 = vsel %vm810, %v2177, 0
        %v2217 = vsel %vm810, %v2178, 0
        %v2220 = vsel %vm810, %v2179, 0
        %v2223 = vsel %vm810, %v2180, 0
        %v2226 = vsel %vm810, %v2181, 0
        %v2229 = vsel %vm810, %v2182, 0
        %v2232 = vsel %vm810, %v2183, 0
        %v2235 = vsel %vm810, %v2184, 0
        %v2238 = vsel %vm810, %v2185, 0
        %v2241 = vsel %vm810, %v2186, 0
        %v2244 = vsel %vm810, %v2187, 0
        %v2247 = vsel %vm810, %v2188, 0
        %2249 = vmatpush.bf16.msra.mxu0 0
        %2250 = vmatpush.bf16.msra.mxu0 0
        %2251 = vmatpush.bf16.msra.mxu0 0
        %2252 = vmatpush.bf16.msra.mxu0 0
        %2253 = vmatpush.bf16.msra.mxu0 0
        %2254 = vmatpush.bf16.msra.mxu0 0
        %2255 = vmatpush.bf16.msra.mxu0 %v2198
        %2256 = vmatpush.bf16.msra.mxu0 %v2197
        %2257 = vmatmul.bf16.gmra.mxu0 %v2202
        %v2258 = vpop.f32.mrf.mxu0
        %v2259 = vadd.f32 0.0, %v2258
        %v2260 = vpop.f32.mrf.mxu0
        %v2261 = vadd.f32 0.0, %v2260
        %2262 = vmatmul.bf16.gmra.mxu0 %v2205
        %v2263 = vpop.f32.mrf.mxu0
        %v2264 = vadd.f32 0.0, %v2263
        %v2265 = vpop.f32.mrf.mxu0
        %v2266 = vadd.f32 0.0, %v2265
        %2267 = vmatmul.bf16.gmra.mxu0 %v2208
        %v2268 = vpop.f32.mrf.mxu0
        %v2269 = vadd.f32 0.0, %v2268
        %v2270 = vpop.f32.mrf.mxu0
        %v2271 = vadd.f32 0.0, %v2270
        %2272 = vmatmul.bf16.gmra.mxu0 %v2211
        %v2273 = vpop.f32.mrf.mxu0
        %v2274 = vadd.f32 0.0, %v2273
        %v2275 = vpop.f32.mrf.mxu0
        %v2276 = vadd.f32 0.0, %v2275
        %2277 = vmatmul.bf16.gmra.mxu0 %v2214
        %v2278 = vpop.f32.mrf.mxu0
        %v2279 = vadd.f32 0.0, %v2278
        %v2280 = vpop.f32.mrf.mxu0
        %v2281 = vadd.f32 0.0, %v2280
        %2282 = vmatmul.bf16.gmra.mxu0 %v2217
        %v2283 = vpop.f32.mrf.mxu0
        %v2284 = vadd.f32 0.0, %v2283
        %v2285 = vpop.f32.mrf.mxu0
        %v2286 = vadd.f32 0.0, %v2285
        %2287 = vmatmul.bf16.gmra.mxu0 %v2220
        %v2288 = vpop.f32.mrf.mxu0
        %v2289 = vadd.f32 0.0, %v2288
        %v2290 = vpop.f32.mrf.mxu0
        %v2291 = vadd.f32 0.0, %v2290
        %2292 = vmatmul.bf16.gmra.mxu0 %v2223
        %v2293 = vpop.f32.mrf.mxu0
        %v2294 = vadd.f32 0.0, %v2293
        %v2295 = vpop.f32.mrf.mxu0
        %v2296 = vadd.f32 0.0, %v2295
        %2297 = vmatmul.bf16.gmra.mxu0 %v2226
        %v2298 = vpop.f32.mrf.mxu0
        %v2299 = vadd.f32 0.0, %v2298
        %v2300 = vpop.f32.mrf.mxu0
        %v2301 = vadd.f32 0.0, %v2300
        %2302 = vmatmul.bf16.gmra.mxu0 %v2229
        %v2303 = vpop.f32.mrf.mxu0
        %v2304 = vadd.f32 0.0, %v2303
        %v2305 = vpop.f32.mrf.mxu0
        %v2306 = vadd.f32 0.0, %v2305
        %2307 = vmatmul.bf16.gmra.mxu0 %v2232
        %v2308 = vpop.f32.mrf.mxu0
        %v2309 = vadd.f32 0.0, %v2308
        %v2310 = vpop.f32.mrf.mxu0
        %v2311 = vadd.f32 0.0, %v2310
        %2312 = vmatmul.bf16.gmra.mxu0 %v2235
        %v2313 = vpop.f32.mrf.mxu0
        %v2314 = vadd.f32 0.0, %v2313
        %v2315 = vpop.f32.mrf.mxu0
        %v2316 = vadd.f32 0.0, %v2315
        %2317 = vmatmul.bf16.gmra.mxu0 %v2238
        %v2318 = vpop.f32.mrf.mxu0
        %v2319 = vadd.f32 0.0, %v2318
        %v2320 = vpop.f32.mrf.mxu0
        %v2321 = vadd.f32 0.0, %v2320
        %2322 = vmatmul.bf16.gmra.mxu0 %v2241
        %v2323 = vpop.f32.mrf.mxu0
        %v2324 = vadd.f32 0.0, %v2323
        %v2325 = vpop.f32.mrf.mxu0
        %v2326 = vadd.f32 0.0, %v2325
        %2327 = vmatmul.bf16.gmra.mxu0 %v2244
        %v2328 = vpop.f32.mrf.mxu0
        %v2329 = vadd.f32 0.0, %v2328
        %v2330 = vpop.f32.mrf.mxu0
        %v2331 = vadd.f32 0.0, %v2330
        %2332 = vmatmul.bf16.gmra.mxu0 %v2247
        %v2333 = vpop.f32.mrf.mxu0
        %v2334 = vadd.f32 0.0, %v2333
        %v2335 = vpop.f32.mrf.mxu0
        %v2336 = vadd.f32 0.0, %v2335
        %2337 = vdwg.mxu0
        %v2338 = vadd.f32 %v2040, %v2259
        %v2339 = vadd.f32 %v2041, %v2261
        %v2340 = vadd.f32 %v2042, %v2264
        %v2341 = vadd.f32 %v2043, %v2266
        %v2342 = vadd.f32 %v2044, %v2269
        %v2343 = vadd.f32 %v2045, %v2271
        %v2344 = vadd.f32 %v2046, %v2274
        %v2345 = vadd.f32 %v2047, %v2276
        %v2346 = vadd.f32 %v2048, %v2279
        %v2347 = vadd.f32 %v2049, %v2281
        %v2348 = vadd.f32 %v2050, %v2284
        %v2349 = vadd.f32 %v2051, %v2286
        %v2350 = vadd.f32 %v2052, %v2289
        %v2351 = vadd.f32 %v2053, %v2291
        %v2352 = vadd.f32 %v2054, %v2294
        %v2353 = vadd.f32 %v2055, %v2296
        %v2354 = vadd.f32 %v2056, %v2299
        %v2355 = vadd.f32 %v2057, %v2301
        %v2356 = vadd.f32 %v2058, %v2304
        %v2357 = vadd.f32 %v2059, %v2306
        %v2358 = vadd.f32 %v2060, %v2309
        %v2359 = vadd.f32 %v2061, %v2311
        %v2360 = vadd.f32 %v2062, %v2314
        %v2361 = vadd.f32 %v2063, %v2316
        %v2362 = vadd.f32 %v2064, %v2319
        %v2363 = vadd.f32 %v2065, %v2321
        %v2364 = vadd.f32 %v2066, %v2324
        %v2365 = vadd.f32 %v2067, %v2326
        %v2366 = vadd.f32 %v2068, %v2329
        %v2367 = vadd.f32 %v2069, %v2331
        %v2368 = vadd.f32 %v2070, %v2334
        %v2369 = vadd.f32 %v2071, %v2336
        %v2370 = vld [vmem:[%s617 + $0x10] sm:$0xf]
        %v2371 = vld [vmem:[%s617 + $0x14] sm:$0xf]
        %v2372 = vld [vmem:[%s617 + $0x18] sm:$0xf]
        %v2373 = vld [vmem:[%s617 + $0x1c] sm:$0xf]
        %v2374 = vld [vmem:[%s617 + $0x20] sm:$0xf]
        %v2375 = vld [vmem:[%s617 + $0x24] sm:$0xf]
        %v2376 = vld [vmem:[%s617 + $0x28] sm:$0xf]
        %v2377 = vld [vmem:[%s617 + $0x2c] sm:$0xf]
        %v2378 = vld [vmem:[%s617 + $0x30] sm:$0xf]
        %v2379 = vld [vmem:[%s617 + $0x34] sm:$0xf]
        %v2380 = vld [vmem:[%s617 + $0x38] sm:$0xf]
        %v2381 = vld [vmem:[%s617 + $0x3c] sm:$0xf]
        %v2382 = vld [vmem:[%s617 + $0x40] sm:$0xf]
        %v2383 = vld [vmem:[%s617 + $0x44] sm:$0xf]
        %v2384 = vld [vmem:[%s617 + $0x48] sm:$0xf]
        %v2385 = vld [vmem:[%s617 + $0x4c] sm:$0xf]
        %v2386 = vld [vmem:[%s617 + $0x50] sm:$0xf]
        %v2387 = vld [vmem:[%s617 + $0x54] sm:$0xf]
        %v2388 = vld [vmem:[%s617 + $0x58] sm:$0xf]
        %v2389 = vld [vmem:[%s617 + $0x5c] sm:$0xf]
        %v2390 = vld [vmem:[%s617 + $0x60] sm:$0xf]
        %v2391 = vld [vmem:[%s617 + $0x64] sm:$0xf]
        %v2392 = vld [vmem:[%s617 + $0x68] sm:$0xf]
        %v2393 = vld [vmem:[%s617 + $0x6c] sm:$0xf]
        %v2394 = vld [vmem:[%s617 + $0x70] sm:$0xf]
        %v2395 = vld [vmem:[%s617 + $0x74] sm:$0xf]
        %v2396 = vld [vmem:[%s617 + $0x78] sm:$0xf]
        %v2397 = vld [vmem:[%s617 + $0x7c] sm:$0xf]
        %v2398 = vld [vmem:[%s617 + $0x80] sm:$0xf]
        %v2399 = vld [vmem:[%s617 + $0x84] sm:$0xf]
        %v2400 = vld [vmem:[%s617 + $0x88] sm:$0xf]
        %v2401 = vld [vmem:[%s617 + $0x8c] sm:$0xf]
        %s2402 = scalar_lea.vmem %s1, 96
        %v2403 = vld [vmem:[%s2402] sm:$0xf]
        %v2404 = vld [vmem:[%s2402 + $0x4] sm:$0xf]
        %v2405 = vld [vmem:[%s2402 + $0x8] sm:$0xf]
        %v2406 = vld [vmem:[%s2402 + $0xc] sm:$0xf]
        %v2439 = vunpack.c.l.b16 %v2370
        %v2440 = vunpack.c.l.b16 %v2371
        %v2441 = vunpack.c.l.b16 %v2372
        %v2442 = vunpack.c.l.b16 %v2373
        %v2443 = vunpack.c.l.b16 %v2374
        %v2444 = vunpack.c.l.b16 %v2375
        %v2445 = vunpack.c.l.b16 %v2376
        %v2446 = vunpack.c.l.b16 %v2377
        %v2447 = vunpack.c.l.b16 %v2378
        %v2448 = vunpack.c.l.b16 %v2379
        %v2449 = vunpack.c.l.b16 %v2380
        %v2450 = vunpack.c.l.b16 %v2381
        %v2451 = vunpack.c.l.b16 %v2382
        %v2452 = vunpack.c.l.b16 %v2383
        %v2453 = vunpack.c.l.b16 %v2384
        %v2454 = vunpack.c.l.b16 %v2385
        %v2455 = vunpack.c.l.b16 %v2386
        %v2456 = vunpack.c.l.b16 %v2387
        %v2457 = vunpack.c.l.b16 %v2388
        %v2458 = vunpack.c.l.b16 %v2389
        %v2459 = vunpack.c.l.b16 %v2390
        %v2460 = vunpack.c.l.b16 %v2391
        %v2461 = vunpack.c.l.b16 %v2392
        %v2462 = vunpack.c.l.b16 %v2393
        %v2463 = vunpack.c.l.b16 %v2394
        %v2464 = vunpack.c.l.b16 %v2395
        %v2465 = vunpack.c.l.b16 %v2396
        %v2466 = vunpack.c.l.b16 %v2397
        %v2467 = vunpack.c.l.b16 %v2398
        %v2468 = vunpack.c.l.b16 %v2399
        %v2469 = vunpack.c.l.b16 %v2400
        %v2470 = vunpack.c.l.b16 %v2401
        %v2471 = vpack.c.b16 %v2440, %v2439
        %v2472 = vpack.c.b16 %v2442, %v2441
        %v2473 = vpack.c.b16 %v2444, %v2443
        %v2474 = vpack.c.b16 %v2446, %v2445
        %v2475 = vpack.c.b16 %v2448, %v2447
        %v2476 = vpack.c.b16 %v2450, %v2449
        %v2477 = vpack.c.b16 %v2452, %v2451
        %v2478 = vpack.c.b16 %v2454, %v2453
        %v2479 = vpack.c.b16 %v2456, %v2455
        %v2480 = vpack.c.b16 %v2458, %v2457
        %v2481 = vpack.c.b16 %v2460, %v2459
        %v2482 = vpack.c.b16 %v2462, %v2461
        %v2483 = vpack.c.b16 %v2464, %v2463
        %v2484 = vpack.c.b16 %v2466, %v2465
        %v2485 = vpack.c.b16 %v2468, %v2467
        %v2486 = vpack.c.b16 %v2470, %v2469
        %v2491 = vunpack.c.l.b16 %v2403
        %v2492 = vunpack.c.l.b16 %v2404
        %v2493 = vunpack.c.l.b16 %v2405
        %v2494 = vunpack.c.l.b16 %v2406
        %v2495 = vpack.c.b16 %v2492, %v2491
        %v2496 = vpack.c.b16 %v2494, %v2493
        %v2500 = vsel %vm810, %v2471, 0
        %v2503 = vsel %vm810, %v2472, 0
        %v2506 = vsel %vm810, %v2473, 0
        %v2509 = vsel %vm810, %v2474, 0
        %v2512 = vsel %vm810, %v2475, 0
        %v2515 = vsel %vm810, %v2476, 0
        %v2518 = vsel %vm810, %v2477, 0
        %v2521 = vsel %vm810, %v2478, 0
        %v2524 = vsel %vm810, %v2479, 0
        %v2527 = vsel %vm810, %v2480, 0
        %v2530 = vsel %vm810, %v2481, 0
        %v2533 = vsel %vm810, %v2482, 0
        %v2536 = vsel %vm810, %v2483, 0
        %v2539 = vsel %vm810, %v2484, 0
        %v2542 = vsel %vm810, %v2485, 0
        %v2545 = vsel %vm810, %v2486, 0
        %2547 = vmatpush.bf16.msra.mxu0 0
        %2548 = vmatpush.bf16.msra.mxu0 0
        %2549 = vmatpush.bf16.msra.mxu0 0
        %2550 = vmatpush.bf16.msra.mxu0 0
        %2551 = vmatpush.bf16.msra.mxu0 0
        %2552 = vmatpush.bf16.msra.mxu0 0
        %2553 = vmatpush.bf16.msra.mxu0 %v2496
        %2554 = vmatpush.bf16.msra.mxu0 %v2495
        %2555 = vmatmul.bf16.gmra.mxu0 %v2500
        %v2556 = vpop.f32.mrf.mxu0
        %v2557 = vadd.f32 0.0, %v2556
        %v2558 = vpop.f32.mrf.mxu0
        %v2559 = vadd.f32 0.0, %v2558
        %2560 = vmatmul.bf16.gmra.mxu0 %v2503
        %v2561 = vpop.f32.mrf.mxu0
        %v2562 = vadd.f32 0.0, %v2561
        %v2563 = vpop.f32.mrf.mxu0
        %v2564 = vadd.f32 0.0, %v2563
        %2565 = vmatmul.bf16.gmra.mxu0 %v2506
        %v2566 = vpop.f32.mrf.mxu0
        %v2567 = vadd.f32 0.0, %v2566
        %v2568 = vpop.f32.mrf.mxu0
        %v2569 = vadd.f32 0.0, %v2568
        %2570 = vmatmul.bf16.gmra.mxu0 %v2509
        %v2571 = vpop.f32.mrf.mxu0
        %v2572 = vadd.f32 0.0, %v2571
        %v2573 = vpop.f32.mrf.mxu0
        %v2574 = vadd.f32 0.0, %v2573
        %2575 = vmatmul.bf16.gmra.mxu0 %v2512
        %v2576 = vpop.f32.mrf.mxu0
        %v2577 = vadd.f32 0.0, %v2576
        %v2578 = vpop.f32.mrf.mxu0
        %v2579 = vadd.f32 0.0, %v2578
        %2580 = vmatmul.bf16.gmra.mxu0 %v2515
        %v2581 = vpop.f32.mrf.mxu0
        %v2582 = vadd.f32 0.0, %v2581
        %v2583 = vpop.f32.mrf.mxu0
        %v2584 = vadd.f32 0.0, %v2583
        %2585 = vmatmul.bf16.gmra.mxu0 %v2518
        %v2586 = vpop.f32.mrf.mxu0
        %v2587 = vadd.f32 0.0, %v2586
        %v2588 = vpop.f32.mrf.mxu0
        %v2589 = vadd.f32 0.0, %v2588
        %2590 = vmatmul.bf16.gmra.mxu0 %v2521
        %v2591 = vpop.f32.mrf.mxu0
        %v2592 = vadd.f32 0.0, %v2591
        %v2593 = vpop.f32.mrf.mxu0
        %v2594 = vadd.f32 0.0, %v2593
        %2595 = vmatmul.bf16.gmra.mxu0 %v2524
        %v2596 = vpop.f32.mrf.mxu0
        %v2597 = vadd.f32 0.0, %v2596
        %v2598 = vpop.f32.mrf.mxu0
        %v2599 = vadd.f32 0.0, %v2598
        %2600 = vmatmul.bf16.gmra.mxu0 %v2527
        %v2601 = vpop.f32.mrf.mxu0
        %v2602 = vadd.f32 0.0, %v2601
        %v2603 = vpop.f32.mrf.mxu0
        %v2604 = vadd.f32 0.0, %v2603
        %2605 = vmatmul.bf16.gmra.mxu0 %v2530
        %v2606 = vpop.f32.mrf.mxu0
        %v2607 = vadd.f32 0.0, %v2606
        %v2608 = vpop.f32.mrf.mxu0
        %v2609 = vadd.f32 0.0, %v2608
        %2610 = vmatmul.bf16.gmra.mxu0 %v2533
        %v2611 = vpop.f32.mrf.mxu0
        %v2612 = vadd.f32 0.0, %v2611
        %v2613 = vpop.f32.mrf.mxu0
        %v2614 = vadd.f32 0.0, %v2613
        %2615 = vmatmul.bf16.gmra.mxu0 %v2536
        %v2616 = vpop.f32.mrf.mxu0
        %v2617 = vadd.f32 0.0, %v2616
        %v2618 = vpop.f32.mrf.mxu0
        %v2619 = vadd.f32 0.0, %v2618
        %2620 = vmatmul.bf16.gmra.mxu0 %v2539
        %v2621 = vpop.f32.mrf.mxu0
        %v2622 = vadd.f32 0.0, %v2621
        %v2623 = vpop.f32.mrf.mxu0
        %v2624 = vadd.f32 0.0, %v2623
        %2625 = vmatmul.bf16.gmra.mxu0 %v2542
        %v2626 = vpop.f32.mrf.mxu0
        %v2627 = vadd.f32 0.0, %v2626
        %v2628 = vpop.f32.mrf.mxu0
        %v2629 = vadd.f32 0.0, %v2628
        %2630 = vmatmul.bf16.gmra.mxu0 %v2545
        %v2631 = vpop.f32.mrf.mxu0
        %v2632 = vadd.f32 0.0, %v2631
        %v2633 = vpop.f32.mrf.mxu0
        %v2634 = vadd.f32 0.0, %v2633
        %2635 = vdwg.mxu0
        %v2636 = vadd.f32 %v2338, %v2557
        %v2637 = vadd.f32 %v2339, %v2559
        %v2638 = vadd.f32 %v2340, %v2562
        %v2639 = vadd.f32 %v2341, %v2564
        %v2640 = vadd.f32 %v2342, %v2567
        %v2641 = vadd.f32 %v2343, %v2569
        %v2642 = vadd.f32 %v2344, %v2572
        %v2643 = vadd.f32 %v2345, %v2574
        %v2644 = vadd.f32 %v2346, %v2577
        %v2645 = vadd.f32 %v2347, %v2579
        %v2646 = vadd.f32 %v2348, %v2582
        %v2647 = vadd.f32 %v2349, %v2584
        %v2648 = vadd.f32 %v2350, %v2587
        %v2649 = vadd.f32 %v2351, %v2589
        %v2650 = vadd.f32 %v2352, %v2592
        %v2651 = vadd.f32 %v2353, %v2594
        %v2652 = vadd.f32 %v2354, %v2597
        %v2653 = vadd.f32 %v2355, %v2599
        %v2654 = vadd.f32 %v2356, %v2602
        %v2655 = vadd.f32 %v2357, %v2604
        %v2656 = vadd.f32 %v2358, %v2607
        %v2657 = vadd.f32 %v2359, %v2609
        %v2658 = vadd.f32 %v2360, %v2612
        %v2659 = vadd.f32 %v2361, %v2614
        %v2660 = vadd.f32 %v2362, %v2617
        %v2661 = vadd.f32 %v2363, %v2619
        %v2662 = vadd.f32 %v2364, %v2622
        %v2663 = vadd.f32 %v2365, %v2624
        %v2664 = vadd.f32 %v2366, %v2627
        %v2665 = vadd.f32 %v2367, %v2629
        %v2666 = vadd.f32 %v2368, %v2632
        %v2667 = vadd.f32 %v2369, %v2634
        %v2668 = vld [vmem:[%s680 + $0x10] sm:$0xf]
        %v2669 = vld [vmem:[%s680 + $0x14] sm:$0xf]
        %v2670 = vld [vmem:[%s680 + $0x18] sm:$0xf]
        %v2671 = vld [vmem:[%s680 + $0x1c] sm:$0xf]
        %v2672 = vld [vmem:[%s680 + $0x20] sm:$0xf]
        %v2673 = vld [vmem:[%s680 + $0x24] sm:$0xf]
        %v2674 = vld [vmem:[%s680 + $0x28] sm:$0xf]
        %v2675 = vld [vmem:[%s680 + $0x2c] sm:$0xf]
        %v2676 = vld [vmem:[%s680 + $0x30] sm:$0xf]
        %v2677 = vld [vmem:[%s680 + $0x34] sm:$0xf]
        %v2678 = vld [vmem:[%s680 + $0x38] sm:$0xf]
        %v2679 = vld [vmem:[%s680 + $0x3c] sm:$0xf]
        %v2680 = vld [vmem:[%s680 + $0x40] sm:$0xf]
        %v2681 = vld [vmem:[%s680 + $0x44] sm:$0xf]
        %v2682 = vld [vmem:[%s680 + $0x48] sm:$0xf]
        %v2683 = vld [vmem:[%s680 + $0x4c] sm:$0xf]
        %v2684 = vld [vmem:[%s680 + $0x50] sm:$0xf]
        %v2685 = vld [vmem:[%s680 + $0x54] sm:$0xf]
        %v2686 = vld [vmem:[%s680 + $0x58] sm:$0xf]
        %v2687 = vld [vmem:[%s680 + $0x5c] sm:$0xf]
        %v2688 = vld [vmem:[%s680 + $0x60] sm:$0xf]
        %v2689 = vld [vmem:[%s680 + $0x64] sm:$0xf]
        %v2690 = vld [vmem:[%s680 + $0x68] sm:$0xf]
        %v2691 = vld [vmem:[%s680 + $0x6c] sm:$0xf]
        %v2692 = vld [vmem:[%s680 + $0x70] sm:$0xf]
        %v2693 = vld [vmem:[%s680 + $0x74] sm:$0xf]
        %v2694 = vld [vmem:[%s680 + $0x78] sm:$0xf]
        %v2695 = vld [vmem:[%s680 + $0x7c] sm:$0xf]
        %v2696 = vld [vmem:[%s680 + $0x80] sm:$0xf]
        %v2697 = vld [vmem:[%s680 + $0x84] sm:$0xf]
        %v2698 = vld [vmem:[%s680 + $0x88] sm:$0xf]
        %v2699 = vld [vmem:[%s680 + $0x8c] sm:$0xf]
        %s2700 = scalar_lea.vmem %s1, 112
        %v2701 = vld [vmem:[%s2700] sm:$0xf]
        %v2702 = vld [vmem:[%s2700 + $0x4] sm:$0xf]
        %v2703 = vld [vmem:[%s2700 + $0x8] sm:$0xf]
        %v2704 = vld [vmem:[%s2700 + $0xc] sm:$0xf]
        %v2737 = vunpack.c.l.b16 %v2668
        %v2738 = vunpack.c.l.b16 %v2669
        %v2739 = vunpack.c.l.b16 %v2670
        %v2740 = vunpack.c.l.b16 %v2671
        %v2741 = vunpack.c.l.b16 %v2672
        %v2742 = vunpack.c.l.b16 %v2673
        %v2743 = vunpack.c.l.b16 %v2674
        %v2744 = vunpack.c.l.b16 %v2675
        %v2745 = vunpack.c.l.b16 %v2676
        %v2746 = vunpack.c.l.b16 %v2677
        %v2747 = vunpack.c.l.b16 %v2678
        %v2748 = vunpack.c.l.b16 %v2679
        %v2749 = vunpack.c.l.b16 %v2680
        %v2750 = vunpack.c.l.b16 %v2681
        %v2751 = vunpack.c.l.b16 %v2682
        %v2752 = vunpack.c.l.b16 %v2683
        %v2753 = vunpack.c.l.b16 %v2684
        %v2754 = vunpack.c.l.b16 %v2685
        %v2755 = vunpack.c.l.b16 %v2686
        %v2756 = vunpack.c.l.b16 %v2687
        %v2757 = vunpack.c.l.b16 %v2688
        %v2758 = vunpack.c.l.b16 %v2689
        %v2759 = vunpack.c.l.b16 %v2690
        %v2760 = vunpack.c.l.b16 %v2691
        %v2761 = vunpack.c.l.b16 %v2692
        %v2762 = vunpack.c.l.b16 %v2693
        %v2763 = vunpack.c.l.b16 %v2694
        %v2764 = vunpack.c.l.b16 %v2695
        %v2765 = vunpack.c.l.b16 %v2696
        %v2766 = vunpack.c.l.b16 %v2697
        %v2767 = vunpack.c.l.b16 %v2698
        %v2768 = vunpack.c.l.b16 %v2699
        %v2769 = vpack.c.b16 %v2738, %v2737
        %v2770 = vpack.c.b16 %v2740, %v2739
        %v2771 = vpack.c.b16 %v2742, %v2741
        %v2772 = vpack.c.b16 %v2744, %v2743
        %v2773 = vpack.c.b16 %v2746, %v2745
        %v2774 = vpack.c.b16 %v2748, %v2747
        %v2775 = vpack.c.b16 %v2750, %v2749
        %v2776 = vpack.c.b16 %v2752, %v2751
        %v2777 = vpack.c.b16 %v2754, %v2753
        %v2778 = vpack.c.b16 %v2756, %v2755
        %v2779 = vpack.c.b16 %v2758, %v2757
        %v2780 = vpack.c.b16 %v2760, %v2759
        %v2781 = vpack.c.b16 %v2762, %v2761
        %v2782 = vpack.c.b16 %v2764, %v2763
        %v2783 = vpack.c.b16 %v2766, %v2765
        %v2784 = vpack.c.b16 %v2768, %v2767
        %v2789 = vunpack.c.l.b16 %v2701
        %v2790 = vunpack.c.l.b16 %v2702
        %v2791 = vunpack.c.l.b16 %v2703
        %v2792 = vunpack.c.l.b16 %v2704
        %v2793 = vpack.c.b16 %v2790, %v2789
        %v2794 = vpack.c.b16 %v2792, %v2791
        %v2798 = vsel %vm810, %v2769, 0
        %v2801 = vsel %vm810, %v2770, 0
        %v2804 = vsel %vm810, %v2771, 0
        %v2807 = vsel %vm810, %v2772, 0
        %v2810 = vsel %vm810, %v2773, 0
        %v2813 = vsel %vm810, %v2774, 0
        %v2816 = vsel %vm810, %v2775, 0
        %v2819 = vsel %vm810, %v2776, 0
        %v2822 = vsel %vm810, %v2777, 0
        %v2825 = vsel %vm810, %v2778, 0
        %v2828 = vsel %vm810, %v2779, 0
        %v2831 = vsel %vm810, %v2780, 0
        %v2834 = vsel %vm810, %v2781, 0
        %v2837 = vsel %vm810, %v2782, 0
        %v2840 = vsel %vm810, %v2783, 0
        %v2843 = vsel %vm810, %v2784, 0
        %2845 = vmatpush.bf16.msra.mxu0 0
        %2846 = vmatpush.bf16.msra.mxu0 0
        %2847 = vmatpush.bf16.msra.mxu0 0
        %2848 = vmatpush.bf16.msra.mxu0 0
        %2849 = vmatpush.bf16.msra.mxu0 0
        %2850 = vmatpush.bf16.msra.mxu0 0
        %2851 = vmatpush.bf16.msra.mxu0 %v2794
        %2852 = vmatpush.bf16.msra.mxu0 %v2793
        %2853 = vmatmul.bf16.gmra.mxu0 %v2798
        %v2854 = vpop.f32.mrf.mxu0
        %v2855 = vadd.f32 0.0, %v2854
        %v2856 = vpop.f32.mrf.mxu0
        %v2857 = vadd.f32 0.0, %v2856
        %2858 = vmatmul.bf16.gmra.mxu0 %v2801
        %v2859 = vpop.f32.mrf.mxu0
        %v2860 = vadd.f32 0.0, %v2859
        %v2861 = vpop.f32.mrf.mxu0
        %v2862 = vadd.f32 0.0, %v2861
        %2863 = vmatmul.bf16.gmra.mxu0 %v2804
        %v2864 = vpop.f32.mrf.mxu0
        %v2865 = vadd.f32 0.0, %v2864
        %v2866 = vpop.f32.mrf.mxu0
        %v2867 = vadd.f32 0.0, %v2866
        %2868 = vmatmul.bf16.gmra.mxu0 %v2807
        %v2869 = vpop.f32.mrf.mxu0
        %v2870 = vadd.f32 0.0, %v2869
        %v2871 = vpop.f32.mrf.mxu0
        %v2872 = vadd.f32 0.0, %v2871
        %2873 = vmatmul.bf16.gmra.mxu0 %v2810
        %v2874 = vpop.f32.mrf.mxu0
        %v2875 = vadd.f32 0.0, %v2874
        %v2876 = vpop.f32.mrf.mxu0
        %v2877 = vadd.f32 0.0, %v2876
        %2878 = vmatmul.bf16.gmra.mxu0 %v2813
        %v2879 = vpop.f32.mrf.mxu0
        %v2880 = vadd.f32 0.0, %v2879
        %v2881 = vpop.f32.mrf.mxu0
        %v2882 = vadd.f32 0.0, %v2881
        %2883 = vmatmul.bf16.gmra.mxu0 %v2816
        %v2884 = vpop.f32.mrf.mxu0
        %v2885 = vadd.f32 0.0, %v2884
        %v2886 = vpop.f32.mrf.mxu0
        %v2887 = vadd.f32 0.0, %v2886
        %2888 = vmatmul.bf16.gmra.mxu0 %v2819
        %v2889 = vpop.f32.mrf.mxu0
        %v2890 = vadd.f32 0.0, %v2889
        %v2891 = vpop.f32.mrf.mxu0
        %v2892 = vadd.f32 0.0, %v2891
        %2893 = vmatmul.bf16.gmra.mxu0 %v2822
        %v2894 = vpop.f32.mrf.mxu0
        %v2895 = vadd.f32 0.0, %v2894
        %v2896 = vpop.f32.mrf.mxu0
        %v2897 = vadd.f32 0.0, %v2896
        %2898 = vmatmul.bf16.gmra.mxu0 %v2825
        %v2899 = vpop.f32.mrf.mxu0
        %v2900 = vadd.f32 0.0, %v2899
        %v2901 = vpop.f32.mrf.mxu0
        %v2902 = vadd.f32 0.0, %v2901
        %2903 = vmatmul.bf16.gmra.mxu0 %v2828
        %v2904 = vpop.f32.mrf.mxu0
        %v2905 = vadd.f32 0.0, %v2904
        %v2906 = vpop.f32.mrf.mxu0
        %v2907 = vadd.f32 0.0, %v2906
        %2908 = vmatmul.bf16.gmra.mxu0 %v2831
        %v2909 = vpop.f32.mrf.mxu0
        %v2910 = vadd.f32 0.0, %v2909
        %v2911 = vpop.f32.mrf.mxu0
        %v2912 = vadd.f32 0.0, %v2911
        %2913 = vmatmul.bf16.gmra.mxu0 %v2834
        %v2914 = vpop.f32.mrf.mxu0
        %v2915 = vadd.f32 0.0, %v2914
        %v2916 = vpop.f32.mrf.mxu0
        %v2917 = vadd.f32 0.0, %v2916
        %2918 = vmatmul.bf16.gmra.mxu0 %v2837
        %v2919 = vpop.f32.mrf.mxu0
        %v2920 = vadd.f32 0.0, %v2919
        %v2921 = vpop.f32.mrf.mxu0
        %v2922 = vadd.f32 0.0, %v2921
        %2923 = vmatmul.bf16.gmra.mxu0 %v2840
        %v2924 = vpop.f32.mrf.mxu0
        %v2925 = vadd.f32 0.0, %v2924
        %v2926 = vpop.f32.mrf.mxu0
        %v2927 = vadd.f32 0.0, %v2926
        %2928 = vmatmul.bf16.gmra.mxu0 %v2843
        %v2929 = vpop.f32.mrf.mxu0
        %v2930 = vadd.f32 0.0, %v2929
        %v2931 = vpop.f32.mrf.mxu0
        %v2932 = vadd.f32 0.0, %v2931
        %2933 = vdwg.mxu0
        %v2934 = vadd.f32 %v2636, %v2855
        %v2935 = vadd.f32 %v2637, %v2857
        %v2936 = vadd.f32 %v2638, %v2860
        %v2937 = vadd.f32 %v2639, %v2862
        %v2938 = vadd.f32 %v2640, %v2865
        %v2939 = vadd.f32 %v2641, %v2867
        %v2940 = vadd.f32 %v2642, %v2870
        %v2941 = vadd.f32 %v2643, %v2872
        %v2942 = vadd.f32 %v2644, %v2875
        %v2943 = vadd.f32 %v2645, %v2877
        %v2944 = vadd.f32 %v2646, %v2880
        %v2945 = vadd.f32 %v2647, %v2882
        %v2946 = vadd.f32 %v2648, %v2885
        %v2947 = vadd.f32 %v2649, %v2887
        %v2948 = vadd.f32 %v2650, %v2890
        %v2949 = vadd.f32 %v2651, %v2892
        %v2950 = vadd.f32 %v2652, %v2895
        %v2951 = vadd.f32 %v2653, %v2897
        %v2952 = vadd.f32 %v2654, %v2900
        %v2953 = vadd.f32 %v2655, %v2902
        %v2954 = vadd.f32 %v2656, %v2905
        %v2955 = vadd.f32 %v2657, %v2907
        %v2956 = vadd.f32 %v2658, %v2910
        %v2957 = vadd.f32 %v2659, %v2912
        %v2958 = vadd.f32 %v2660, %v2915
        %v2959 = vadd.f32 %v2661, %v2917
        %v2960 = vadd.f32 %v2662, %v2920
        %v2961 = vadd.f32 %v2663, %v2922
        %v2962 = vadd.f32 %v2664, %v2925
        %v2963 = vadd.f32 %v2665, %v2927
        %v2964 = vadd.f32 %v2666, %v2930
        %v2965 = vadd.f32 %v2667, %v2932
        %v2966 = vld [vmem:[%s1177 + $0x10] sm:$0xf]
        %v2967 = vld [vmem:[%s1177 + $0x14] sm:$0xf]
        %v2968 = vld [vmem:[%s1177 + $0x18] sm:$0xf]
        %v2969 = vld [vmem:[%s1177 + $0x1c] sm:$0xf]
        %v2970 = vld [vmem:[%s1177 + $0x20] sm:$0xf]
        %v2971 = vld [vmem:[%s1177 + $0x24] sm:$0xf]
        %v2972 = vld [vmem:[%s1177 + $0x28] sm:$0xf]
        %v2973 = vld [vmem:[%s1177 + $0x2c] sm:$0xf]
        %v2974 = vld [vmem:[%s1177 + $0x30] sm:$0xf]
        %v2975 = vld [vmem:[%s1177 + $0x34] sm:$0xf]
        %v2976 = vld [vmem:[%s1177 + $0x38] sm:$0xf]
        %v2977 = vld [vmem:[%s1177 + $0x3c] sm:$0xf]
        %v2978 = vld [vmem:[%s1177 + $0x40] sm:$0xf]
        %v2979 = vld [vmem:[%s1177 + $0x44] sm:$0xf]
        %v2980 = vld [vmem:[%s1177 + $0x48] sm:$0xf]
        %v2981 = vld [vmem:[%s1177 + $0x4c] sm:$0xf]
        %v2982 = vld [vmem:[%s1177 + $0x50] sm:$0xf]
        %v2983 = vld [vmem:[%s1177 + $0x54] sm:$0xf]
        %v2984 = vld [vmem:[%s1177 + $0x58] sm:$0xf]
        %v2985 = vld [vmem:[%s1177 + $0x5c] sm:$0xf]
        %v2986 = vld [vmem:[%s1177 + $0x60] sm:$0xf]
        %v2987 = vld [vmem:[%s1177 + $0x64] sm:$0xf]
        %v2988 = vld [vmem:[%s1177 + $0x68] sm:$0xf]
        %v2989 = vld [vmem:[%s1177 + $0x6c] sm:$0xf]
        %v2990 = vld [vmem:[%s1177 + $0x70] sm:$0xf]
        %v2991 = vld [vmem:[%s1177 + $0x74] sm:$0xf]
        %v2992 = vld [vmem:[%s1177 + $0x78] sm:$0xf]
        %v2993 = vld [vmem:[%s1177 + $0x7c] sm:$0xf]
        %v2994 = vld [vmem:[%s1177 + $0x80] sm:$0xf]
        %v2995 = vld [vmem:[%s1177 + $0x84] sm:$0xf]
        %v2996 = vld [vmem:[%s1177 + $0x88] sm:$0xf]
        %v2997 = vld [vmem:[%s1177 + $0x8c] sm:$0xf]
        %s2998 = scalar_lea.vmem %s1, 128
        %v2999 = vld [vmem:[%s2998] sm:$0xf]
        %v3000 = vld [vmem:[%s2998 + $0x4] sm:$0xf]
        %v3001 = vld [vmem:[%s2998 + $0x8] sm:$0xf]
        %v3002 = vld [vmem:[%s2998 + $0xc] sm:$0xf]
        %v3035 = vunpack.c.l.b16 %v2966
        %v3036 = vunpack.c.l.b16 %v2967
        %v3037 = vunpack.c.l.b16 %v2968
        %v3038 = vunpack.c.l.b16 %v2969
        %v3039 = vunpack.c.l.b16 %v2970
        %v3040 = vunpack.c.l.b16 %v2971
        %v3041 = vunpack.c.l.b16 %v2972
        %v3042 = vunpack.c.l.b16 %v2973
        %v3043 = vunpack.c.l.b16 %v2974
        %v3044 = vunpack.c.l.b16 %v2975
        %v3045 = vunpack.c.l.b16 %v2976
        %v3046 = vunpack.c.l.b16 %v2977
        %v3047 = vunpack.c.l.b16 %v2978
        %v3048 = vunpack.c.l.b16 %v2979
        %v3049 = vunpack.c.l.b16 %v2980
        %v3050 = vunpack.c.l.b16 %v2981
        %v3051 = vunpack.c.l.b16 %v2982
        %v3052 = vunpack.c.l.b16 %v2983
        %v3053 = vunpack.c.l.b16 %v2984
        %v3054 = vunpack.c.l.b16 %v2985
        %v3055 = vunpack.c.l.b16 %v2986
        %v3056 = vunpack.c.l.b16 %v2987
        %v3057 = vunpack.c.l.b16 %v2988
        %v3058 = vunpack.c.l.b16 %v2989
        %v3059 = vunpack.c.l.b16 %v2990
        %v3060 = vunpack.c.l.b16 %v2991
        %v3061 = vunpack.c.l.b16 %v2992
        %v3062 = vunpack.c.l.b16 %v2993
        %v3063 = vunpack.c.l.b16 %v2994
        %v3064 = vunpack.c.l.b16 %v2995
        %v3065 = vunpack.c.l.b16 %v2996
        %v3066 = vunpack.c.l.b16 %v2997
        %v3067 = vpack.c.b16 %v3036, %v3035
        %v3068 = vpack.c.b16 %v3038, %v3037
        %v3069 = vpack.c.b16 %v3040, %v3039
        %v3070 = vpack.c.b16 %v3042, %v3041
        %v3071 = vpack.c.b16 %v3044, %v3043
        %v3072 = vpack.c.b16 %v3046, %v3045
        %v3073 = vpack.c.b16 %v3048, %v3047
        %v3074 = vpack.c.b16 %v3050, %v3049
        %v3075 = vpack.c.b16 %v3052, %v3051
        %v3076 = vpack.c.b16 %v3054, %v3053
        %v3077 = vpack.c.b16 %v3056, %v3055
        %v3078 = vpack.c.b16 %v3058, %v3057
        %v3079 = vpack.c.b16 %v3060, %v3059
        %v3080 = vpack.c.b16 %v3062, %v3061
        %v3081 = vpack.c.b16 %v3064, %v3063
        %v3082 = vpack.c.b16 %v3066, %v3065
        %v3087 = vunpack.c.l.b16 %v2999
        %v3088 = vunpack.c.l.b16 %v3000
        %v3089 = vunpack.c.l.b16 %v3001
        %v3090 = vunpack.c.l.b16 %v3002
        %v3091 = vpack.c.b16 %v3088, %v3087
        %v3092 = vpack.c.b16 %v3090, %v3089
        %v3096 = vsel %vm810, %v3067, 0
        %v3099 = vsel %vm810, %v3068, 0
        %v3102 = vsel %vm810, %v3069, 0
        %v3105 = vsel %vm810, %v3070, 0
        %v3108 = vsel %vm810, %v3071, 0
        %v3111 = vsel %vm810, %v3072, 0
        %v3114 = vsel %vm810, %v3073, 0
        %v3117 = vsel %vm810, %v3074, 0
        %v3120 = vsel %vm810, %v3075, 0
        %v3123 = vsel %vm810, %v3076, 0
        %v3126 = vsel %vm810, %v3077, 0
        %v3129 = vsel %vm810, %v3078, 0
        %v3132 = vsel %vm810, %v3079, 0
        %v3135 = vsel %vm810, %v3080, 0
        %v3138 = vsel %vm810, %v3081, 0
        %v3141 = vsel %vm810, %v3082, 0
        %3143 = vmatpush.bf16.msra.mxu0 0
        %3144 = vmatpush.bf16.msra.mxu0 0
        %3145 = vmatpush.bf16.msra.mxu0 0
        %3146 = vmatpush.bf16.msra.mxu0 0
        %3147 = vmatpush.bf16.msra.mxu0 0
        %3148 = vmatpush.bf16.msra.mxu0 0
        %3149 = vmatpush.bf16.msra.mxu0 %v3092
        %3150 = vmatpush.bf16.msra.mxu0 %v3091
        %3151 = vmatmul.bf16.gmra.mxu0 %v3096
        %v3152 = vpop.f32.mrf.mxu0
        %v3153 = vadd.f32 0.0, %v3152
        %v3154 = vpop.f32.mrf.mxu0
        %v3155 = vadd.f32 0.0, %v3154
        %3156 = vmatmul.bf16.gmra.mxu0 %v3099
        %v3157 = vpop.f32.mrf.mxu0
        %v3158 = vadd.f32 0.0, %v3157
        %v3159 = vpop.f32.mrf.mxu0
        %v3160 = vadd.f32 0.0, %v3159
        %3161 = vmatmul.bf16.gmra.mxu0 %v3102
        %v3162 = vpop.f32.mrf.mxu0
        %v3163 = vadd.f32 0.0, %v3162
        %v3164 = vpop.f32.mrf.mxu0
        %v3165 = vadd.f32 0.0, %v3164
        %3166 = vmatmul.bf16.gmra.mxu0 %v3105
        %v3167 = vpop.f32.mrf.mxu0
        %v3168 = vadd.f32 0.0, %v3167
        %v3169 = vpop.f32.mrf.mxu0
        %v3170 = vadd.f32 0.0, %v3169
        %3171 = vmatmul.bf16.gmra.mxu0 %v3108
        %v3172 = vpop.f32.mrf.mxu0
        %v3173 = vadd.f32 0.0, %v3172
        %v3174 = vpop.f32.mrf.mxu0
        %v3175 = vadd.f32 0.0, %v3174
        %3176 = vmatmul.bf16.gmra.mxu0 %v3111
        %v3177 = vpop.f32.mrf.mxu0
        %v3178 = vadd.f32 0.0, %v3177
        %v3179 = vpop.f32.mrf.mxu0
        %v3180 = vadd.f32 0.0, %v3179
        %3181 = vmatmul.bf16.gmra.mxu0 %v3114
        %v3182 = vpop.f32.mrf.mxu0
        %v3183 = vadd.f32 0.0, %v3182
        %v3184 = vpop.f32.mrf.mxu0
        %v3185 = vadd.f32 0.0, %v3184
        %3186 = vmatmul.bf16.gmra.mxu0 %v3117
        %v3187 = vpop.f32.mrf.mxu0
        %v3188 = vadd.f32 0.0, %v3187
        %v3189 = vpop.f32.mrf.mxu0
        %v3190 = vadd.f32 0.0, %v3189
        %3191 = vmatmul.bf16.gmra.mxu0 %v3120
        %v3192 = vpop.f32.mrf.mxu0
        %v3193 = vadd.f32 0.0, %v3192
        %v3194 = vpop.f32.mrf.mxu0
        %v3195 = vadd.f32 0.0, %v3194
        %3196 = vmatmul.bf16.gmra.mxu0 %v3123
        %v3197 = vpop.f32.mrf.mxu0
        %v3198 = vadd.f32 0.0, %v3197
        %v3199 = vpop.f32.mrf.mxu0
        %v3200 = vadd.f32 0.0, %v3199
        %3201 = vmatmul.bf16.gmra.mxu0 %v3126
        %v3202 = vpop.f32.mrf.mxu0
        %v3203 = vadd.f32 0.0, %v3202
        %v3204 = vpop.f32.mrf.mxu0
        %v3205 = vadd.f32 0.0, %v3204
        %3206 = vmatmul.bf16.gmra.mxu0 %v3129
        %v3207 = vpop.f32.mrf.mxu0
        %v3208 = vadd.f32 0.0, %v3207
        %v3209 = vpop.f32.mrf.mxu0
        %v3210 = vadd.f32 0.0, %v3209
        %3211 = vmatmul.bf16.gmra.mxu0 %v3132
        %v3212 = vpop.f32.mrf.mxu0
        %v3213 = vadd.f32 0.0, %v3212
        %v3214 = vpop.f32.mrf.mxu0
        %v3215 = vadd.f32 0.0, %v3214
        %3216 = vmatmul.bf16.gmra.mxu0 %v3135
        %v3217 = vpop.f32.mrf.mxu0
        %v3218 = vadd.f32 0.0, %v3217
        %v3219 = vpop.f32.mrf.mxu0
        %v3220 = vadd.f32 0.0, %v3219
        %3221 = vmatmul.bf16.gmra.mxu0 %v3138
        %v3222 = vpop.f32.mrf.mxu0
        %v3223 = vadd.f32 0.0, %v3222
        %v3224 = vpop.f32.mrf.mxu0
        %v3225 = vadd.f32 0.0, %v3224
        %3226 = vmatmul.bf16.gmra.mxu0 %v3141
        %v3227 = vpop.f32.mrf.mxu0
        %v3228 = vadd.f32 0.0, %v3227
        %v3229 = vpop.f32.mrf.mxu0
        %v3230 = vadd.f32 0.0, %v3229
        %3231 = vdwg.mxu0
        %v3232 = vadd.f32 %v2934, %v3153
        %v3233 = vadd.f32 %v2935, %v3155
        %v3234 = vadd.f32 %v2936, %v3158
        %v3235 = vadd.f32 %v2937, %v3160
        %v3236 = vadd.f32 %v2938, %v3163
        %v3237 = vadd.f32 %v2939, %v3165
        %v3238 = vadd.f32 %v2940, %v3168
        %v3239 = vadd.f32 %v2941, %v3170
        %v3240 = vadd.f32 %v2942, %v3173
        %v3241 = vadd.f32 %v2943, %v3175
        %v3242 = vadd.f32 %v2944, %v3178
        %v3243 = vadd.f32 %v2945, %v3180
        %v3244 = vadd.f32 %v2946, %v3183
        %v3245 = vadd.f32 %v2947, %v3185
        %v3246 = vadd.f32 %v2948, %v3188
        %v3247 = vadd.f32 %v2949, %v3190
        %v3248 = vadd.f32 %v2950, %v3193
        %v3249 = vadd.f32 %v2951, %v3195
        %v3250 = vadd.f32 %v2952, %v3198
        %v3251 = vadd.f32 %v2953, %v3200
        %v3252 = vadd.f32 %v2954, %v3203
        %v3253 = vadd.f32 %v2955, %v3205
        %v3254 = vadd.f32 %v2956, %v3208
        %v3255 = vadd.f32 %v2957, %v3210
        %v3256 = vadd.f32 %v2958, %v3213
        %v3257 = vadd.f32 %v2959, %v3215
        %v3258 = vadd.f32 %v2960, %v3218
        %v3259 = vadd.f32 %v2961, %v3220
        %v3260 = vadd.f32 %v2962, %v3223
        %v3261 = vadd.f32 %v2963, %v3225
        %v3262 = vadd.f32 %v2964, %v3228
        %v3263 = vadd.f32 %v2965, %v3230
        %v3264 = vld [vmem:[%s2] sm:$0x1]
        %v3266 = vperm.slane %v3264, 0
        %v3268 = vadd.f32 %v3232, %v3266
        %v3269 = vadd.f32 %v3233, %v3266
        %v3270 = vadd.f32 %v3234, %v3266
        %v3271 = vadd.f32 %v3235, %v3266
        %v3272 = vadd.f32 %v3236, %v3266
        %v3273 = vadd.f32 %v3237, %v3266
        %v3274 = vadd.f32 %v3238, %v3266
        %v3275 = vadd.f32 %v3239, %v3266
        %v3276 = vadd.f32 %v3240, %v3266
        %v3277 = vadd.f32 %v3241, %v3266
        %v3278 = vadd.f32 %v3242, %v3266
        %v3279 = vadd.f32 %v3243, %v3266
        %v3280 = vadd.f32 %v3244, %v3266
        %v3281 = vadd.f32 %v3245, %v3266
        %v3282 = vadd.f32 %v3246, %v3266
        %v3283 = vadd.f32 %v3247, %v3266
        %v3284 = vadd.f32 %v3248, %v3266
        %v3285 = vadd.f32 %v3249, %v3266
        %v3286 = vadd.f32 %v3250, %v3266
        %v3287 = vadd.f32 %v3251, %v3266
        %v3288 = vadd.f32 %v3252, %v3266
        %v3289 = vadd.f32 %v3253, %v3266
        %v3290 = vadd.f32 %v3254, %v3266
        %v3291 = vadd.f32 %v3255, %v3266
        %v3292 = vadd.f32 %v3256, %v3266
        %v3293 = vadd.f32 %v3257, %v3266
        %v3294 = vadd.f32 %v3258, %v3266
        %v3295 = vadd.f32 %v3259, %v3266
        %v3296 = vadd.f32 %v3260, %v3266
        %v3297 = vadd.f32 %v3261, %v3266
        %v3298 = vadd.f32 %v3262, %v3266
        %v3299 = vadd.f32 %v3263, %v3266
        %v3300 = vpack.c.bf16 %v3268, %v3268
        %v3301 = vpack.c.bf16 %v3269, %v3269
        %v3302 = vpack.c.bf16 %v3270, %v3270
        %v3303 = vpack.c.bf16 %v3271, %v3271
        %v3304 = vpack.c.bf16 %v3272, %v3272
        %v3305 = vpack.c.bf16 %v3273, %v3273
        %v3306 = vpack.c.bf16 %v3274, %v3274
        %v3307 = vpack.c.bf16 %v3275, %v3275
        %v3308 = vpack.c.bf16 %v3276, %v3276
        %v3309 = vpack.c.bf16 %v3277, %v3277
        %v3310 = vpack.c.bf16 %v3278, %v3278
        %v3311 = vpack.c.bf16 %v3279, %v3279
        %v3312 = vpack.c.bf16 %v3280, %v3280
        %v3313 = vpack.c.bf16 %v3281, %v3281
        %v3314 = vpack.c.bf16 %v3282, %v3282
        %v3315 = vpack.c.bf16 %v3283, %v3283
        %v3316 = vpack.c.bf16 %v3284, %v3284
        %v3317 = vpack.c.bf16 %v3285, %v3285
        %v3318 = vpack.c.bf16 %v3286, %v3286
        %v3319 = vpack.c.bf16 %v3287, %v3287
        %v3320 = vpack.c.bf16 %v3288, %v3288
        %v3321 = vpack.c.bf16 %v3289, %v3289
        %v3322 = vpack.c.bf16 %v3290, %v3290
        %v3323 = vpack.c.bf16 %v3291, %v3291
        %v3324 = vpack.c.bf16 %v3292, %v3292
        %v3325 = vpack.c.bf16 %v3293, %v3293
        %v3326 = vpack.c.bf16 %v3294, %v3294
        %v3327 = vpack.c.bf16 %v3295, %v3295
        %v3328 = vpack.c.bf16 %v3296, %v3296
        %v3329 = vpack.c.bf16 %v3297, %v3297
        %v3330 = vpack.c.bf16 %v3298, %v3298
        %v3331 = vpack.c.bf16 %v3299, %v3299
        %vm3332 = vcmask 519168
        %3333 = vst.msk [vmem:[%s642] sm:$0xf] %vm3332, %v3300
        %3334 = vst.msk [vmem:[%s642 + $0x4] sm:$0xf] %vm3332, %v3301
        %3335 = vst.msk [vmem:[%s642 + $0x8] sm:$0xf] %vm3332, %v3302
        %3336 = vst.msk [vmem:[%s642 + $0xc] sm:$0xf] %vm3332, %v3303
        %3337 = vst.msk [vmem:[%s642 + $0x10] sm:$0xf] %vm3332, %v3304
        %3338 = vst.msk [vmem:[%s642 + $0x14] sm:$0xf] %vm3332, %v3305
        %3339 = vst.msk [vmem:[%s642 + $0x18] sm:$0xf] %vm3332, %v3306
        %3340 = vst.msk [vmem:[%s642 + $0x1c] sm:$0xf] %vm3332, %v3307
        %3341 = vst.msk [vmem:[%s642 + $0x20] sm:$0xf] %vm3332, %v3308
        %3342 = vst.msk [vmem:[%s642 + $0x24] sm:$0xf] %vm3332, %v3309
        %3343 = vst.msk [vmem:[%s642 + $0x28] sm:$0xf] %vm3332, %v3310
        %3344 = vst.msk [vmem:[%s642 + $0x2c] sm:$0xf] %vm3332, %v3311
        %3345 = vst.msk [vmem:[%s642 + $0x30] sm:$0xf] %vm3332, %v3312
        %3346 = vst.msk [vmem:[%s642 + $0x34] sm:$0xf] %vm3332, %v3313
        %3347 = vst.msk [vmem:[%s642 + $0x38] sm:$0xf] %vm3332, %v3314
        %3348 = vst.msk [vmem:[%s642 + $0x3c] sm:$0xf] %vm3332, %v3315
        %3349 = vst.msk [vmem:[%s642 + $0x40] sm:$0xf] %vm3332, %v3316
        %3350 = vst.msk [vmem:[%s642 + $0x44] sm:$0xf] %vm3332, %v3317
        %3351 = vst.msk [vmem:[%s642 + $0x48] sm:$0xf] %vm3332, %v3318
        %3352 = vst.msk [vmem:[%s642 + $0x4c] sm:$0xf] %vm3332, %v3319
        %3353 = vst.msk [vmem:[%s642 + $0x50] sm:$0xf] %vm3332, %v3320
        %3354 = vst.msk [vmem:[%s642 + $0x54] sm:$0xf] %vm3332, %v3321
        %3355 = vst.msk [vmem:[%s642 + $0x58] sm:$0xf] %vm3332, %v3322
        %3356 = vst.msk [vmem:[%s642 + $0x5c] sm:$0xf] %vm3332, %v3323
        %3357 = vst.msk [vmem:[%s642 + $0x60] sm:$0xf] %vm3332, %v3324
        %3358 = vst.msk [vmem:[%s642 + $0x64] sm:$0xf] %vm3332, %v3325
        %3359 = vst.msk [vmem:[%s642 + $0x68] sm:$0xf] %vm3332, %v3326
        %3360 = vst.msk [vmem:[%s642 + $0x6c] sm:$0xf] %vm3332, %v3327
        %3361 = vst.msk [vmem:[%s642 + $0x70] sm:$0xf] %vm3332, %v3328
        %3362 = vst.msk [vmem:[%s642 + $0x74] sm:$0xf] %vm3332, %v3329
        %3363 = vst.msk [vmem:[%s642 + $0x78] sm:$0xf] %vm3332, %v3330
        %3364 = vst.msk [vmem:[%s642 + $0x7c] sm:$0xf] %vm3332, %v3331
        %p3365 = scmp.lt.s32.totalorder %s14, 1
        %s3366 = scalar_select %p3365, %s14, 1
        %s3367 = smul.addr %s3366, 32
        %s3368 = smul.addr %s3367, 4
        %s3369 = scalar_lea.vmem %s3, %s3368
        // Predicated region
        $region74: #{tpu_custom_call.1} parent=68 // pred_check
          %p3370 = pneg %p100
        $region75: #{tpu_custom_call.1} parent=68 // pred_check_branch
          %3372 = sbr.rel (%p3370) target = $region77
        $region76: #{tpu_custom_call.1} parent=68 // pred_region
          _
        $region77: #{tpu_custom_call.1} parent=68 // pred_fallthru
          _
      $region69: #{tpu_custom_call.1} parent=5 // pred_fallthru
        _
      %p3373 = scmp.le.s32.totalorder 2, %s9
      // Predicated region
      $region78: #{tpu_custom_call.1} parent=5 // pred_check
        %p3374 = pneg %p3373
      $region79: #{tpu_custom_call.1} parent=5 // pred_check_branch
        %3376 = sbr.rel (%p3374) target = $region81
      $region80: #{tpu_custom_call.1} parent=5 // pred_region
        %s3377 = ssub.s32 %s9, 2
        // Predicated region
        $region82: #{tpu_custom_call.1} parent=80 // pred_check
          %p3378 = pneg %p106
        $region83: #{tpu_custom_call.1} parent=80 // pred_check_branch
          %3380 = sbr.rel (%p3378) target = $region85
        $region84: #{tpu_custom_call.1} parent=80 // pred_region
          %p3381 = scmp.lt.s32.totalorder %s15, 1
          %s3382 = scalar_select %p3381, %s15, 1
          %s3383 = smul.addr %s3382, 32
          %s3384 = smul.addr %s3383, 4
          %s3385 = scalar_lea.vmem %s3, %s3384
        $region85: #{tpu_custom_call.1} parent=80 // pred_fallthru
          _
      $region81: #{tpu_custom_call.1} parent=5 // pred_fallthru
        _
    $region6: #{tpu_custom_call.1} parent=1 // loop_footer
      %s13 = sadd.s32 1, %s9
    $region7: #{tpu_custom_call.1} parent=1 // loop_footer_branch
      %8 = sbr.rel target = $region3
    $region8: #{tpu_custom_call.1} parent=1 // loop_exit
      _

</llo_original>
